<compile_context>
chip_gen: v6e
topology: v6e:2x2x1
jax: 0.10.0
libtpu: 0.0.40
codegen_flags: <defaults>
</compile_context>

<pallas_src>
import math

import jax
import jax.numpy as jnp
from jax import lax
from jax.experimental import pallas as pl
from jax.experimental.pallas import tpu as pltpu

_MASK_VALUE = -1e30  # large finite negative; avoids -inf arithmetic pitfalls
_VMEM_LIMIT = 48 * 1024 * 1024  # safe on v7x (64 MiB VMEM/TC); raise on v5e/v6e if tiles grow


# ---------------------------------------------------------------------------
# Kernel 1: fused QKV projection
#   y = x @ [Wq|Wk|Wv] + [bq|bk|bv]   (full 3H-wide MXU matmul, weights resident)
#   split per head on store -> q/k/v laid out (B, NH, S, d) for the flash kernel.
# ---------------------------------------------------------------------------
def _qkv_proj_kernel(x_ref, w_ref, b_ref, q_ref, k_ref, v_ref):
    num_heads, _, head_dim = q_ref.shape
    hidden = num_heads * head_dim
    y = jnp.dot(x_ref[...], w_ref[...], preferred_element_type=jnp.float32) + b_ref[...]
    y = y.astype(q_ref.dtype)                                     # (blk, 3H) bf16
    for h in range(num_heads):                                    # static unroll (small NH)
        lo = h * head_dim
        q_ref[h] = y[:, lo:lo + head_dim]
        k_ref[h] = y[:, hidden + lo:hidden + lo + head_dim]
        v_ref[h] = y[:, 2 * hidden + lo:2 * hidden + lo + head_dim]


def _qkv_proj(x, w_qkv, b_qkv, *, num_heads, head_dim, blk):
    B, S, H = x.shape
    n_tiles = S // blk
    out_sd = jax.ShapeDtypeStruct((B, num_heads, S, head_dim), jnp.bfloat16)
    qkv_spec = pl.BlockSpec((pl.Squeezed(), num_heads, blk, head_dim),
                            lambda b, i: (b, 0, i, 0))
    return pl.pallas_call(
        _qkv_proj_kernel,
        out_shape=(out_sd, out_sd, out_sd),
        grid_spec=pltpu.PrefetchScalarGridSpec(
            num_scalar_prefetch=0,
            grid=(B, n_tiles),                                    # x read once per (b, tile)
            in_specs=[
                pl.BlockSpec((pl.Squeezed(), blk, H), lambda b, i: (b, i, 0)),
                pl.BlockSpec((H, 3 * H), lambda b, i: (0, 0)),    # resident weights
                pl.BlockSpec((1, 3 * H), lambda b, i: (0, 0)),    # resident bias
            ],
            out_specs=(qkv_spec, qkv_spec, qkv_spec),
        ),
        compiler_params=pltpu.CompilerParams(
            dimension_semantics=("parallel", "parallel"),
            vmem_limit_bytes=_VMEM_LIMIT),
    )(x, w_qkv, b_qkv)


# ---------------------------------------------------------------------------
# Kernel 2: causal flash attention fused with the output projection
#   grid (B, q-tile, head, kv); head and kv are reduction axes.
# ---------------------------------------------------------------------------
def _flash_outproj_kernel(q_ref, k_ref, v_ref, wo_ref, bo_ref, o_ref,
                          m_sc, l_sc, acc_sc, out_acc):
    i = pl.program_id(1)                       # query tile
    h = pl.program_id(2)                       # head (reduction)
    j = pl.program_id(3)                       # kv tile (reduction)
    n_heads = pl.num_programs(2)
    blk_q, _ = q_ref.shape
    blk_k, _ = k_ref.shape
    last_j = ((i + 1) * blk_q - 1) // blk_k    # last contributing kv tile for this q tile

    @pl.when(jnp.logical_and(h == 0, j == 0))
    def _init_out():
        out_acc[...] = jnp.zeros_like(out_acc)

    @pl.when(j == 0)
    def _init_head():
        m_sc[...] = jnp.full_like(m_sc, -jnp.inf)
        l_sc[...] = jnp.zeros_like(l_sc)
        acc_sc[...] = jnp.zeros_like(acc_sc)

    def scores():
        # q @ k^T without materializing a transposed copy of k (q pre-scaled by 1/sqrt(d))
        return lax.dot_general(q_ref[...], k_ref[...], (((1,), (1,)), ((), ())),
                               preferred_element_type=jnp.float32)   # (blk_q, blk_k) f32

    def online_softmax_update(s):
        m_prev = m_sc[...]
        m_new = jnp.maximum(m_prev, jnp.max(s, axis=-1, keepdims=True))
        alpha = jnp.exp(m_prev - m_new)
        p = jnp.exp(s - m_new)
        l_sc[...] = alpha * l_sc[...] + jnp.sum(p, axis=-1, keepdims=True)
        acc_sc[...] = alpha * acc_sc[...] + jnp.dot(
            p.astype(jnp.bfloat16), v_ref[...], preferred_element_type=jnp.float32)
        m_sc[...] = m_new

    contributes = j <= last_j                               # block not entirely above diag
    touches_diag = (j + 1) * blk_k - 1 > i * blk_q          # block has entries above the diag

    @pl.when(jnp.logical_and(contributes, jnp.logical_not(touches_diag)))
    def _fast_path():                                       # strictly-lower block: no mask
        online_softmax_update(scores())

    @pl.when(jnp.logical_and(contributes, touches_diag))
    def _masked_path():                                     # diagonal block: build mask
        s = scores()
        row = i * blk_q + lax.broadcasted_iota(jnp.int32, (blk_q, blk_k), 0)
        col = j * blk_k + lax.broadcasted_iota(jnp.int32, (blk_q, blk_k), 1)
        online_softmax_update(jnp.where(row >= col, s, _MASK_VALUE))

    @pl.when(j == last_j)                      # head epilogue: project into fused accumulator
    def _head_epilogue():
        inv_l = pl.reciprocal(l_sc[...], approx=True)
        a = (acc_sc[...] * inv_l).astype(jnp.bfloat16)                # (blk_q, d)
        out_acc[...] += jnp.dot(a, wo_ref[...], preferred_element_type=jnp.float32)

        @pl.when(h == n_heads - 1)             # last head: add bias, lane-dense (blk_q, H) store
        def _finalize():
            o_ref[...] = (out_acc[...] + bo_ref[...]).astype(o_ref.dtype)


def _flash_attention_outproj(q, k, v, wo, bo, *, out_dtype, blk_q, blk_k):
    B, NH, S, d = q.shape
    H = NH * d
    n_q = S // blk_q
    n_kv = S // blk_k

    def kv_index(b, i, h, j):
        # clamp to the last contributing tile so skipped (j > last_j) steps issue no DMA
        return (b, h, jnp.minimum(j, ((i + 1) * blk_q - 1) // blk_k), 0)

    q_spec = pl.BlockSpec((pl.Squeezed(), pl.Squeezed(), blk_q, d),
                          lambda b, i, h, j: (b, h, i, 0))
    kv_spec = pl.BlockSpec((pl.Squeezed(), pl.Squeezed(), blk_k, d), kv_index)
    wo_spec = pl.BlockSpec((pl.Squeezed(), d, H), lambda b, i, h, j: (h, 0, 0))
    bo_spec = pl.BlockSpec((1, H), lambda b, i, h, j: (0, 0))
    o_spec = pl.BlockSpec((pl.Squeezed(), blk_q, H), lambda b, i, h, j: (b, i, 0))

    # TODO(synk): for very long S, flatten (q-tile, kv) into one length-n(n+1)/2 grid axis via
    #             scalar prefetch to remove the ~B*NH*n^2/2 skipped-step bookkeeping iterations.
    return pl.pallas_call(
        _flash_outproj_kernel,
        out_shape=jax.ShapeDtypeStruct((B, S, H), out_dtype),
        grid_spec=pltpu.PrefetchScalarGridSpec(
            num_scalar_prefetch=0,
            grid=(B, n_q, NH, n_kv),                 # head & kv reduction axes innermost
            in_specs=[q_spec, kv_spec, kv_spec, wo_spec, bo_spec],
            out_specs=o_spec,
            scratch_shapes=[pltpu.VMEM((blk_q, 1), jnp.float32),   # running max
                            pltpu.VMEM((blk_q, 1), jnp.float32),   # running denom
                            pltpu.VMEM((blk_q, d), jnp.float32),   # per-head numerator
                            pltpu.VMEM((blk_q, H), jnp.float32)],  # fused out-proj accumulator
        ),
        compiler_params=pltpu.CompilerParams(
            dimension_semantics=("parallel", "parallel", "arbitrary", "arbitrary"),
            vmem_limit_bytes=_VMEM_LIMIT),
    )(q, k, v, wo, bo)


# ---------------------------------------------------------------------------
# Public wrapper
# ---------------------------------------------------------------------------
def multi_head_self_attention(x, params, num_heads, *,
                              block_q=256, block_k=256, block_x=256):
    """x: (B, S, H) f32.  params: (H, H) weights (W.T of nn.Linear) and (1, H) biases."""
    B, S, H = x.shape
    assert H % num_heads == 0
    d = H // num_heads
    blk_q = min(block_q, S)
    blk_k = min(block_k, S)
    blk_x = min(block_x, S)
    # TODO(synk): ragged / non-tile-multiple sequence lengths (needs padding or BoundedSlice).
    assert S % blk_q == 0 and S % blk_k == 0 and S % blk_x == 0

    scale = 1.0 / math.sqrt(d)
    # One-time trace-time layout plumbing: fold 1/sqrt(d) into Wq/bq, fuse QKV weights,
    # split the out-proj weight per head, cast all MXU operands (incl. x, once) to bf16.
    w_qkv = jnp.concatenate([params["wq"] * scale, params["wk"], params["wv"]],
                            axis=1).astype(jnp.bfloat16)            # (H, 3H)
    b_qkv = jnp.concatenate([params["bq"] * scale, params["bk"], params["bv"]],
                            axis=1).astype(jnp.float32)             # (1, 3H)
    wo = params["wo"].reshape(num_heads, d, H).astype(jnp.bfloat16) # per-head out-proj weight
    bo = params["bo"].reshape(1, H).astype(jnp.float32)
    x_bf16 = x.astype(jnp.bfloat16)

    q, k, v = _qkv_proj(x_bf16, w_qkv, b_qkv,
                        num_heads=num_heads, head_dim=d, blk=blk_x)
    # TODO(synk): optional attention_mask and training-mode dropout are not implemented.
    return _flash_attention_outproj(q, k, v, wo, bo, out_dtype=x.dtype,
                                    blk_q=blk_q, blk_k=blk_k)


# ---------------------------------------------------------------------------
# Pure-JAX reference (PyTorch forward, eval mode)
# ---------------------------------------------------------------------------
def reference_mhsa(x, params, num_heads):
    B, S, H = x.shape
    d = H // num_heads
    lin = lambda t, w, b: t @ w + b[0]
    q = lin(x, params["wq"], params["bq"]).reshape(B, S, num_heads, d).transpose(0, 2, 1, 3)
    k = lin(x, params["wk"], params["bk"]).reshape(B, S, num_heads, d).transpose(0, 2, 1, 3)
    v = lin(x, params["wv"], params["bv"]).reshape(B, S, num_heads, d).transpose(0, 2, 1, 3)
    s = jnp.einsum("bhqd,bhkd->bhqk", q, k) / math.sqrt(d)
    causal = jnp.tril(jnp.ones((S, S), dtype=bool))
    s = jnp.where(causal[None, None], s, -jnp.inf)
    p = jax.nn.softmax(s, axis=-1)
    o = jnp.einsum("bhqk,bhkd->bhqd", p, v).transpose(0, 2, 1, 3).reshape(B, S, H)
    return lin(o, params["wo"], params["bo"])


if __name__ == "__main__":
    # small but tile-aligned shapes: head_dim = 64, multiple q/KV tiles so the causal-skip
    # and masked/unmasked score paths are both exercised.
    B, S, H, NH = 2, 256, 256, 4

    key = jax.random.PRNGKey(0)
    ks = jax.random.split(key, 9)
    bound = 1.0 / math.sqrt(H)
    init = lambda k, shape: jax.random.uniform(k, shape, jnp.float32, -bound, bound)
    params = {
        "wq": init(ks[0], (H, H)), "bq": init(ks[1], (1, H)),
        "wk": init(ks[2], (H, H)), "bk": init(ks[3], (1, H)),
        "wv": init(ks[4], (H, H)), "bv": init(ks[5], (1, H)),
        "wo": init(ks[6], (H, H)), "bo": init(ks[7], (1, H)),
    }
    x = jax.random.normal(ks[8], (B, S, H), jnp.float32)

    ref = reference_mhsa(x, params, NH)

    # config 1: square 128x128 tiles -> 2x2 (q, kv) tiles with one skipped upper-tri step
    out = multi_head_self_attention(x, params, NH, block_q=128, block_k=128, block_x=128)
    out = jax.block_until_ready(out)
    assert out.shape == (B, S, H)
    err = jnp.max(jnp.abs(out - ref))
    assert jnp.allclose(out, ref, atol=2e-2, rtol=2e-2), f"mismatch (cfg1) max abs err {err}"

    # config 2: decoupled blk_q != blk_k (single wide q tile, two kv tiles)
    out2 = multi_head_self_attention(x, params, NH, block_q=256, block_k=128, block_x=256)
    out2 = jax.block_until_ready(out2)
    err2 = jnp.max(jnp.abs(out2 - ref))
    assert jnp.allclose(out2, ref, atol=2e-2, rtol=2e-2), f"mismatch (cfg2) max abs err {err2}"

    print("KERNEL_OK")
</pallas_src>

<mosaic_0001>
module attributes {stable_mosaic.version = 11 : i64} {
  func.func @_qkv_proj_kernel(%arg0: i32, %arg1: i32, %arg2: memref<1x128x256xbf16, #tpu.memory_space<vmem>>, %arg3: memref<256x768xbf16, #tpu.memory_space<vmem>>, %arg4: memref<1x768xf32, #tpu.memory_space<vmem>>, %arg5: memref<1x4x128x64xbf16, #tpu.memory_space<vmem>>, %arg6: memref<1x4x128x64xbf16, #tpu.memory_space<vmem>>, %arg7: memref<1x4x128x64xbf16, #tpu.memory_space<vmem>>) attributes {dimension_semantics = [#tpu.dimension_semantics<parallel>, #tpu.dimension_semantics<parallel>], iteration_bounds = array<i64: 2, 2>, scalar_prefetch = 0 : i64, scratch_operands = 0 : i64, tpu.core_type = #tpu.core_type<tc>, window_params = [{transform_indices = @transform_0, window_bounds = array<i64: 1, 128, 256>}, {pipeline_mode = #tpu.pipeline_mode<synchronous>, transform_indices = @transform_1, window_bounds = array<i64: 256, 768>}, {pipeline_mode = #tpu.pipeline_mode<synchronous>, transform_indices = @transform_2, window_bounds = array<i64: 1, 768>}, {transform_indices = @transform_3, window_bounds = array<i64: 1, 4, 128, 64>}, {transform_indices = @transform_4, window_bounds = array<i64: 1, 4, 128, 64>}, {transform_indices = @transform_5, window_bounds = array<i64: 1, 4, 128, 64>}]} {
    %c0 = arith.constant 0 : index
    %c0_0 = arith.constant 0 : index
    %c0_1 = arith.constant 0 : index
    %0 = vector.load %arg2[%c0, %c0_0, %c0_1] : memref<1x128x256xbf16, #tpu.memory_space<vmem>>, vector<1x128x256xbf16>
    %1 = vector.shape_cast %0 : vector<1x128x256xbf16> to vector<128x256xbf16>
    %c0_2 = arith.constant 0 : index
    %c0_3 = arith.constant 0 : index
    %2 = vector.load %arg3[%c0_2, %c0_3] : memref<256x768xbf16, #tpu.memory_space<vmem>>, vector<256x768xbf16>
    %cst = arith.constant dense<0.000000e+00> : vector<128x768xf32>
    %3 = tpu.matmul %1, %2, %cst {dimension_numbers = #tpu.dot_dimension_numbers<[1], [0], [0], [1], [0, 0, 1, 1], [], []>} : vector<128x256xbf16>, vector<256x768xbf16>, vector<128x768xf32> -> vector<128x768xf32>
    %c0_4 = arith.constant 0 : index
    %c0_5 = arith.constant 0 : index
    %4 = vector.load %arg4[%c0_4, %c0_5] : memref<1x768xf32, #tpu.memory_space<vmem>>, vector<1x768xf32>
    %5 = vector.broadcast %4 : vector<1x768xf32> to vector<128x768xf32>
    %6 = arith.addf %3, %5 : vector<128x768xf32>
    %7 = arith.truncf %6 : vector<128x768xf32> to vector<128x768xbf16>
    %8 = vector.extract_strided_slice %7 {offsets = [0, 0], sizes = [128, 64], strides = [1, 1]} : vector<128x768xbf16> to vector<128x64xbf16>
    %c0_6 = arith.constant 0 : index
    %c0_7 = arith.constant 0 : index
    %c0_8 = arith.constant 0 : index
    %c0_9 = arith.constant 0 : index
    %9 = vector.load %arg5[%c0_6, %c0_7, %c0_8, %c0_9] : memref<1x4x128x64xbf16, #tpu.memory_space<vmem>>, vector<1x1x128x64xbf16>
    %10 = vector.shape_cast %9 : vector<1x1x128x64xbf16> to vector<128x64xbf16>
    %11 = vector.shape_cast %8 : vector<128x64xbf16> to vector<1x1x128x64xbf16>
    tpu.vector_store %arg5[%c0_6, %c0_7, %c0_8, %c0_9], %11 {strides = array<i32>} : memref<1x4x128x64xbf16, #tpu.memory_space<vmem>>, vector<1x1x128x64xbf16>,
    %12 = vector.extract_strided_slice %7 {offsets = [0, 256], sizes = [128, 64], strides = [1, 1]} : vector<128x768xbf16> to vector<128x64xbf16>
    %c0_10 = arith.constant 0 : index
    %c0_11 = arith.constant 0 : index
    %c0_12 = arith.constant 0 : index
    %c0_13 = arith.constant 0 : index
    %13 = vector.load %arg6[%c0_10, %c0_11, %c0_12, %c0_13] : memref<1x4x128x64xbf16, #tpu.memory_space<vmem>>, vector<1x1x128x64xbf16>
    %14 = vector.shape_cast %13 : vector<1x1x128x64xbf16> to vector<128x64xbf16>
    %15 = vector.shape_cast %12 : vector<128x64xbf16> to vector<1x1x128x64xbf16>
    tpu.vector_store %arg6[%c0_10, %c0_11, %c0_12, %c0_13], %15 {strides = array<i32>} : memref<1x4x128x64xbf16, #tpu.memory_space<vmem>>, vector<1x1x128x64xbf16>,
    %16 = vector.extract_strided_slice %7 {offsets = [0, 512], sizes = [128, 64], strides = [1, 1]} : vector<128x768xbf16> to vector<128x64xbf16>
    %c0_14 = arith.constant 0 : index
    %c0_15 = arith.constant 0 : index
    %c0_16 = arith.constant 0 : index
    %c0_17 = arith.constant 0 : index
    %17 = vector.load %arg7[%c0_14, %c0_15, %c0_16, %c0_17] : memref<1x4x128x64xbf16, #tpu.memory_space<vmem>>, vector<1x1x128x64xbf16>
    %18 = vector.shape_cast %17 : vector<1x1x128x64xbf16> to vector<128x64xbf16>
    %19 = vector.shape_cast %16 : vector<128x64xbf16> to vector<1x1x128x64xbf16>
    tpu.vector_store %arg7[%c0_14, %c0_15, %c0_16, %c0_17], %19 {strides = array<i32>} : memref<1x4x128x64xbf16, #tpu.memory_space<vmem>>, vector<1x1x128x64xbf16>,
    %20 = vector.extract_strided_slice %7 {offsets = [0, 64], sizes = [128, 64], strides = [1, 1]} : vector<128x768xbf16> to vector<128x64xbf16>
    %c0_18 = arith.constant 0 : index
    %c1 = arith.constant 1 : index
    %c0_19 = arith.constant 0 : index
    %c0_20 = arith.constant 0 : index
    %21 = vector.load %arg5[%c0_18, %c1, %c0_19, %c0_20] : memref<1x4x128x64xbf16, #tpu.memory_space<vmem>>, vector<1x1x128x64xbf16>
    %22 = vector.shape_cast %21 : vector<1x1x128x64xbf16> to vector<128x64xbf16>
    %23 = vector.shape_cast %20 : vector<128x64xbf16> to vector<1x1x128x64xbf16>
    tpu.vector_store %arg5[%c0_18, %c1, %c0_19, %c0_20], %23 {strides = array<i32>} : memref<1x4x128x64xbf16, #tpu.memory_space<vmem>>, vector<1x1x128x64xbf16>,
    %24 = vector.extract_strided_slice %7 {offsets = [0, 320], sizes = [128, 64], strides = [1, 1]} : vector<128x768xbf16> to vector<128x64xbf16>
    %c0_21 = arith.constant 0 : index
    %c1_22 = arith.constant 1 : index
    %c0_23 = arith.constant 0 : index
    %c0_24 = arith.constant 0 : index
    %25 = vector.load %arg6[%c0_21, %c1_22, %c0_23, %c0_24] : memref<1x4x128x64xbf16, #tpu.memory_space<vmem>>, vector<1x1x128x64xbf16>
    %26 = vector.shape_cast %25 : vector<1x1x128x64xbf16> to vector<128x64xbf16>
    %27 = vector.shape_cast %24 : vector<128x64xbf16> to vector<1x1x128x64xbf16>
    tpu.vector_store %arg6[%c0_21, %c1_22, %c0_23, %c0_24], %27 {strides = array<i32>} : memref<1x4x128x64xbf16, #tpu.memory_space<vmem>>, vector<1x1x128x64xbf16>,
    %28 = vector.extract_strided_slice %7 {offsets = [0, 576], sizes = [128, 64], strides = [1, 1]} : vector<128x768xbf16> to vector<128x64xbf16>
    %c0_25 = arith.constant 0 : index
    %c1_26 = arith.constant 1 : index
    %c0_27 = arith.constant 0 : index
    %c0_28 = arith.constant 0 : index
    %29 = vector.load %arg7[%c0_25, %c1_26, %c0_27, %c0_28] : memref<1x4x128x64xbf16, #tpu.memory_space<vmem>>, vector<1x1x128x64xbf16>
    %30 = vector.shape_cast %29 : vector<1x1x128x64xbf16> to vector<128x64xbf16>
    %31 = vector.shape_cast %28 : vector<128x64xbf16> to vector<1x1x128x64xbf16>
    tpu.vector_store %arg7[%c0_25, %c1_26, %c0_27, %c0_28], %31 {strides = array<i32>} : memref<1x4x128x64xbf16, #tpu.memory_space<vmem>>, vector<1x1x128x64xbf16>,
    %32 = vector.extract_strided_slice %7 {offsets = [0, 128], sizes = [128, 64], strides = [1, 1]} : vector<128x768xbf16> to vector<128x64xbf16>
    %c0_29 = arith.constant 0 : index
    %c2 = arith.constant 2 : index
    %c0_30 = arith.constant 0 : index
    %c0_31 = arith.constant 0 : index
    %33 = vector.load %arg5[%c0_29, %c2, %c0_30, %c0_31] : memref<1x4x128x64xbf16, #tpu.memory_space<vmem>>, vector<1x1x128x64xbf16>
    %34 = vector.shape_cast %33 : vector<1x1x128x64xbf16> to vector<128x64xbf16>
    %35 = vector.shape_cast %32 : vector<128x64xbf16> to vector<1x1x128x64xbf16>
    tpu.vector_store %arg5[%c0_29, %c2, %c0_30, %c0_31], %35 {strides = array<i32>} : memref<1x4x128x64xbf16, #tpu.memory_space<vmem>>, vector<1x1x128x64xbf16>,
    %36 = vector.extract_strided_slice %7 {offsets = [0, 384], sizes = [128, 64], strides = [1, 1]} : vector<128x768xbf16> to vector<128x64xbf16>
    %c0_32 = arith.constant 0 : index
    %c2_33 = arith.constant 2 : index
    %c0_34 = arith.constant 0 : index
    %c0_35 = arith.constant 0 : index
    %37 = vector.load %arg6[%c0_32, %c2_33, %c0_34, %c0_35] : memref<1x4x128x64xbf16, #tpu.memory_space<vmem>>, vector<1x1x128x64xbf16>
    %38 = vector.shape_cast %37 : vector<1x1x128x64xbf16> to vector<128x64xbf16>
    %39 = vector.shape_cast %36 : vector<128x64xbf16> to vector<1x1x128x64xbf16>
    tpu.vector_store %arg6[%c0_32, %c2_33, %c0_34, %c0_35], %39 {strides = array<i32>} : memref<1x4x128x64xbf16, #tpu.memory_space<vmem>>, vector<1x1x128x64xbf16>,
    %40 = vector.extract_strided_slice %7 {offsets = [0, 640], sizes = [128, 64], strides = [1, 1]} : vector<128x768xbf16> to vector<128x64xbf16>
    %c0_36 = arith.constant 0 : index
    %c2_37 = arith.constant 2 : index
    %c0_38 = arith.constant 0 : index
    %c0_39 = arith.constant 0 : index
    %41 = vector.load %arg7[%c0_36, %c2_37, %c0_38, %c0_39] : memref<1x4x128x64xbf16, #tpu.memory_space<vmem>>, vector<1x1x128x64xbf16>
    %42 = vector.shape_cast %41 : vector<1x1x128x64xbf16> to vector<128x64xbf16>
    %43 = vector.shape_cast %40 : vector<128x64xbf16> to vector<1x1x128x64xbf16>
    tpu.vector_store %arg7[%c0_36, %c2_37, %c0_38, %c0_39], %43 {strides = array<i32>} : memref<1x4x128x64xbf16, #tpu.memory_space<vmem>>, vector<1x1x128x64xbf16>,
    %44 = vector.extract_strided_slice %7 {offsets = [0, 192], sizes = [128, 64], strides = [1, 1]} : vector<128x768xbf16> to vector<128x64xbf16>
    %c0_40 = arith.constant 0 : index
    %c3 = arith.constant 3 : index
    %c0_41 = arith.constant 0 : index
    %c0_42 = arith.constant 0 : index
    %45 = vector.load %arg5[%c0_40, %c3, %c0_41, %c0_42] : memref<1x4x128x64xbf16, #tpu.memory_space<vmem>>, vector<1x1x128x64xbf16>
    %46 = vector.shape_cast %45 : vector<1x1x128x64xbf16> to vector<128x64xbf16>
    %47 = vector.shape_cast %44 : vector<128x64xbf16> to vector<1x1x128x64xbf16>
    tpu.vector_store %arg5[%c0_40, %c3, %c0_41, %c0_42], %47 {strides = array<i32>} : memref<1x4x128x64xbf16, #tpu.memory_space<vmem>>, vector<1x1x128x64xbf16>,
    %48 = vector.extract_strided_slice %7 {offsets = [0, 448], sizes = [128, 64], strides = [1, 1]} : vector<128x768xbf16> to vector<128x64xbf16>
    %c0_43 = arith.constant 0 : index
    %c3_44 = arith.constant 3 : index
    %c0_45 = arith.constant 0 : index
    %c0_46 = arith.constant 0 : index
    %49 = vector.load %arg6[%c0_43, %c3_44, %c0_45, %c0_46] : memref<1x4x128x64xbf16, #tpu.memory_space<vmem>>, vector<1x1x128x64xbf16>
    %50 = vector.shape_cast %49 : vector<1x1x128x64xbf16> to vector<128x64xbf16>
    %51 = vector.shape_cast %48 : vector<128x64xbf16> to vector<1x1x128x64xbf16>
    tpu.vector_store %arg6[%c0_43, %c3_44, %c0_45, %c0_46], %51 {strides = array<i32>} : memref<1x4x128x64xbf16, #tpu.memory_space<vmem>>, vector<1x1x128x64xbf16>,
    %52 = vector.extract_strided_slice %7 {offsets = [0, 704], sizes = [128, 64], strides = [1, 1]} : vector<128x768xbf16> to vector<128x64xbf16>
    %c0_47 = arith.constant 0 : index
    %c3_48 = arith.constant 3 : index
    %c0_49 = arith.constant 0 : index
    %c0_50 = arith.constant 0 : index
    %53 = vector.load %arg7[%c0_47, %c3_48, %c0_49, %c0_50] : memref<1x4x128x64xbf16, #tpu.memory_space<vmem>>, vector<1x1x128x64xbf16>
    %54 = vector.shape_cast %53 : vector<1x1x128x64xbf16> to vector<128x64xbf16>
    %55 = vector.shape_cast %52 : vector<128x64xbf16> to vector<1x1x128x64xbf16>
    tpu.vector_store %arg7[%c0_47, %c3_48, %c0_49, %c0_50], %55 {strides = array<i32>} : memref<1x4x128x64xbf16, #tpu.memory_space<vmem>>, vector<1x1x128x64xbf16>,
    return
  }
  func.func @transform_0(%arg0: i32, %arg1: i32) -> (i32, i32, i32) {
    %c0_i32 = arith.constant 0 : i32
    %c0_i32_0 = arith.constant 0 : i32
    return %arg0, %arg1, %c0_i32 : i32, i32, i32
  }
  func.func @transform_1(%arg0: i32, %arg1: i32) -> (i32, i32) {
    %c0_i32 = arith.constant 0 : i32
    %c0_i32_0 = arith.constant 0 : i32
    %c0_i32_1 = arith.constant 0 : i32
    return %c0_i32, %c0_i32_0 : i32, i32
  }
  func.func @transform_2(%arg0: i32, %arg1: i32) -> (i32, i32) {
    %c0_i32 = arith.constant 0 : i32
    %c0_i32_0 = arith.constant 0 : i32
    %c0_i32_1 = arith.constant 0 : i32
    return %c0_i32, %c0_i32_0 : i32, i32
  }
  func.func @transform_3(%arg0: i32, %arg1: i32) -> (i32, i32, i32, i32) {
    %c0_i32 = arith.constant 0 : i32
    %c0_i32_0 = arith.constant 0 : i32
    %c0_i32_1 = arith.constant 0 : i32
    return %arg0, %c0_i32, %arg1, %c0_i32_0 : i32, i32, i32, i32
  }
  func.func @transform_4(%arg0: i32, %arg1: i32) -> (i32, i32, i32, i32) {
    %c0_i32 = arith.constant 0 : i32
    %c0_i32_0 = arith.constant 0 : i32
    %c0_i32_1 = arith.constant 0 : i32
    return %arg0, %c0_i32, %arg1, %c0_i32_0 : i32, i32, i32, i32
  }
  func.func @transform_5(%arg0: i32, %arg1: i32) -> (i32, i32, i32, i32) {
    %c0_i32 = arith.constant 0 : i32
    %c0_i32_0 = arith.constant 0 : i32
    %c0_i32_1 = arith.constant 0 : i32
    return %arg0, %c0_i32, %arg1, %c0_i32_0 : i32, i32, i32, i32
  }
}

</mosaic_0001>

<llo_original>
// kernel: tpu_custom_call.1
$region0: #{tpu_custom_call.1}
  #allocation0 [shape = 'u32[]', space=smem, size = 0x4, offset = 0x4, fixed_abs, tag = 'smem constant byte address 0x4 - core index']
  #allocation1 [shape = 'u32[144,128]{1,0:T(1,128)}', space=vmem, size = 0x12000, scoped, tag = 'internal scratch']
  %s0 = inlined_call_operand.hbm [shape: bf16[2,256,256], index: 0, kind: input, shape index: {}]
  %s1 = inlined_call_operand.hbm [shape: bf16[256,768], index: 1, kind: input, shape index: {}]
  %s2 = inlined_call_operand.hbm [shape: f32[1,768], index: 2, kind: input, shape index: {}]
  %s3 = inlined_call_operand.vmem [shape: bf16[2,4,256,64], index: 3, kind: output, shape index: {0}]
  %s4 = inlined_call_operand.vmem [shape: bf16[2,4,256,64], index: 4, kind: output, shape index: {1}]
  %s5 = inlined_call_operand.vmem [shape: bf16[2,4,256,64], index: 5, kind: output, shape index: {2}]
  %6 = xla_tuple %s3, %s4, %s5
  %s7 = sld [smem:[#allocation0]]
  $region184: #{tpu_custom_call.1} parent=0
    _
  %s9 = ssub.s32 1, %s7
  %s10 = scalar_select 0, %s9, %s7
  $region1: #{tpu_custom_call.1} parent=0
    #allocation2 [shape = 'u8[131072]{0}', space=vmem, size = 0x20000, scoped, tag = 'input window, operand 0']
    #allocation3 [shape = 's32[2]{0}', space=sflag, size = 0x8, scoped, tag = 'scoped memory for tpu_custom_call.1']
    #allocation4 [shape = 'u8[393216]{0}', space=vmem, size = 0x60000, scoped, tag = 'input window, operand 1, single buffered']
    #allocation5 [shape = 's32[1]{0}', space=sflag, size = 0x4, scoped, tag = 'scoped memory for tpu_custom_call.1']
    #allocation6 [shape = 'u8[3072]{0}', space=vmem, size = 0xc00, scoped, tag = 'input window, operand 2, single buffered']
    #allocation7 [shape = 'u8[262144]{0}', space=vmem, size = 0x40000, scoped, tag = 'output window, operand 0']
    #allocation8 [shape = 'u8[262144]{0}', space=vmem, size = 0x40000, scoped, tag = 'output window, operand 1']
    #allocation9 [shape = 'u8[262144]{0}', space=vmem, size = 0x40000, scoped, tag = 'output window, operand 2']
    %11 = vsyncpa [#allocation3], 0
    %s12 = scalar_lea.sflag [#allocation3], 1
    %13 = vsyncpa %s12, 0
    %14 = vsyncpa [#allocation5], 0
    loop: start=0, step=1, limit=6
    $region2: #{tpu_custom_call.1} parent=1 // loop_pre_header
      _
    $region3: #{tpu_custom_call.1} parent=1 // loop_header
      %s16 = sphi 0, %s20
      %p17 = scmp.ge.s32.totalorder %s16, 6
      %s23 = sphi 0, %s35
      %s24 = sphi 0, %s31
      %s25 = sphi 0, %s23
      %s26 = sphi 0, %s24
      %s27 = sphi 0, %s25
      %s28 = sphi 0, %s26
      %s40 = sphi 0, %s42
      %s43 = sphi 0, %s40
      %s44 = sphi 0, %s43
      %s60 = sphi 0, %s44
      %s64 = sphi 0, %s64
      %s66 = sphi 0, %s64
      %s67 = sphi 0, %s66
      %s81 = sphi 0, %s67
      %s85 = sphi 0, %s85
      %s87 = sphi 0, %s85
      %s88 = sphi 0, %s87
      %s102 = sphi 0, %s88
      %s110 = sphi 0, %s112
      %s113 = sphi 0, %s110
      %s114 = sphi 0, %s113
      %s130 = sphi 0, %s114
      %s138 = sphi 0, %s140
      %s141 = sphi 0, %s138
      %s142 = sphi 0, %s141
      %s158 = sphi 0, %s142
      %s166 = sphi 0, %s168
      %s169 = sphi 0, %s166
      %s170 = sphi 0, %s169
      %s186 = sphi 0, %s170
    $region4: #{tpu_custom_call.1} parent=1 // loop_header_branch
      %19 = sbr.rel (%p17) target = $region8
    $region5: #{tpu_custom_call.1} parent=1 // loop_body
      %s21 = ssub.s32 %s16, 1
      %s22 = ssub.s32 %s16, 2
      %s29 = sadd.s32 1, %s24
      %p30 = scmp.ge.s32.totalorder %s29, 2
      %s31 = scalar_select %p30, 0, %s29
      %s32 = sadd.s32 1, %s23
      %s33 = scalar_select %p30, %s32, %s23
      %p34 = scmp.ge.s32.totalorder %s33, 2
      %s35 = scalar_select %p34, 0, %s33
      %s36 = ssub.s32 %s23, %s35
      %s37 = ssub.s32 %s24, %s31
      %s38 = sor.u32 %s36, %s37
      %p39 = scmp.eq.s32.totalorder %s38, 0
      %s41 = sadd.s32 %s40, 1
      %s42 = scalar_select %p39, %s40, %s41
      %p45 = pneg %p39
      %p46 = scmp.eq.s32.totalorder %s16, 3
      %p47 = por %p45, %p46
      %p48 = scmp.ne.s32.totalorder %s40, %s43
      %p49 = scmp.eq.s32.totalorder %s16, 0
      %p50 = por %p48, %p49
      %p51 = scmp.ne.s32.totalorder %s40, %s43
      %p52 = scmp.eq.s32.totalorder %s21, 3
      %p53 = por %p51, %p52
      %p54 = scmp.ne.s32.totalorder %s43, %s44
      %p55 = scmp.eq.s32.totalorder %s21, 0
      %p56 = por %p54, %p55
      %p57 = scmp.ne.s32.totalorder %s43, %s44
      %p58 = scmp.eq.s32.totalorder %s22, 3
      %p59 = por %p57, %p58
      %p61 = scmp.ne.s32.totalorder %s44, %s60
      %p62 = scmp.eq.s32.totalorder %s22, 0
      %p63 = por %p61, %p62
      %s65 = sadd.s32 %s64, 1
      %p68 = scmp.eq.s32.totalorder %s16, 3
      %p69 = scmp.ne.s32.totalorder %s64, %s66
      %p70 = scmp.eq.s32.totalorder %s16, 0
      %p71 = por %p69, %p70
      %p72 = scmp.ne.s32.totalorder %s64, %s66
      %p73 = scmp.eq.s32.totalorder %s21, 3
      %p74 = por %p72, %p73
      %p75 = scmp.ne.s32.totalorder %s66, %s67
      %p76 = scmp.eq.s32.totalorder %s21, 0
      %p77 = por %p75, %p76
      %p78 = scmp.ne.s32.totalorder %s66, %s67
      %p79 = scmp.eq.s32.totalorder %s22, 3
      %p80 = por %p78, %p79
      %p82 = scmp.ne.s32.totalorder %s67, %s81
      %p83 = scmp.eq.s32.totalorder %s22, 0
      %p84 = por %p82, %p83
      %s86 = sadd.s32 %s85, 1
      %p89 = scmp.eq.s32.totalorder %s16, 3
      %p90 = scmp.ne.s32.totalorder %s85, %s87
      %p91 = scmp.eq.s32.totalorder %s16, 0
      %p92 = por %p90, %p91
      %p93 = scmp.ne.s32.totalorder %s85, %s87
      %p94 = scmp.eq.s32.totalorder %s21, 3
      %p95 = por %p93, %p94
      %p96 = scmp.ne.s32.totalorder %s87, %s88
      %p97 = scmp.eq.s32.totalorder %s21, 0
      %p98 = por %p96, %p97
      %p99 = scmp.ne.s32.totalorder %s87, %s88
      %p100 = scmp.eq.s32.totalorder %s22, 3
      %p101 = por %p99, %p100
      %p103 = scmp.ne.s32.totalorder %s88, %s102
      %p104 = scmp.eq.s32.totalorder %s22, 0
      %p105 = por %p103, %p104
      %s106 = ssub.s32 %s23, %s35
      %s107 = ssub.s32 %s24, %s31
      %s108 = sor.u32 %s106, %s107
      %p109 = scmp.eq.s32.totalorder %s108, 0
      %s111 = sadd.s32 %s110, 1
      %s112 = scalar_select %p109, %s110, %s111
      %p115 = pneg %p109
      %p116 = scmp.eq.s32.totalorder %s16, 3
      %p117 = por %p115, %p116
      %p118 = scmp.ne.s32.totalorder %s110, %s113
      %p119 = scmp.eq.s32.totalorder %s16, 0
      %p120 = por %p118, %p119
      %p121 = scmp.ne.s32.totalorder %s110, %s113
      %p122 = scmp.eq.s32.totalorder %s21, 3
      %p123 = por %p121, %p122
      %p124 = scmp.ne.s32.totalorder %s113, %s114
      %p125 = scmp.eq.s32.totalorder %s21, 0
      %p126 = por %p124, %p125
      %p127 = scmp.ne.s32.totalorder %s113, %s114
      %p128 = scmp.eq.s32.totalorder %s22, 3
      %p129 = por %p127, %p128
      %p131 = scmp.ne.s32.totalorder %s114, %s130
      %p132 = scmp.eq.s32.totalorder %s22, 0
      %p133 = por %p131, %p132
      %s134 = ssub.s32 %s23, %s35
      %s135 = ssub.s32 %s24, %s31
      %s136 = sor.u32 %s134, %s135
      %p137 = scmp.eq.s32.totalorder %s136, 0
      %s139 = sadd.s32 %s138, 1
      %s140 = scalar_select %p137, %s138, %s139
      %p143 = pneg %p137
      %p144 = scmp.eq.s32.totalorder %s16, 3
      %p145 = por %p143, %p144
      %p146 = scmp.ne.s32.totalorder %s138, %s141
      %p147 = scmp.eq.s32.totalorder %s16, 0
      %p148 = por %p146, %p147
      %p149 = scmp.ne.s32.totalorder %s138, %s141
      %p150 = scmp.eq.s32.totalorder %s21, 3
      %p151 = por %p149, %p150
      %p152 = scmp.ne.s32.totalorder %s141, %s142
      %p153 = scmp.eq.s32.totalorder %s21, 0
      %p154 = por %p152, %p153
      %p155 = scmp.ne.s32.totalorder %s141, %s142
      %p156 = scmp.eq.s32.totalorder %s22, 3
      %p157 = por %p155, %p156
      %p159 = scmp.ne.s32.totalorder %s142, %s158
      %p160 = scmp.eq.s32.totalorder %s22, 0
      %p161 = por %p159, %p160
      %s162 = ssub.s32 %s23, %s35
      %s163 = ssub.s32 %s24, %s31
      %s164 = sor.u32 %s162, %s163
      %p165 = scmp.eq.s32.totalorder %s164, 0
      %s167 = sadd.s32 %s166, 1
      %s168 = scalar_select %p165, %s166, %s167
      %p171 = pneg %p165
      %p172 = scmp.eq.s32.totalorder %s16, 3
      %p173 = por %p171, %p172
      %p174 = scmp.ne.s32.totalorder %s166, %s169
      %p175 = scmp.eq.s32.totalorder %s16, 0
      %p176 = por %p174, %p175
      %p177 = scmp.ne.s32.totalorder %s166, %s169
      %p178 = scmp.eq.s32.totalorder %s21, 3
      %p179 = por %p177, %p178
      %p180 = scmp.ne.s32.totalorder %s169, %s170
      %p181 = scmp.eq.s32.totalorder %s21, 0
      %p182 = por %p180, %p181
      %p183 = scmp.ne.s32.totalorder %s169, %s170
      %p184 = scmp.eq.s32.totalorder %s22, 3
      %p185 = por %p183, %p184
      %p187 = scmp.ne.s32.totalorder %s170, %s186
      %p188 = scmp.eq.s32.totalorder %s22, 0
      %p189 = por %p187, %p188
      %p190 = scmp.le.s32.totalorder 1, %s16
      %p191 = scmp.lt.s32.totalorder %s16, 5
      %p192 = pnand %p190, %p191
      %p193 = pneg %p192
      // Predicated region
      $region9: #{tpu_custom_call.1} parent=5 // pred_check
        _
      $region10: #{tpu_custom_call.1} parent=5 // pred_check_branch
        %195 = sbr.rel (%p192) target = $region12
      $region11: #{tpu_custom_call.1} parent=5 // pred_region
        %s196 = ssub.s32 %s16, 1
        // Predicated region
        $region13: #{tpu_custom_call.1} parent=11 // pred_check
          %p197 = pneg %p77
        $region14: #{tpu_custom_call.1} parent=11 // pred_check_branch
          %199 = sbr.rel (%p197) target = $region16
        $region15: #{tpu_custom_call.1} parent=11 // pred_region
          %s201 = ssub.s32 12288, 12288
          %202 = vsyncadd [#allocation5], %s201
          %s203 = sshll.u32 [#allocation4], 4
          %s204 = int_to_ptr.vmem [resolvable:$true] %s203
          %209 = dma.hbm_to_vmem [thread:$0]  %s1, 12288, %s204, [#allocation5], 384, 384, 24
        $region16: #{tpu_custom_call.1} parent=11 // pred_fallthru
          _
        // Predicated region
        $region17: #{tpu_custom_call.1} parent=11 // pred_check
          %p210 = pneg %p98
        $region18: #{tpu_custom_call.1} parent=11 // pred_check_branch
          %212 = sbr.rel (%p210) target = $region20
        $region19: #{tpu_custom_call.1} parent=11 // pred_region
          %s214 = ssub.s32 96, 96
          %215 = vsyncadd [#allocation5], %s214
          %s217 = sshll.u32 [#allocation6], 4
          %s218 = int_to_ptr.vmem [resolvable:$true] %s217
          %220 = dma.hbm_to_vmem [thread:$0]  %s2, 96, %s218, [#allocation5]
        $region20: #{tpu_custom_call.1} parent=11 // pred_fallthru
          _
      $region12: #{tpu_custom_call.1} parent=5 // pred_fallthru
        _
      %p221 = scmp.lt.s32.totalorder %s16, 4
      // Predicated region
      $region21: #{tpu_custom_call.1} parent=5 // pred_check
        %p222 = pneg %p221
      $region22: #{tpu_custom_call.1} parent=5 // pred_check_branch
        %224 = sbr.rel (%p222) target = $region24
      $region23: #{tpu_custom_call.1} parent=5 // pred_region
        // Predicated region
        $region25: #{tpu_custom_call.1} parent=23 // pred_check
          %p225 = pneg %p50
        $region26: #{tpu_custom_call.1} parent=23 // pred_check_branch
          %227 = sbr.rel (%p225) target = $region28
        $region27: #{tpu_custom_call.1} parent=23 // pred_region
          %s228 = sand.u32 %s40, 1
          %s229 = scalar_lea.sflag [#allocation3], %s228
          %s230 = sand.u32 %s40, 1
          %s231 = smul.addr %s230, 128
          %s232 = scalar_lea.vmem [#allocation2], %s231
          %s233 = smul.u32 16, %s24
          %s235 = ssub.s32 2048, 2048
          %236 = vsyncadd %s229, %s235
          %s237 = smul.addr %s233, 2
          %s238 = smul.addr %s23, 64
          %s239 = sadd.s32 %s237, %s238
          %s240 = smul.addr %s239, 64
          %s241 = scalar_lea.hbm %s0, %s240
          %s242 = sshll.u32 %s232, 4
          %s243 = int_to_ptr.vmem [resolvable:$true] %s242
          %248 = dma.hbm_to_vmem [thread:$0]  %s241, 2048, %s243, %s229, 128, 128, 8
        $region28: #{tpu_custom_call.1} parent=23 // pred_fallthru
          _
      $region24: #{tpu_custom_call.1} parent=5 // pred_fallthru
        _
      %p249 = scmp.le.s32.totalorder 1, %s16
      %p250 = scmp.lt.s32.totalorder %s16, 5
      %p251 = pnand %p249, %p250
      %p252 = pneg %p251
      // Predicated region
      $region29: #{tpu_custom_call.1} parent=5 // pred_check
        _
      $region30: #{tpu_custom_call.1} parent=5 // pred_check_branch
        %254 = sbr.rel (%p251) target = $region32
      $region31: #{tpu_custom_call.1} parent=5 // pred_region
        %s255 = ssub.s32 %s16, 1
        %s256 = sand.u32 %s43, 1
        %s257 = scalar_lea.sflag [#allocation3], %s256
        %s258 = sand.u32 %s43, 1
        %s259 = smul.addr %s258, 128
        %s260 = scalar_lea.vmem [#allocation2], %s259
        // Predicated region
        $region33: #{tpu_custom_call.1} parent=31 // pred_check
          %p261 = pneg %p56
        $region34: #{tpu_custom_call.1} parent=31 // pred_check_branch
          %263 = sbr.rel (%p261) target = $region36
        $region35: #{tpu_custom_call.1} parent=31 // pred_region
          %264 = dma.done %s257, 2048
        $region36: #{tpu_custom_call.1} parent=31 // pred_fallthru
          _
        // Predicated region
        $region37: #{tpu_custom_call.1} parent=31 // pred_check
          %p265 = pneg %p77
        $region38: #{tpu_custom_call.1} parent=31 // pred_check_branch
          %267 = sbr.rel (%p265) target = $region40
        $region39: #{tpu_custom_call.1} parent=31 // pred_region
          %268 = dma.done [#allocation5], 12288
        $region40: #{tpu_custom_call.1} parent=31 // pred_fallthru
          _
        // Predicated region
        $region41: #{tpu_custom_call.1} parent=31 // pred_check
          %p269 = pneg %p98
        $region42: #{tpu_custom_call.1} parent=31 // pred_check_branch
          %271 = sbr.rel (%p269) target = $region44
        $region43: #{tpu_custom_call.1} parent=31 // pred_region
          %272 = dma.done [#allocation5], 96
        $region44: #{tpu_custom_call.1} parent=31 // pred_fallthru
          _
        %s273 = sand.u32 %s43, 1
        %s274 = scalar_lea.sflag [#allocation3], %s273
        %s275 = sand.u32 %s43, 1
        %s276 = smul.addr %s275, 128
        %s277 = scalar_lea.vmem [#allocation2], %s276
        %p278 = pneg %p56
        %p279 = pneg %p53
        %p280 = pneg %p77
        %p281 = pneg %p74
        %p282 = pneg %p98
        %p283 = pneg %p95
        %p284 = pneg %p126
        %p285 = pneg %p123
        %s286 = sand.u32 %s113, 1
        %s287 = sand.u32 %s113, 1
        %s288 = smul.addr %s287, 256
        %s289 = scalar_lea.vmem [#allocation7], %s288
        %p290 = pneg %p154
        %p291 = pneg %p151
        %s292 = sand.u32 %s141, 1
        %s293 = sand.u32 %s141, 1
        %s294 = smul.addr %s293, 256
        %s295 = scalar_lea.vmem [#allocation8], %s294
        %p296 = pneg %p182
        %p297 = pneg %p179
        %s298 = sand.u32 %s169, 1
        %s299 = sand.u32 %s169, 1
        %s300 = smul.addr %s299, 256
        %s301 = scalar_lea.vmem [#allocation9], %s300
        %s302 = smul.u32 16, %s26
        %s303 = smul.u32 16, %s26
        %s304 = smul.u32 16, %s26
        %s305 = smul.u32 16, %s26
        %v306 = vld [vmem:[%s260] sm:$0xff]
        %v307 = vld [vmem:[%s260 + $0x8] sm:$0xff]
        %v308 = vld [vmem:[%s260 + $0x10] sm:$0xff]
        %v309 = vld [vmem:[%s260 + $0x18] sm:$0xff]
        %v310 = vld [vmem:[%s260 + $0x20] sm:$0xff]
        %v311 = vld [vmem:[%s260 + $0x28] sm:$0xff]
        %v312 = vld [vmem:[%s260 + $0x30] sm:$0xff]
        %v313 = vld [vmem:[%s260 + $0x38] sm:$0xff]
        %v314 = vld [vmem:[%s260 + $0x40] sm:$0xff]
        %v315 = vld [vmem:[%s260 + $0x48] sm:$0xff]
        %v316 = vld [vmem:[%s260 + $0x50] sm:$0xff]
        %v317 = vld [vmem:[%s260 + $0x58] sm:$0xff]
        %v318 = vld [vmem:[%s260 + $0x60] sm:$0xff]
        %v319 = vld [vmem:[%s260 + $0x68] sm:$0xff]
        %v320 = vld [vmem:[%s260 + $0x70] sm:$0xff]
        %v321 = vld [vmem:[%s260 + $0x78] sm:$0xff]
        %v322 = vld [vmem:[#allocation4] sm:$0xff]
        %v323 = vld [vmem:[#allocation4 + $0x8] sm:$0xff]
        %v324 = vld [vmem:[#allocation4 + $0x10] sm:$0xff]
        %v325 = vld [vmem:[#allocation4 + $0x18] sm:$0xff]
        %v326 = vld [vmem:[#allocation4 + $0x20] sm:$0xff]
        %v327 = vld [vmem:[#allocation4 + $0x28] sm:$0xff]
        %v328 = vld [vmem:[#allocation4 + $0x30] sm:$0xff]
        %v329 = vld [vmem:[#allocation4 + $0x38] sm:$0xff]
        %v330 = vld [vmem:[#allocation4 + $0x40] sm:$0xff]
        %v331 = vld [vmem:[#allocation4 + $0x48] sm:$0xff]
        %v332 = vld [vmem:[#allocation4 + $0x50] sm:$0xff]
        %v333 = vld [vmem:[#allocation4 + $0x58] sm:$0xff]
        %v334 = vld [vmem:[#allocation4 + $0x60] sm:$0xff]
        %v335 = vld [vmem:[#allocation4 + $0x68] sm:$0xff]
        %v336 = vld [vmem:[#allocation4 + $0x70] sm:$0xff]
        %v337 = vld [vmem:[#allocation4 + $0x78] sm:$0xff]
        %v338 = vld [vmem:[#allocation4 + $0x80] sm:$0xff]
        %v339 = vld [vmem:[#allocation4 + $0x88] sm:$0xff]
        %v340 = vld [vmem:[#allocation4 + $0x90] sm:$0xff]
        %v341 = vld [vmem:[#allocation4 + $0x98] sm:$0xff]
        %v342 = vld [vmem:[#allocation4 + $0xa0] sm:$0xff]
        %v343 = vld [vmem:[#allocation4 + $0xa8] sm:$0xff]
        %v344 = vld [vmem:[#allocation4 + $0xb0] sm:$0xff]
        %v345 = vld [vmem:[#allocation4 + $0xb8] sm:$0xff]
        %v346 = vld [vmem:[#allocation4 + $0xc0] sm:$0xff]
        %v347 = vld [vmem:[#allocation4 + $0xc8] sm:$0xff]
        %v348 = vld [vmem:[#allocation4 + $0xd0] sm:$0xff]
        %v349 = vld [vmem:[#allocation4 + $0xd8] sm:$0xff]
        %v350 = vld [vmem:[#allocation4 + $0xe0] sm:$0xff]
        %v351 = vld [vmem:[#allocation4 + $0xe8] sm:$0xff]
        %v352 = vld [vmem:[#allocation4 + $0xf0] sm:$0xff]
        %v353 = vld [vmem:[#allocation4 + $0xf8] sm:$0xff]
        %v354 = vld [vmem:[#allocation4 + $0x100] sm:$0xff]
        %v355 = vld [vmem:[#allocation4 + $0x108] sm:$0xff]
        %v356 = vld [vmem:[#allocation4 + $0x110] sm:$0xff]
        %v357 = vld [vmem:[#allocation4 + $0x118] sm:$0xff]
        %v358 = vld [vmem:[#allocation4 + $0x120] sm:$0xff]
        %v359 = vld [vmem:[#allocation4 + $0x128] sm:$0xff]
        %v360 = vld [vmem:[#allocation4 + $0x130] sm:$0xff]
        %v361 = vld [vmem:[#allocation4 + $0x138] sm:$0xff]
        %v362 = vld [vmem:[#allocation4 + $0x140] sm:$0xff]
        %v363 = vld [vmem:[#allocation4 + $0x148] sm:$0xff]
        %v364 = vld [vmem:[#allocation4 + $0x150] sm:$0xff]
        %v365 = vld [vmem:[#allocation4 + $0x158] sm:$0xff]
        %v366 = vld [vmem:[#allocation4 + $0x160] sm:$0xff]
        %v367 = vld [vmem:[#allocation4 + $0x168] sm:$0xff]
        %v368 = vld [vmem:[#allocation4 + $0x170] sm:$0xff]
        %v369 = vld [vmem:[#allocation4 + $0x178] sm:$0xff]
        %v370 = vld [vmem:[#allocation4 + $0x180] sm:$0xff]
        %v371 = vld [vmem:[#allocation4 + $0x188] sm:$0xff]
        %v372 = vld [vmem:[#allocation4 + $0x190] sm:$0xff]
        %v373 = vld [vmem:[#allocation4 + $0x198] sm:$0xff]
        %v374 = vld [vmem:[#allocation4 + $0x1a0] sm:$0xff]
        %v375 = vld [vmem:[#allocation4 + $0x1a8] sm:$0xff]
        %v376 = vld [vmem:[#allocation4 + $0x1b0] sm:$0xff]
        %v377 = vld [vmem:[#allocation4 + $0x1b8] sm:$0xff]
        %v378 = vld [vmem:[#allocation4 + $0x1c0] sm:$0xff]
        %v379 = vld [vmem:[#allocation4 + $0x1c8] sm:$0xff]
        %v380 = vld [vmem:[#allocation4 + $0x1d0] sm:$0xff]
        %v381 = vld [vmem:[#allocation4 + $0x1d8] sm:$0xff]
        %v382 = vld [vmem:[#allocation4 + $0x1e0] sm:$0xff]
        %v383 = vld [vmem:[#allocation4 + $0x1e8] sm:$0xff]
        %v384 = vld [vmem:[#allocation4 + $0x1f0] sm:$0xff]
        %v385 = vld [vmem:[#allocation4 + $0x1f8] sm:$0xff]
        %v386 = vld [vmem:[#allocation4 + $0x200] sm:$0xff]
        %v387 = vld [vmem:[#allocation4 + $0x208] sm:$0xff]
        %v388 = vld [vmem:[#allocation4 + $0x210] sm:$0xff]
        %v389 = vld [vmem:[#allocation4 + $0x218] sm:$0xff]
        %v390 = vld [vmem:[#allocation4 + $0x220] sm:$0xff]
        %v391 = vld [vmem:[#allocation4 + $0x228] sm:$0xff]
        %v392 = vld [vmem:[#allocation4 + $0x230] sm:$0xff]
        %v393 = vld [vmem:[#allocation4 + $0x238] sm:$0xff]
        %v394 = vld [vmem:[#allocation4 + $0x240] sm:$0xff]
        %v395 = vld [vmem:[#allocation4 + $0x248] sm:$0xff]
        %v396 = vld [vmem:[#allocation4 + $0x250] sm:$0xff]
        %v397 = vld [vmem:[#allocation4 + $0x258] sm:$0xff]
        %v398 = vld [vmem:[#allocation4 + $0x260] sm:$0xff]
        %v399 = vld [vmem:[#allocation4 + $0x268] sm:$0xff]
        %v400 = vld [vmem:[#allocation4 + $0x270] sm:$0xff]
        %v401 = vld [vmem:[#allocation4 + $0x278] sm:$0xff]
        %v402 = vld [vmem:[#allocation4 + $0x280] sm:$0xff]
        %v403 = vld [vmem:[#allocation4 + $0x288] sm:$0xff]
        %v404 = vld [vmem:[#allocation4 + $0x290] sm:$0xff]
        %v405 = vld [vmem:[#allocation4 + $0x298] sm:$0xff]
        %v406 = vld [vmem:[#allocation4 + $0x2a0] sm:$0xff]
        %v407 = vld [vmem:[#allocation4 + $0x2a8] sm:$0xff]
        %v408 = vld [vmem:[#allocation4 + $0x2b0] sm:$0xff]
        %v409 = vld [vmem:[#allocation4 + $0x2b8] sm:$0xff]
        %v410 = vld [vmem:[#allocation4 + $0x2c0] sm:$0xff]
        %v411 = vld [vmem:[#allocation4 + $0x2c8] sm:$0xff]
        %v412 = vld [vmem:[#allocation4 + $0x2d0] sm:$0xff]
        %v413 = vld [vmem:[#allocation4 + $0x2d8] sm:$0xff]
        %v414 = vld [vmem:[#allocation4 + $0x2e0] sm:$0xff]
        %v415 = vld [vmem:[#allocation4 + $0x2e8] sm:$0xff]
        %v416 = vld [vmem:[#allocation4 + $0x2f0] sm:$0xff]
        %v417 = vld [vmem:[#allocation4 + $0x2f8] sm:$0xff]
        %v418 = vld [vmem:[#allocation6] sm:$0x3f]
        %v420 = vlaneseq
        %v421 = vshrl.u32 %v420, 7
        %v422 = vsub.s32 0, %v421
        %v423 = vrot.slane %v418, %v422
        %v424 = vlaneseq
        %v425 = vshrl.u32 %v424, 7
        %v426 = vsub.s32 1, %v425
        %v427 = vrot.slane %v418, %v426
        %v428 = vlaneseq
        %v429 = vshrl.u32 %v428, 7
        %v430 = vsub.s32 2, %v429
        %v431 = vrot.slane %v418, %v430
        %v432 = vlaneseq
        %v433 = vshrl.u32 %v432, 7
        %v434 = vsub.s32 3, %v433
        %v435 = vrot.slane %v418, %v434
        %v436 = vlaneseq
        %v437 = vshrl.u32 %v436, 7
        %v438 = vsub.s32 4, %v437
        %v439 = vrot.slane %v418, %v438
        %v440 = vlaneseq
        %v441 = vshrl.u32 %v440, 7
        %v442 = vsub.s32 5, %v441
        %v443 = vrot.slane %v418, %v442
        %v466 = vunpack.c.l.b16 %v306
        %v467 = vunpack.c.h.b16 %v306
        %v468 = vunpack.c.l.b16 %v307
        %v469 = vunpack.c.h.b16 %v307
        %v470 = vunpack.c.l.b16 %v308
        %v471 = vunpack.c.h.b16 %v308
        %v472 = vunpack.c.l.b16 %v309
        %v473 = vunpack.c.h.b16 %v309
        %v474 = vunpack.c.l.b16 %v310
        %v475 = vunpack.c.h.b16 %v310
        %v476 = vunpack.c.l.b16 %v311
        %v477 = vunpack.c.h.b16 %v311
        %v478 = vunpack.c.l.b16 %v312
        %v479 = vunpack.c.h.b16 %v312
        %v480 = vunpack.c.l.b16 %v313
        %v481 = vunpack.c.h.b16 %v313
        %v482 = vunpack.c.l.b16 %v314
        %v483 = vunpack.c.h.b16 %v314
        %v484 = vunpack.c.l.b16 %v315
        %v485 = vunpack.c.h.b16 %v315
        %v486 = vunpack.c.l.b16 %v316
        %v487 = vunpack.c.h.b16 %v316
        %v488 = vunpack.c.l.b16 %v317
        %v489 = vunpack.c.h.b16 %v317
        %v490 = vunpack.c.l.b16 %v318
        %v491 = vunpack.c.h.b16 %v318
        %v492 = vunpack.c.l.b16 %v319
        %v493 = vunpack.c.h.b16 %v319
        %v494 = vunpack.c.l.b16 %v320
        %v495 = vunpack.c.h.b16 %v320
        %v496 = vunpack.c.l.b16 %v321
        %v497 = vunpack.c.h.b16 %v321
        %v498 = vpack.c.b16 %v468, %v466
        %v499 = vpack.c.b16 %v469, %v467
        %v500 = vpack.c.b16 %v472, %v470
        %v501 = vpack.c.b16 %v473, %v471
        %v502 = vpack.c.b16 %v476, %v474
        %v503 = vpack.c.b16 %v477, %v475
        %v504 = vpack.c.b16 %v480, %v478
        %v505 = vpack.c.b16 %v481, %v479
        %v506 = vpack.c.b16 %v484, %v482
        %v507 = vpack.c.b16 %v485, %v483
        %v508 = vpack.c.b16 %v488, %v486
        %v509 = vpack.c.b16 %v489, %v487
        %v510 = vpack.c.b16 %v492, %v490
        %v511 = vpack.c.b16 %v493, %v491
        %v512 = vpack.c.b16 %v496, %v494
        %v513 = vpack.c.b16 %v497, %v495
        %v626 = vunpack.c.l.b16 %v322
        %v627 = vunpack.c.h.b16 %v322
        %v628 = vunpack.c.l.b16 %v323
        %v629 = vunpack.c.h.b16 %v323
        %v630 = vunpack.c.l.b16 %v324
        %v631 = vunpack.c.h.b16 %v324
        %v632 = vunpack.c.l.b16 %v325
        %v633 = vunpack.c.h.b16 %v325
        %v634 = vunpack.c.l.b16 %v326
        %v635 = vunpack.c.h.b16 %v326
        %v636 = vunpack.c.l.b16 %v327
        %v637 = vunpack.c.h.b16 %v327
        %v638 = vunpack.c.l.b16 %v328
        %v639 = vunpack.c.h.b16 %v328
        %v640 = vunpack.c.l.b16 %v329
        %v641 = vunpack.c.h.b16 %v329
        %v642 = vunpack.c.l.b16 %v330
        %v643 = vunpack.c.h.b16 %v330
        %v644 = vunpack.c.l.b16 %v331
        %v645 = vunpack.c.h.b16 %v331
        %v646 = vunpack.c.l.b16 %v332
        %v647 = vunpack.c.h.b16 %v332
        %v648 = vunpack.c.l.b16 %v333
        %v649 = vunpack.c.h.b16 %v333
        %v650 = vunpack.c.l.b16 %v334
        %v651 = vunpack.c.h.b16 %v334
        %v652 = vunpack.c.l.b16 %v335
        %v653 = vunpack.c.h.b16 %v335
        %v654 = vunpack.c.l.b16 %v336
        %v655 = vunpack.c.h.b16 %v336
        %v656 = vunpack.c.l.b16 %v337
        %v657 = vunpack.c.h.b16 %v337
        %v658 = vunpack.c.l.b16 %v338
        %v659 = vunpack.c.h.b16 %v338
        %v660 = vunpack.c.l.b16 %v339
        %v661 = vunpack.c.h.b16 %v339
        %v662 = vunpack.c.l.b16 %v340
        %v663 = vunpack.c.h.b16 %v340
        %v664 = vunpack.c.l.b16 %v341
        %v665 = vunpack.c.h.b16 %v341
        %v666 = vunpack.c.l.b16 %v342
        %v667 = vunpack.c.h.b16 %v342
        %v668 = vunpack.c.l.b16 %v343
        %v669 = vunpack.c.h.b16 %v343
        %v670 = vunpack.c.l.b16 %v344
        %v671 = vunpack.c.h.b16 %v344
        %v672 = vunpack.c.l.b16 %v345
        %v673 = vunpack.c.h.b16 %v345
        %v674 = vunpack.c.l.b16 %v346
        %v675 = vunpack.c.h.b16 %v346
        %v676 = vunpack.c.l.b16 %v347
        %v677 = vunpack.c.h.b16 %v347
        %v678 = vunpack.c.l.b16 %v348
        %v679 = vunpack.c.h.b16 %v348
        %v680 = vunpack.c.l.b16 %v349
        %v681 = vunpack.c.h.b16 %v349
        %v682 = vunpack.c.l.b16 %v350
        %v683 = vunpack.c.h.b16 %v350
        %v684 = vunpack.c.l.b16 %v351
        %v685 = vunpack.c.h.b16 %v351
        %v686 = vunpack.c.l.b16 %v352
        %v687 = vunpack.c.h.b16 %v352
        %v688 = vunpack.c.l.b16 %v353
        %v689 = vunpack.c.h.b16 %v353
        %v690 = vunpack.c.l.b16 %v354
        %v691 = vunpack.c.h.b16 %v354
        %v692 = vunpack.c.l.b16 %v355
        %v693 = vunpack.c.h.b16 %v355
        %v694 = vunpack.c.l.b16 %v356
        %v695 = vunpack.c.h.b16 %v356
        %v696 = vunpack.c.l.b16 %v357
        %v697 = vunpack.c.h.b16 %v357
        %v698 = vunpack.c.l.b16 %v358
        %v699 = vunpack.c.h.b16 %v358
        %v700 = vunpack.c.l.b16 %v359
        %v701 = vunpack.c.h.b16 %v359
        %v702 = vunpack.c.l.b16 %v360
        %v703 = vunpack.c.h.b16 %v360
        %v704 = vunpack.c.l.b16 %v361
        %v705 = vunpack.c.h.b16 %v361
        %v706 = vunpack.c.l.b16 %v362
        %v707 = vunpack.c.h.b16 %v362
        %v708 = vunpack.c.l.b16 %v363
        %v709 = vunpack.c.h.b16 %v363
        %v710 = vunpack.c.l.b16 %v364
        %v711 = vunpack.c.h.b16 %v364
        %v712 = vunpack.c.l.b16 %v365
        %v713 = vunpack.c.h.b16 %v365
        %v714 = vunpack.c.l.b16 %v366
        %v715 = vunpack.c.h.b16 %v366
        %v716 = vunpack.c.l.b16 %v367
        %v717 = vunpack.c.h.b16 %v367
        %v718 = vunpack.c.l.b16 %v368
        %v719 = vunpack.c.h.b16 %v368
        %v720 = vunpack.c.l.b16 %v369
        %v721 = vunpack.c.h.b16 %v369
        %v722 = vunpack.c.l.b16 %v370
        %v723 = vunpack.c.h.b16 %v370
        %v724 = vunpack.c.l.b16 %v371
        %v725 = vunpack.c.h.b16 %v371
        %v726 = vunpack.c.l.b16 %v372
        %v727 = vunpack.c.h.b16 %v372
        %v728 = vunpack.c.l.b16 %v373
        %v729 = vunpack.c.h.b16 %v373
        %v730 = vunpack.c.l.b16 %v374
        %v731 = vunpack.c.h.b16 %v374
        %v732 = vunpack.c.l.b16 %v375
        %v733 = vunpack.c.h.b16 %v375
        %v734 = vunpack.c.l.b16 %v376
        %v735 = vunpack.c.h.b16 %v376
        %v736 = vunpack.c.l.b16 %v377
        %v737 = vunpack.c.h.b16 %v377
        %v738 = vunpack.c.l.b16 %v378
        %v739 = vunpack.c.h.b16 %v378
        %v740 = vunpack.c.l.b16 %v379
        %v741 = vunpack.c.h.b16 %v379
        %v742 = vunpack.c.l.b16 %v380
        %v743 = vunpack.c.h.b16 %v380
        %v744 = vunpack.c.l.b16 %v381
        %v745 = vunpack.c.h.b16 %v381
        %v746 = vunpack.c.l.b16 %v382
        %v747 = vunpack.c.h.b16 %v382
        %v748 = vunpack.c.l.b16 %v383
        %v749 = vunpack.c.h.b16 %v383
        %v750 = vunpack.c.l.b16 %v384
        %v751 = vunpack.c.h.b16 %v384
        %v752 = vunpack.c.l.b16 %v385
        %v753 = vunpack.c.h.b16 %v385
        %v754 = vunpack.c.l.b16 %v386
        %v755 = vunpack.c.h.b16 %v386
        %v756 = vunpack.c.l.b16 %v387
        %v757 = vunpack.c.h.b16 %v387
        %v758 = vunpack.c.l.b16 %v388
        %v759 = vunpack.c.h.b16 %v388
        %v760 = vunpack.c.l.b16 %v389
        %v761 = vunpack.c.h.b16 %v389
        %v762 = vunpack.c.l.b16 %v390
        %v763 = vunpack.c.h.b16 %v390
        %v764 = vunpack.c.l.b16 %v391
        %v765 = vunpack.c.h.b16 %v391
        %v766 = vunpack.c.l.b16 %v392
        %v767 = vunpack.c.h.b16 %v392
        %v768 = vunpack.c.l.b16 %v393
        %v769 = vunpack.c.h.b16 %v393
        %v770 = vunpack.c.l.b16 %v394
        %v771 = vunpack.c.h.b16 %v394
        %v772 = vunpack.c.l.b16 %v395
        %v773 = vunpack.c.h.b16 %v395
        %v774 = vunpack.c.l.b16 %v396
        %v775 = vunpack.c.h.b16 %v396
        %v776 = vunpack.c.l.b16 %v397
        %v777 = vunpack.c.h.b16 %v397
        %v778 = vunpack.c.l.b16 %v398
        %v779 = vunpack.c.h.b16 %v398
        %v780 = vunpack.c.l.b16 %v399
        %v781 = vunpack.c.h.b16 %v399
        %v782 = vunpack.c.l.b16 %v400
        %v783 = vunpack.c.h.b16 %v400
        %v784 = vunpack.c.l.b16 %v401
        %v785 = vunpack.c.h.b16 %v401
        %v786 = vunpack.c.l.b16 %v402
        %v787 = vunpack.c.h.b16 %v402
        %v788 = vunpack.c.l.b16 %v403
        %v789 = vunpack.c.h.b16 %v403
        %v790 = vunpack.c.l.b16 %v404
        %v791 = vunpack.c.h.b16 %v404
        %v792 = vunpack.c.l.b16 %v405
        %v793 = vunpack.c.h.b16 %v405
        %v794 = vunpack.c.l.b16 %v406
        %v795 = vunpack.c.h.b16 %v406
        %v796 = vunpack.c.l.b16 %v407
        %v797 = vunpack.c.h.b16 %v407
        %v798 = vunpack.c.l.b16 %v408
        %v799 = vunpack.c.h.b16 %v408
        %v800 = vunpack.c.l.b16 %v409
        %v801 = vunpack.c.h.b16 %v409
        %v802 = vunpack.c.l.b16 %v410
        %v803 = vunpack.c.h.b16 %v410
        %v804 = vunpack.c.l.b16 %v411
        %v805 = vunpack.c.h.b16 %v411
        %v806 = vunpack.c.l.b16 %v412
        %v807 = vunpack.c.h.b16 %v412
        %v808 = vunpack.c.l.b16 %v413
        %v809 = vunpack.c.h.b16 %v413
        %v810 = vunpack.c.l.b16 %v414
        %v811 = vunpack.c.h.b16 %v414
        %v812 = vunpack.c.l.b16 %v415
        %v813 = vunpack.c.h.b16 %v415
        %v814 = vunpack.c.l.b16 %v416
        %v815 = vunpack.c.h.b16 %v416
        %v816 = vunpack.c.l.b16 %v417
        %v817 = vunpack.c.h.b16 %v417
        %v818 = vpack.c.b16 %v632, %v626
        %v819 = vpack.c.b16 %v633, %v627
        %v820 = vpack.c.b16 %v634, %v628
        %v821 = vpack.c.b16 %v635, %v629
        %v822 = vpack.c.b16 %v636, %v630
        %v823 = vpack.c.b16 %v637, %v631
        %v824 = vpack.c.b16 %v644, %v638
        %v825 = vpack.c.b16 %v645, %v639
        %v826 = vpack.c.b16 %v646, %v640
        %v827 = vpack.c.b16 %v647, %v641
        %v828 = vpack.c.b16 %v648, %v642
        %v829 = vpack.c.b16 %v649, %v643
        %v830 = vpack.c.b16 %v656, %v650
        %v831 = vpack.c.b16 %v657, %v651
        %v832 = vpack.c.b16 %v658, %v652
        %v833 = vpack.c.b16 %v659, %v653
        %v834 = vpack.c.b16 %v660, %v654
        %v835 = vpack.c.b16 %v661, %v655
        %v836 = vpack.c.b16 %v668, %v662
        %v837 = vpack.c.b16 %v669, %v663
        %v838 = vpack.c.b16 %v670, %v664
        %v839 = vpack.c.b16 %v671, %v665
        %v840 = vpack.c.b16 %v672, %v666
        %v841 = vpack.c.b16 %v673, %v667
        %v842 = vpack.c.b16 %v680, %v674
        %v843 = vpack.c.b16 %v681, %v675
        %v844 = vpack.c.b16 %v682, %v676
        %v845 = vpack.c.b16 %v683, %v677
        %v846 = vpack.c.b16 %v684, %v678
        %v847 = vpack.c.b16 %v685, %v679
        %v848 = vpack.c.b16 %v692, %v686
        %v849 = vpack.c.b16 %v693, %v687
        %v850 = vpack.c.b16 %v694, %v688
        %v851 = vpack.c.b16 %v695, %v689
        %v852 = vpack.c.b16 %v696, %v690
        %v853 = vpack.c.b16 %v697, %v691
        %v854 = vpack.c.b16 %v704, %v698
        %v855 = vpack.c.b16 %v705, %v699
        %v856 = vpack.c.b16 %v706, %v700
        %v857 = vpack.c.b16 %v707, %v701
        %v858 = vpack.c.b16 %v708, %v702
        %v859 = vpack.c.b16 %v709, %v703
        %v860 = vpack.c.b16 %v716, %v710
        %v861 = vpack.c.b16 %v717, %v711
        %v862 = vpack.c.b16 %v718, %v712
        %v863 = vpack.c.b16 %v719, %v713
        %v864 = vpack.c.b16 %v720, %v714
        %v865 = vpack.c.b16 %v721, %v715
        %v866 = vpack.c.b16 %v728, %v722
        %v867 = vpack.c.b16 %v729, %v723
        %v868 = vpack.c.b16 %v730, %v724
        %v869 = vpack.c.b16 %v731, %v725
        %v870 = vpack.c.b16 %v732, %v726
        %v871 = vpack.c.b16 %v733, %v727
        %v872 = vpack.c.b16 %v740, %v734
        %v873 = vpack.c.b16 %v741, %v735
        %v874 = vpack.c.b16 %v742, %v736
        %v875 = vpack.c.b16 %v743, %v737
        %v876 = vpack.c.b16 %v744, %v738
        %v877 = vpack.c.b16 %v745, %v739
        %v878 = vpack.c.b16 %v752, %v746
        %v879 = vpack.c.b16 %v753, %v747
        %v880 = vpack.c.b16 %v754, %v748
        %v881 = vpack.c.b16 %v755, %v749
        %v882 = vpack.c.b16 %v756, %v750
        %v883 = vpack.c.b16 %v757, %v751
        %v884 = vpack.c.b16 %v764, %v758
        %v885 = vpack.c.b16 %v765, %v759
        %v886 = vpack.c.b16 %v766, %v760
        %v887 = vpack.c.b16 %v767, %v761
        %v888 = vpack.c.b16 %v768, %v762
        %v889 = vpack.c.b16 %v769, %v763
        %v890 = vpack.c.b16 %v776, %v770
        %v891 = vpack.c.b16 %v777, %v771
        %v892 = vpack.c.b16 %v778, %v772
        %v893 = vpack.c.b16 %v779, %v773
        %v894 = vpack.c.b16 %v780, %v774
        %v895 = vpack.c.b16 %v781, %v775
        %v896 = vpack.c.b16 %v788, %v782
        %v897 = vpack.c.b16 %v789, %v783
        %v898 = vpack.c.b16 %v790, %v784
        %v899 = vpack.c.b16 %v791, %v785
        %v900 = vpack.c.b16 %v792, %v786
        %v901 = vpack.c.b16 %v793, %v787
        %v902 = vpack.c.b16 %v800, %v794
        %v903 = vpack.c.b16 %v801, %v795
        %v904 = vpack.c.b16 %v802, %v796
        %v905 = vpack.c.b16 %v803, %v797
        %v906 = vpack.c.b16 %v804, %v798
        %v907 = vpack.c.b16 %v805, %v799
        %v908 = vpack.c.b16 %v812, %v806
        %v909 = vpack.c.b16 %v813, %v807
        %v910 = vpack.c.b16 %v814, %v808
        %v911 = vpack.c.b16 %v815, %v809
        %v912 = vpack.c.b16 %v816, %v810
        %v913 = vpack.c.b16 %v817, %v811
        %1010 = vmatprep.subr.bf16.mxu0 %v861
        %1011 = vmatpush1.bf16.msra.mxu0 %v860
        %1012 = vmatprep.subr.bf16.mxu0 %v855
        %1013 = vmatpush1.bf16.msra.mxu0 %v854
        %1014 = vmatprep.subr.bf16.mxu0 %v849
        %1015 = vmatpush1.bf16.msra.mxu0 %v848
        %1016 = vmatprep.subr.bf16.mxu0 %v843
        %1017 = vmatpush1.bf16.msra.mxu0 %v842
        %1018 = vmatprep.subr.bf16.mxu0 %v837
        %1019 = vmatpush1.bf16.msra.mxu0 %v836
        %1020 = vmatprep.subr.bf16.mxu0 %v831
        %1021 = vmatpush1.bf16.msra.mxu0 %v830
        %1022 = vmatprep.subr.bf16.mxu0 %v825
        %1023 = vmatpush1.bf16.msra.mxu0 %v824
        %1024 = vmatprep.subr.bf16.mxu0 %v819
        %1025 = vmatpush1.bf16.msra.mxu0 %v818
        %1026 = vmatprep.subr.bf16.mxu0 %v909
        %1027 = vmatpush2.bf16.msra.mxu0 %v908
        %1028 = vmatprep.subr.bf16.mxu0 %v903
        %1029 = vmatpush2.bf16.msra.mxu0 %v902
        %1030 = vmatprep.subr.bf16.mxu0 %v897
        %1031 = vmatpush2.bf16.msra.mxu0 %v896
        %1032 = vmatprep.subr.bf16.mxu0 %v891
        %1033 = vmatpush2.bf16.msra.mxu0 %v890
        %1034 = vmatprep.subr.bf16.mxu0 %v885
        %1035 = vmatpush2.bf16.msra.mxu0 %v884
        %1036 = vmatprep.subr.bf16.mxu0 %v879
        %1037 = vmatpush2.bf16.msra.mxu0 %v878
        %1038 = vmatprep.subr.bf16.mxu0 %v873
        %1039 = vmatpush2.bf16.msra.mxu0 %v872
        %1040 = vmatprep.subr.bf16.mxu0 %v867
        %1041 = vmatpush2.bf16.msra.mxu0 %v866
        %1042 = vmatprep.mubr.bf16.mxu0 %v499
        %1043 = vmatmul.mubr.bf16.gmra.mxu0 %v498
        %v1044 = vpop.f32.mrf.mxu0
        %v1045 = vadd.f32 %v423, %v1044
        %v1046 = vpop.f32.mrf.mxu0
        %v1047 = vadd.f32 %v427, %v1046
        %v1048 = vpop.f32.mrf.mxu0
        %v1049 = vadd.f32 %v423, %v1048
        %v1050 = vpop.f32.mrf.mxu0
        %v1051 = vadd.f32 %v427, %v1050
        %1052 = vmatprep.mubr.bf16.mxu0 %v501
        %1053 = vmatmul.mubr.bf16.gmra.mxu0 %v500
        %v1054 = vpop.f32.mrf.mxu0
        %v1055 = vadd.f32 %v423, %v1054
        %v1056 = vpop.f32.mrf.mxu0
        %v1057 = vadd.f32 %v427, %v1056
        %v1058 = vpop.f32.mrf.mxu0
        %v1059 = vadd.f32 %v423, %v1058
        %v1060 = vpop.f32.mrf.mxu0
        %v1061 = vadd.f32 %v427, %v1060
        %1062 = vmatprep.mubr.bf16.mxu0 %v503
        %1063 = vmatmul.mubr.bf16.gmra.mxu0 %v502
        %v1064 = vpop.f32.mrf.mxu0
        %v1065 = vadd.f32 %v423, %v1064
        %v1066 = vpop.f32.mrf.mxu0
        %v1067 = vadd.f32 %v427, %v1066
        %v1068 = vpop.f32.mrf.mxu0
        %v1069 = vadd.f32 %v423, %v1068
        %v1070 = vpop.f32.mrf.mxu0
        %v1071 = vadd.f32 %v427, %v1070
        %1072 = vmatprep.mubr.bf16.mxu0 %v505
        %1073 = vmatmul.mubr.bf16.gmra.mxu0 %v504
        %v1074 = vpop.f32.mrf.mxu0
        %v1075 = vadd.f32 %v423, %v1074
        %v1076 = vpop.f32.mrf.mxu0
        %v1077 = vadd.f32 %v427, %v1076
        %v1078 = vpop.f32.mrf.mxu0
        %v1079 = vadd.f32 %v423, %v1078
        %v1080 = vpop.f32.mrf.mxu0
        %v1081 = vadd.f32 %v427, %v1080
        %1082 = vmatprep.mubr.bf16.mxu0 %v507
        %1083 = vmatmul.mubr.bf16.gmra.mxu0 %v506
        %v1084 = vpop.f32.mrf.mxu0
        %v1085 = vadd.f32 %v423, %v1084
        %v1086 = vpop.f32.mrf.mxu0
        %v1087 = vadd.f32 %v427, %v1086
        %v1088 = vpop.f32.mrf.mxu0
        %v1089 = vadd.f32 %v423, %v1088
        %v1090 = vpop.f32.mrf.mxu0
        %v1091 = vadd.f32 %v427, %v1090
        %1092 = vmatprep.mubr.bf16.mxu0 %v509
        %1093 = vmatmul.mubr.bf16.gmra.mxu0 %v508
        %v1094 = vpop.f32.mrf.mxu0
        %v1095 = vadd.f32 %v423, %v1094
        %v1096 = vpop.f32.mrf.mxu0
        %v1097 = vadd.f32 %v427, %v1096
        %v1098 = vpop.f32.mrf.mxu0
        %v1099 = vadd.f32 %v423, %v1098
        %v1100 = vpop.f32.mrf.mxu0
        %v1101 = vadd.f32 %v427, %v1100
        %1102 = vmatprep.mubr.bf16.mxu0 %v511
        %1103 = vmatmul.mubr.bf16.gmra.mxu0 %v510
        %v1104 = vpop.f32.mrf.mxu0
        %v1105 = vadd.f32 %v423, %v1104
        %v1106 = vpop.f32.mrf.mxu0
        %v1107 = vadd.f32 %v427, %v1106
        %v1108 = vpop.f32.mrf.mxu0
        %v1109 = vadd.f32 %v423, %v1108
        %v1110 = vpop.f32.mrf.mxu0
        %v1111 = vadd.f32 %v427, %v1110
        %1112 = vmatprep.mubr.bf16.mxu0 %v513
        %1113 = vmatmul.mubr.bf16.gmra.mxu0 %v512
        %v1114 = vpop.f32.mrf.mxu0
        %v1115 = vadd.f32 %v423, %v1114
        %v1116 = vpop.f32.mrf.mxu0
        %v1117 = vadd.f32 %v427, %v1116
        %v1118 = vpop.f32.mrf.mxu0
        %v1119 = vadd.f32 %v423, %v1118
        %v1120 = vpop.f32.mrf.mxu0
        %v1121 = vadd.f32 %v427, %v1120
        %1122 = vdwg.mxu0
        %1123 = vmatprep.subr.bf16.mxu0 %v863
        %1124 = vmatpush1.bf16.msra.mxu0 %v862
        %1125 = vmatprep.subr.bf16.mxu0 %v857
        %1126 = vmatpush1.bf16.msra.mxu0 %v856
        %1127 = vmatprep.subr.bf16.mxu0 %v851
        %1128 = vmatpush1.bf16.msra.mxu0 %v850
        %1129 = vmatprep.subr.bf16.mxu0 %v845
        %1130 = vmatpush1.bf16.msra.mxu0 %v844
        %1131 = vmatprep.subr.bf16.mxu0 %v839
        %1132 = vmatpush1.bf16.msra.mxu0 %v838
        %1133 = vmatprep.subr.bf16.mxu0 %v833
        %1134 = vmatpush1.bf16.msra.mxu0 %v832
        %1135 = vmatprep.subr.bf16.mxu0 %v827
        %1136 = vmatpush1.bf16.msra.mxu0 %v826
        %1137 = vmatprep.subr.bf16.mxu0 %v821
        %1138 = vmatpush1.bf16.msra.mxu0 %v820
        %1139 = vmatprep.subr.bf16.mxu0 %v911
        %1140 = vmatpush2.bf16.msra.mxu0 %v910
        %1141 = vmatprep.subr.bf16.mxu0 %v905
        %1142 = vmatpush2.bf16.msra.mxu0 %v904
        %1143 = vmatprep.subr.bf16.mxu0 %v899
        %1144 = vmatpush2.bf16.msra.mxu0 %v898
        %1145 = vmatprep.subr.bf16.mxu0 %v893
        %1146 = vmatpush2.bf16.msra.mxu0 %v892
        %1147 = vmatprep.subr.bf16.mxu0 %v887
        %1148 = vmatpush2.bf16.msra.mxu0 %v886
        %1149 = vmatprep.subr.bf16.mxu0 %v881
        %1150 = vmatpush2.bf16.msra.mxu0 %v880
        %1151 = vmatprep.subr.bf16.mxu0 %v875
        %1152 = vmatpush2.bf16.msra.mxu0 %v874
        %1153 = vmatprep.subr.bf16.mxu0 %v869
        %1154 = vmatpush2.bf16.msra.mxu0 %v868
        %1155 = vmatprep.mubr.bf16.mxu0 %v499
        %1156 = vmatmul.mubr.bf16.gmra.mxu0 %v498
        %v1157 = vpop.f32.mrf.mxu0
        %v1158 = vadd.f32 %v431, %v1157
        %v1159 = vpop.f32.mrf.mxu0
        %v1160 = vadd.f32 %v435, %v1159
        %v1161 = vpop.f32.mrf.mxu0
        %v1162 = vadd.f32 %v431, %v1161
        %v1163 = vpop.f32.mrf.mxu0
        %v1164 = vadd.f32 %v435, %v1163
        %1165 = vmatprep.mubr.bf16.mxu0 %v501
        %1166 = vmatmul.mubr.bf16.gmra.mxu0 %v500
        %v1167 = vpop.f32.mrf.mxu0
        %v1168 = vadd.f32 %v431, %v1167
        %v1169 = vpop.f32.mrf.mxu0
        %v1170 = vadd.f32 %v435, %v1169
        %v1171 = vpop.f32.mrf.mxu0
        %v1172 = vadd.f32 %v431, %v1171
        %v1173 = vpop.f32.mrf.mxu0
        %v1174 = vadd.f32 %v435, %v1173
        %1175 = vmatprep.mubr.bf16.mxu0 %v503
        %1176 = vmatmul.mubr.bf16.gmra.mxu0 %v502
        %v1177 = vpop.f32.mrf.mxu0
        %v1178 = vadd.f32 %v431, %v1177
        %v1179 = vpop.f32.mrf.mxu0
        %v1180 = vadd.f32 %v435, %v1179
        %v1181 = vpop.f32.mrf.mxu0
        %v1182 = vadd.f32 %v431, %v1181
        %v1183 = vpop.f32.mrf.mxu0
        %v1184 = vadd.f32 %v435, %v1183
        %1185 = vmatprep.mubr.bf16.mxu0 %v505
        %1186 = vmatmul.mubr.bf16.gmra.mxu0 %v504
        %v1187 = vpop.f32.mrf.mxu0
        %v1188 = vadd.f32 %v431, %v1187
        %v1189 = vpop.f32.mrf.mxu0
        %v1190 = vadd.f32 %v435, %v1189
        %v1191 = vpop.f32.mrf.mxu0
        %v1192 = vadd.f32 %v431, %v1191
        %v1193 = vpop.f32.mrf.mxu0
        %v1194 = vadd.f32 %v435, %v1193
        %1195 = vmatprep.mubr.bf16.mxu0 %v507
        %1196 = vmatmul.mubr.bf16.gmra.mxu0 %v506
        %v1197 = vpop.f32.mrf.mxu0
        %v1198 = vadd.f32 %v431, %v1197
        %v1199 = vpop.f32.mrf.mxu0
        %v1200 = vadd.f32 %v435, %v1199
        %v1201 = vpop.f32.mrf.mxu0
        %v1202 = vadd.f32 %v431, %v1201
        %v1203 = vpop.f32.mrf.mxu0
        %v1204 = vadd.f32 %v435, %v1203
        %1205 = vmatprep.mubr.bf16.mxu0 %v509
        %1206 = vmatmul.mubr.bf16.gmra.mxu0 %v508
        %v1207 = vpop.f32.mrf.mxu0
        %v1208 = vadd.f32 %v431, %v1207
        %v1209 = vpop.f32.mrf.mxu0
        %v1210 = vadd.f32 %v435, %v1209
        %v1211 = vpop.f32.mrf.mxu0
        %v1212 = vadd.f32 %v431, %v1211
        %v1213 = vpop.f32.mrf.mxu0
        %v1214 = vadd.f32 %v435, %v1213
        %1215 = vmatprep.mubr.bf16.mxu0 %v511
        %1216 = vmatmul.mubr.bf16.gmra.mxu0 %v510
        %v1217 = vpop.f32.mrf.mxu0
        %v1218 = vadd.f32 %v431, %v1217
        %v1219 = vpop.f32.mrf.mxu0
        %v1220 = vadd.f32 %v435, %v1219
        %v1221 = vpop.f32.mrf.mxu0
        %v1222 = vadd.f32 %v431, %v1221
        %v1223 = vpop.f32.mrf.mxu0
        %v1224 = vadd.f32 %v435, %v1223
        %1225 = vmatprep.mubr.bf16.mxu0 %v513
        %1226 = vmatmul.mubr.bf16.gmra.mxu0 %v512
        %v1227 = vpop.f32.mrf.mxu0
        %v1228 = vadd.f32 %v431, %v1227
        %v1229 = vpop.f32.mrf.mxu0
        %v1230 = vadd.f32 %v435, %v1229
        %v1231 = vpop.f32.mrf.mxu0
        %v1232 = vadd.f32 %v431, %v1231
        %v1233 = vpop.f32.mrf.mxu0
        %v1234 = vadd.f32 %v435, %v1233
        %1235 = vdwg.mxu0
        %1236 = vmatprep.subr.bf16.mxu0 %v865
        %1237 = vmatpush1.bf16.msra.mxu0 %v864
        %1238 = vmatprep.subr.bf16.mxu0 %v859
        %1239 = vmatpush1.bf16.msra.mxu0 %v858
        %1240 = vmatprep.subr.bf16.mxu0 %v853
        %1241 = vmatpush1.bf16.msra.mxu0 %v852
        %1242 = vmatprep.subr.bf16.mxu0 %v847
        %1243 = vmatpush1.bf16.msra.mxu0 %v846
        %1244 = vmatprep.subr.bf16.mxu0 %v841
        %1245 = vmatpush1.bf16.msra.mxu0 %v840
        %1246 = vmatprep.subr.bf16.mxu0 %v835
        %1247 = vmatpush1.bf16.msra.mxu0 %v834
        %1248 = vmatprep.subr.bf16.mxu0 %v829
        %1249 = vmatpush1.bf16.msra.mxu0 %v828
        %1250 = vmatprep.subr.bf16.mxu0 %v823
        %1251 = vmatpush1.bf16.msra.mxu0 %v822
        %1252 = vmatprep.subr.bf16.mxu0 %v913
        %1253 = vmatpush2.bf16.msra.mxu0 %v912
        %1254 = vmatprep.subr.bf16.mxu0 %v907
        %1255 = vmatpush2.bf16.msra.mxu0 %v906
        %1256 = vmatprep.subr.bf16.mxu0 %v901
        %1257 = vmatpush2.bf16.msra.mxu0 %v900
        %1258 = vmatprep.subr.bf16.mxu0 %v895
        %1259 = vmatpush2.bf16.msra.mxu0 %v894
        %1260 = vmatprep.subr.bf16.mxu0 %v889
        %1261 = vmatpush2.bf16.msra.mxu0 %v888
        %1262 = vmatprep.subr.bf16.mxu0 %v883
        %1263 = vmatpush2.bf16.msra.mxu0 %v882
        %1264 = vmatprep.subr.bf16.mxu0 %v877
        %1265 = vmatpush2.bf16.msra.mxu0 %v876
        %1266 = vmatprep.subr.bf16.mxu0 %v871
        %1267 = vmatpush2.bf16.msra.mxu0 %v870
        %1268 = vmatprep.mubr.bf16.mxu0 %v499
        %1269 = vmatmul.mubr.bf16.gmra.mxu0 %v498
        %v1270 = vpop.f32.mrf.mxu0
        %v1271 = vadd.f32 %v439, %v1270
        %v1272 = vpop.f32.mrf.mxu0
        %v1273 = vadd.f32 %v443, %v1272
        %v1274 = vpop.f32.mrf.mxu0
        %v1275 = vadd.f32 %v439, %v1274
        %v1276 = vpop.f32.mrf.mxu0
        %v1277 = vadd.f32 %v443, %v1276
        %1278 = vmatprep.mubr.bf16.mxu0 %v501
        %1279 = vmatmul.mubr.bf16.gmra.mxu0 %v500
        %v1280 = vpop.f32.mrf.mxu0
        %v1281 = vadd.f32 %v439, %v1280
        %v1282 = vpop.f32.mrf.mxu0
        %v1283 = vadd.f32 %v443, %v1282
        %v1284 = vpop.f32.mrf.mxu0
        %v1285 = vadd.f32 %v439, %v1284
        %v1286 = vpop.f32.mrf.mxu0
        %v1287 = vadd.f32 %v443, %v1286
        %1288 = vmatprep.mubr.bf16.mxu0 %v503
        %1289 = vmatmul.mubr.bf16.gmra.mxu0 %v502
        %v1290 = vpop.f32.mrf.mxu0
        %v1291 = vadd.f32 %v439, %v1290
        %v1292 = vpop.f32.mrf.mxu0
        %v1293 = vadd.f32 %v443, %v1292
        %v1294 = vpop.f32.mrf.mxu0
        %v1295 = vadd.f32 %v439, %v1294
        %v1296 = vpop.f32.mrf.mxu0
        %v1297 = vadd.f32 %v443, %v1296
        %1298 = vmatprep.mubr.bf16.mxu0 %v505
        %1299 = vmatmul.mubr.bf16.gmra.mxu0 %v504
        %v1300 = vpop.f32.mrf.mxu0
        %v1301 = vadd.f32 %v439, %v1300
        %v1302 = vpop.f32.mrf.mxu0
        %v1303 = vadd.f32 %v443, %v1302
        %v1304 = vpop.f32.mrf.mxu0
        %v1305 = vadd.f32 %v439, %v1304
        %v1306 = vpop.f32.mrf.mxu0
        %v1307 = vadd.f32 %v443, %v1306
        %1308 = vmatprep.mubr.bf16.mxu0 %v507
        %1309 = vmatmul.mubr.bf16.gmra.mxu0 %v506
        %v1310 = vpop.f32.mrf.mxu0
        %v1311 = vadd.f32 %v439, %v1310
        %v1312 = vpop.f32.mrf.mxu0
        %v1313 = vadd.f32 %v443, %v1312
        %v1314 = vpop.f32.mrf.mxu0
        %v1315 = vadd.f32 %v439, %v1314
        %v1316 = vpop.f32.mrf.mxu0
        %v1317 = vadd.f32 %v443, %v1316
        %1318 = vmatprep.mubr.bf16.mxu0 %v509
        %1319 = vmatmul.mubr.bf16.gmra.mxu0 %v508
        %v1320 = vpop.f32.mrf.mxu0
        %v1321 = vadd.f32 %v439, %v1320
        %v1322 = vpop.f32.mrf.mxu0
        %v1323 = vadd.f32 %v443, %v1322
        %v1324 = vpop.f32.mrf.mxu0
        %v1325 = vadd.f32 %v439, %v1324
        %v1326 = vpop.f32.mrf.mxu0
        %v1327 = vadd.f32 %v443, %v1326
        %1328 = vmatprep.mubr.bf16.mxu0 %v511
        %1329 = vmatmul.mubr.bf16.gmra.mxu0 %v510
        %v1330 = vpop.f32.mrf.mxu0
        %v1331 = vadd.f32 %v439, %v1330
        %v1332 = vpop.f32.mrf.mxu0
        %v1333 = vadd.f32 %v443, %v1332
        %v1334 = vpop.f32.mrf.mxu0
        %v1335 = vadd.f32 %v439, %v1334
        %v1336 = vpop.f32.mrf.mxu0
        %v1337 = vadd.f32 %v443, %v1336
        %1338 = vmatprep.mubr.bf16.mxu0 %v513
        %1339 = vmatmul.mubr.bf16.gmra.mxu0 %v512
        %v1340 = vpop.f32.mrf.mxu0
        %v1341 = vadd.f32 %v439, %v1340
        %v1342 = vpop.f32.mrf.mxu0
        %v1343 = vadd.f32 %v443, %v1342
        %v1344 = vpop.f32.mrf.mxu0
        %v1345 = vadd.f32 %v439, %v1344
        %v1346 = vpop.f32.mrf.mxu0
        %v1347 = vadd.f32 %v443, %v1346
        %1348 = vdwg.mxu0
        %v1349 = vpack.c.bf16 %v1049, %v1045
        %v1350 = vpack.c.bf16 %v1051, %v1047
        %v1351 = vpack.c.bf16 %v1162, %v1158
        %v1352 = vpack.c.bf16 %v1164, %v1160
        %v1353 = vpack.c.bf16 %v1275, %v1271
        %v1354 = vpack.c.bf16 %v1277, %v1273
        %v1355 = vpack.c.bf16 %v1059, %v1055
        %v1356 = vpack.c.bf16 %v1061, %v1057
        %v1357 = vpack.c.bf16 %v1172, %v1168
        %v1358 = vpack.c.bf16 %v1174, %v1170
        %v1359 = vpack.c.bf16 %v1285, %v1281
        %v1360 = vpack.c.bf16 %v1287, %v1283
        %v1361 = vpack.c.bf16 %v1069, %v1065
        %v1362 = vpack.c.bf16 %v1071, %v1067
        %v1363 = vpack.c.bf16 %v1182, %v1178
        %v1364 = vpack.c.bf16 %v1184, %v1180
        %v1365 = vpack.c.bf16 %v1295, %v1291
        %v1366 = vpack.c.bf16 %v1297, %v1293
        %v1367 = vpack.c.bf16 %v1079, %v1075
        %v1368 = vpack.c.bf16 %v1081, %v1077
        %v1369 = vpack.c.bf16 %v1192, %v1188
        %v1370 = vpack.c.bf16 %v1194, %v1190
        %v1371 = vpack.c.bf16 %v1305, %v1301
        %v1372 = vpack.c.bf16 %v1307, %v1303
        %v1373 = vpack.c.bf16 %v1089, %v1085
        %v1374 = vpack.c.bf16 %v1091, %v1087
        %v1375 = vpack.c.bf16 %v1202, %v1198
        %v1376 = vpack.c.bf16 %v1204, %v1200
        %v1377 = vpack.c.bf16 %v1315, %v1311
        %v1378 = vpack.c.bf16 %v1317, %v1313
        %v1379 = vpack.c.bf16 %v1099, %v1095
        %v1380 = vpack.c.bf16 %v1101, %v1097
        %v1381 = vpack.c.bf16 %v1212, %v1208
        %v1382 = vpack.c.bf16 %v1214, %v1210
        %v1383 = vpack.c.bf16 %v1325, %v1321
        %v1384 = vpack.c.bf16 %v1327, %v1323
        %v1385 = vpack.c.bf16 %v1109, %v1105
        %v1386 = vpack.c.bf16 %v1111, %v1107
        %v1387 = vpack.c.bf16 %v1222, %v1218
        %v1388 = vpack.c.bf16 %v1224, %v1220
        %v1389 = vpack.c.bf16 %v1335, %v1331
        %v1390 = vpack.c.bf16 %v1337, %v1333
        %v1391 = vpack.c.bf16 %v1119, %v1115
        %v1392 = vpack.c.bf16 %v1121, %v1117
        %v1393 = vpack.c.bf16 %v1232, %v1228
        %v1394 = vpack.c.bf16 %v1234, %v1230
        %v1395 = vpack.c.bf16 %v1345, %v1341
        %v1396 = vpack.c.bf16 %v1347, %v1343
        %v1405 = vunpack.c.l.b16 %v1349
        %v1406 = vunpack.c.h.b16 %v1349
        %v1407 = vunpack.c.l.b16 %v1355
        %v1408 = vunpack.c.h.b16 %v1355
        %v1409 = vunpack.c.l.b16 %v1361
        %v1410 = vunpack.c.h.b16 %v1361
        %v1411 = vunpack.c.l.b16 %v1367
        %v1412 = vunpack.c.h.b16 %v1367
        %v1413 = vunpack.c.l.b16 %v1373
        %v1414 = vunpack.c.h.b16 %v1373
        %v1415 = vunpack.c.l.b16 %v1379
        %v1416 = vunpack.c.h.b16 %v1379
        %v1417 = vunpack.c.l.b16 %v1385
        %v1418 = vunpack.c.h.b16 %v1385
        %v1419 = vunpack.c.l.b16 %v1391
        %v1420 = vunpack.c.h.b16 %v1391
        %v1421 = vpack.c.b16 %v1405, %v1405
        %v1422 = vpack.c.b16 %v1406, %v1406
        %v1423 = vpack.c.b16 %v1407, %v1407
        %v1424 = vpack.c.b16 %v1408, %v1408
        %v1425 = vpack.c.b16 %v1409, %v1409
        %v1426 = vpack.c.b16 %v1410, %v1410
        %v1427 = vpack.c.b16 %v1411, %v1411
        %v1428 = vpack.c.b16 %v1412, %v1412
        %v1429 = vpack.c.b16 %v1413, %v1413
        %v1430 = vpack.c.b16 %v1414, %v1414
        %v1431 = vpack.c.b16 %v1415, %v1415
        %v1432 = vpack.c.b16 %v1416, %v1416
        %v1433 = vpack.c.b16 %v1417, %v1417
        %v1434 = vpack.c.b16 %v1418, %v1418
        %v1435 = vpack.c.b16 %v1419, %v1419
        %v1436 = vpack.c.b16 %v1420, %v1420
        %vm1453 = vcmask 519168
        %1454 = vst.msk [vmem:[%s289] sm:$0xf] %vm1453, %v1421
        %1455 = vst.msk [vmem:[%s289 + $0x4] sm:$0xf] %vm1453, %v1422
        %1456 = vst.msk [vmem:[%s289 + $0x8] sm:$0xf] %vm1453, %v1423
        %1457 = vst.msk [vmem:[%s289 + $0xc] sm:$0xf] %vm1453, %v1424
        %1458 = vst.msk [vmem:[%s289 + $0x10] sm:$0xf] %vm1453, %v1425
        %1459 = vst.msk [vmem:[%s289 + $0x14] sm:$0xf] %vm1453, %v1426
        %1460 = vst.msk [vmem:[%s289 + $0x18] sm:$0xf] %vm1453, %v1427
        %1461 = vst.msk [vmem:[%s289 + $0x1c] sm:$0xf] %vm1453, %v1428
        %1462 = vst.msk [vmem:[%s289 + $0x20] sm:$0xf] %vm1453, %v1429
        %1463 = vst.msk [vmem:[%s289 + $0x24] sm:$0xf] %vm1453, %v1430
        %1464 = vst.msk [vmem:[%s289 + $0x28] sm:$0xf] %vm1453, %v1431
        %1465 = vst.msk [vmem:[%s289 + $0x2c] sm:$0xf] %vm1453, %v1432
        %1466 = vst.msk [vmem:[%s289 + $0x30] sm:$0xf] %vm1453, %v1433
        %1467 = vst.msk [vmem:[%s289 + $0x34] sm:$0xf] %vm1453, %v1434
        %1468 = vst.msk [vmem:[%s289 + $0x38] sm:$0xf] %vm1453, %v1435
        %1469 = vst.msk [vmem:[%s289 + $0x3c] sm:$0xf] %vm1453, %v1436
        %v1478 = vunpack.c.l.b16 %v1351
        %v1479 = vunpack.c.h.b16 %v1351
        %v1480 = vunpack.c.l.b16 %v1357
        %v1481 = vunpack.c.h.b16 %v1357
        %v1482 = vunpack.c.l.b16 %v1363
        %v1483 = vunpack.c.h.b16 %v1363
        %v1484 = vunpack.c.l.b16 %v1369
        %v1485 = vunpack.c.h.b16 %v1369
        %v1486 = vunpack.c.l.b16 %v1375
        %v1487 = vunpack.c.h.b16 %v1375
        %v1488 = vunpack.c.l.b16 %v1381
        %v1489 = vunpack.c.h.b16 %v1381
        %v1490 = vunpack.c.l.b16 %v1387
        %v1491 = vunpack.c.h.b16 %v1387
        %v1492 = vunpack.c.l.b16 %v1393
        %v1493 = vunpack.c.h.b16 %v1393
        %v1494 = vpack.c.b16 %v1478, %v1478
        %v1495 = vpack.c.b16 %v1479, %v1479
        %v1496 = vpack.c.b16 %v1480, %v1480
        %v1497 = vpack.c.b16 %v1481, %v1481
        %v1498 = vpack.c.b16 %v1482, %v1482
        %v1499 = vpack.c.b16 %v1483, %v1483
        %v1500 = vpack.c.b16 %v1484, %v1484
        %v1501 = vpack.c.b16 %v1485, %v1485
        %v1502 = vpack.c.b16 %v1486, %v1486
        %v1503 = vpack.c.b16 %v1487, %v1487
        %v1504 = vpack.c.b16 %v1488, %v1488
        %v1505 = vpack.c.b16 %v1489, %v1489
        %v1506 = vpack.c.b16 %v1490, %v1490
        %v1507 = vpack.c.b16 %v1491, %v1491
        %v1508 = vpack.c.b16 %v1492, %v1492
        %v1509 = vpack.c.b16 %v1493, %v1493
        %1526 = vst.msk [vmem:[%s295] sm:$0xf] %vm1453, %v1494
        %1527 = vst.msk [vmem:[%s295 + $0x4] sm:$0xf] %vm1453, %v1495
        %1528 = vst.msk [vmem:[%s295 + $0x8] sm:$0xf] %vm1453, %v1496
        %1529 = vst.msk [vmem:[%s295 + $0xc] sm:$0xf] %vm1453, %v1497
        %1530 = vst.msk [vmem:[%s295 + $0x10] sm:$0xf] %vm1453, %v1498
        %1531 = vst.msk [vmem:[%s295 + $0x14] sm:$0xf] %vm1453, %v1499
        %1532 = vst.msk [vmem:[%s295 + $0x18] sm:$0xf] %vm1453, %v1500
        %1533 = vst.msk [vmem:[%s295 + $0x1c] sm:$0xf] %vm1453, %v1501
        %1534 = vst.msk [vmem:[%s295 + $0x20] sm:$0xf] %vm1453, %v1502
        %1535 = vst.msk [vmem:[%s295 + $0x24] sm:$0xf] %vm1453, %v1503
        %1536 = vst.msk [vmem:[%s295 + $0x28] sm:$0xf] %vm1453, %v1504
        %1537 = vst.msk [vmem:[%s295 + $0x2c] sm:$0xf] %vm1453, %v1505
        %1538 = vst.msk [vmem:[%s295 + $0x30] sm:$0xf] %vm1453, %v1506
        %1539 = vst.msk [vmem:[%s295 + $0x34] sm:$0xf] %vm1453, %v1507
        %1540 = vst.msk [vmem:[%s295 + $0x38] sm:$0xf] %vm1453, %v1508
        %1541 = vst.msk [vmem:[%s295 + $0x3c] sm:$0xf] %vm1453, %v1509
        %v1550 = vunpack.c.l.b16 %v1353
        %v1551 = vunpack.c.h.b16 %v1353
        %v1552 = vunpack.c.l.b16 %v1359
        %v1553 = vunpack.c.h.b16 %v1359
        %v1554 = vunpack.c.l.b16 %v1365
        %v1555 = vunpack.c.h.b16 %v1365
        %v1556 = vunpack.c.l.b16 %v1371
        %v1557 = vunpack.c.h.b16 %v1371
        %v1558 = vunpack.c.l.b16 %v1377
        %v1559 = vunpack.c.h.b16 %v1377
        %v1560 = vunpack.c.l.b16 %v1383
        %v1561 = vunpack.c.h.b16 %v1383
        %v1562 = vunpack.c.l.b16 %v1389
        %v1563 = vunpack.c.h.b16 %v1389
        %v1564 = vunpack.c.l.b16 %v1395
        %v1565 = vunpack.c.h.b16 %v1395
        %v1566 = vpack.c.b16 %v1550, %v1550
        %v1567 = vpack.c.b16 %v1551, %v1551
        %v1568 = vpack.c.b16 %v1552, %v1552
        %v1569 = vpack.c.b16 %v1553, %v1553
        %v1570 = vpack.c.b16 %v1554, %v1554
        %v1571 = vpack.c.b16 %v1555, %v1555
        %v1572 = vpack.c.b16 %v1556, %v1556
        %v1573 = vpack.c.b16 %v1557, %v1557
        %v1574 = vpack.c.b16 %v1558, %v1558
        %v1575 = vpack.c.b16 %v1559, %v1559
        %v1576 = vpack.c.b16 %v1560, %v1560
        %v1577 = vpack.c.b16 %v1561, %v1561
        %v1578 = vpack.c.b16 %v1562, %v1562
        %v1579 = vpack.c.b16 %v1563, %v1563
        %v1580 = vpack.c.b16 %v1564, %v1564
        %v1581 = vpack.c.b16 %v1565, %v1565
        %1598 = vst.msk [vmem:[%s301] sm:$0xf] %vm1453, %v1566
        %1599 = vst.msk [vmem:[%s301 + $0x4] sm:$0xf] %vm1453, %v1567
        %1600 = vst.msk [vmem:[%s301 + $0x8] sm:$0xf] %vm1453, %v1568
        %1601 = vst.msk [vmem:[%s301 + $0xc] sm:$0xf] %vm1453, %v1569
        %1602 = vst.msk [vmem:[%s301 + $0x10] sm:$0xf] %vm1453, %v1570
        %1603 = vst.msk [vmem:[%s301 + $0x14] sm:$0xf] %vm1453, %v1571
        %1604 = vst.msk [vmem:[%s301 + $0x18] sm:$0xf] %vm1453, %v1572
        %1605 = vst.msk [vmem:[%s301 + $0x1c] sm:$0xf] %vm1453, %v1573
        %1606 = vst.msk [vmem:[%s301 + $0x20] sm:$0xf] %vm1453, %v1574
        %1607 = vst.msk [vmem:[%s301 + $0x24] sm:$0xf] %vm1453, %v1575
        %1608 = vst.msk [vmem:[%s301 + $0x28] sm:$0xf] %vm1453, %v1576
        %1609 = vst.msk [vmem:[%s301 + $0x2c] sm:$0xf] %vm1453, %v1577
        %1610 = vst.msk [vmem:[%s301 + $0x30] sm:$0xf] %vm1453, %v1578
        %1611 = vst.msk [vmem:[%s301 + $0x34] sm:$0xf] %vm1453, %v1579
        %1612 = vst.msk [vmem:[%s301 + $0x38] sm:$0xf] %vm1453, %v1580
        %1613 = vst.msk [vmem:[%s301 + $0x3c] sm:$0xf] %vm1453, %v1581
        %1614 = vrot.lane.b32.xlu0 %v1421, 64
        %v1615 = vpop.permute.xlu0 %1614
        %1616 = vrot.lane.b32.xlu0 %v1422, 64
        %v1617 = vpop.permute.xlu0 %1616
        %1618 = vrot.lane.b32.xlu0 %v1423, 64
        %v1619 = vpop.permute.xlu0 %1618
        %1620 = vrot.lane.b32.xlu0 %v1424, 64
        %v1621 = vpop.permute.xlu0 %1620
        %1622 = vrot.lane.b32.xlu0 %v1425, 64
        %v1623 = vpop.permute.xlu0 %1622
        %1624 = vrot.lane.b32.xlu0 %v1426, 64
        %v1625 = vpop.permute.xlu0 %1624
        %1626 = vrot.lane.b32.xlu0 %v1427, 64
        %v1627 = vpop.permute.xlu0 %1626
        %1628 = vrot.lane.b32.xlu0 %v1428, 64
        %v1629 = vpop.permute.xlu0 %1628
        %1630 = vrot.lane.b32.xlu0 %v1429, 64
        %v1631 = vpop.permute.xlu0 %1630
        %1632 = vrot.lane.b32.xlu0 %v1430, 64
        %v1633 = vpop.permute.xlu0 %1632
        %1634 = vrot.lane.b32.xlu0 %v1431, 64
        %v1635 = vpop.permute.xlu0 %1634
        %1636 = vrot.lane.b32.xlu0 %v1432, 64
        %v1637 = vpop.permute.xlu0 %1636
        %1638 = vrot.lane.b32.xlu0 %v1433, 64
        %v1639 = vpop.permute.xlu0 %1638
        %1640 = vrot.lane.b32.xlu0 %v1434, 64
        %v1641 = vpop.permute.xlu0 %1640
        %1642 = vrot.lane.b32.xlu0 %v1435, 64
        %v1643 = vpop.permute.xlu0 %1642
        %1644 = vrot.lane.b32.xlu0 %v1436, 64
        %v1645 = vpop.permute.xlu0 %1644
        %s1662 = scalar_lea.vmem %s289, 64 [#allocation7]
        %1663 = vst.msk [vmem:[%s1662] sm:$0xf] %vm1453, %v1615
        %1664 = vst.msk [vmem:[%s1662 + $0x4] sm:$0xf] %vm1453, %v1617
        %1665 = vst.msk [vmem:[%s1662 + $0x8] sm:$0xf] %vm1453, %v1619
        %1666 = vst.msk [vmem:[%s1662 + $0xc] sm:$0xf] %vm1453, %v1621
        %1667 = vst.msk [vmem:[%s1662 + $0x10] sm:$0xf] %vm1453, %v1623
        %1668 = vst.msk [vmem:[%s1662 + $0x14] sm:$0xf] %vm1453, %v1625
        %1669 = vst.msk [vmem:[%s1662 + $0x18] sm:$0xf] %vm1453, %v1627
        %1670 = vst.msk [vmem:[%s1662 + $0x1c] sm:$0xf] %vm1453, %v1629
        %1671 = vst.msk [vmem:[%s1662 + $0x20] sm:$0xf] %vm1453, %v1631
        %1672 = vst.msk [vmem:[%s1662 + $0x24] sm:$0xf] %vm1453, %v1633
        %1673 = vst.msk [vmem:[%s1662 + $0x28] sm:$0xf] %vm1453, %v1635
        %1674 = vst.msk [vmem:[%s1662 + $0x2c] sm:$0xf] %vm1453, %v1637
        %1675 = vst.msk [vmem:[%s1662 + $0x30] sm:$0xf] %vm1453, %v1639
        %1676 = vst.msk [vmem:[%s1662 + $0x34] sm:$0xf] %vm1453, %v1641
        %1677 = vst.msk [vmem:[%s1662 + $0x38] sm:$0xf] %vm1453, %v1643
        %1678 = vst.msk [vmem:[%s1662 + $0x3c] sm:$0xf] %vm1453, %v1645
        %1679 = vrot.lane.b32.xlu0 %v1494, 64
        %v1680 = vpop.permute.xlu0 %1679
        %1681 = vrot.lane.b32.xlu0 %v1495, 64
        %v1682 = vpop.permute.xlu0 %1681
        %1683 = vrot.lane.b32.xlu0 %v1496, 64
        %v1684 = vpop.permute.xlu0 %1683
        %1685 = vrot.lane.b32.xlu0 %v1497, 64
        %v1686 = vpop.permute.xlu0 %1685
        %1687 = vrot.lane.b32.xlu0 %v1498, 64
        %v1688 = vpop.permute.xlu0 %1687
        %1689 = vrot.lane.b32.xlu0 %v1499, 64
        %v1690 = vpop.permute.xlu0 %1689
        %1691 = vrot.lane.b32.xlu0 %v1500, 64
        %v1692 = vpop.permute.xlu0 %1691
        %1693 = vrot.lane.b32.xlu0 %v1501, 64
        %v1694 = vpop.permute.xlu0 %1693
        %1695 = vrot.lane.b32.xlu0 %v1502, 64
        %v1696 = vpop.permute.xlu0 %1695
        %1697 = vrot.lane.b32.xlu0 %v1503, 64
        %v1698 = vpop.permute.xlu0 %1697
        %1699 = vrot.lane.b32.xlu0 %v1504, 64
        %v1700 = vpop.permute.xlu0 %1699
        %1701 = vrot.lane.b32.xlu0 %v1505, 64
        %v1702 = vpop.permute.xlu0 %1701
        %1703 = vrot.lane.b32.xlu0 %v1506, 64
        %v1704 = vpop.permute.xlu0 %1703
        %1705 = vrot.lane.b32.xlu0 %v1507, 64
        %v1706 = vpop.permute.xlu0 %1705
        %1707 = vrot.lane.b32.xlu0 %v1508, 64
        %v1708 = vpop.permute.xlu0 %1707
        %1709 = vrot.lane.b32.xlu0 %v1509, 64
        %v1710 = vpop.permute.xlu0 %1709
        %s1727 = scalar_lea.vmem %s295, 64 [#allocation8]
        %1728 = vst.msk [vmem:[%s1727] sm:$0xf] %vm1453, %v1680
        %1729 = vst.msk [vmem:[%s1727 + $0x4] sm:$0xf] %vm1453, %v1682
        %1730 = vst.msk [vmem:[%s1727 + $0x8] sm:$0xf] %vm1453, %v1684
        %1731 = vst.msk [vmem:[%s1727 + $0xc] sm:$0xf] %vm1453, %v1686
        %1732 = vst.msk [vmem:[%s1727 + $0x10] sm:$0xf] %vm1453, %v1688
        %1733 = vst.msk [vmem:[%s1727 + $0x14] sm:$0xf] %vm1453, %v1690
        %1734 = vst.msk [vmem:[%s1727 + $0x18] sm:$0xf] %vm1453, %v1692
        %1735 = vst.msk [vmem:[%s1727 + $0x1c] sm:$0xf] %vm1453, %v1694
        %1736 = vst.msk [vmem:[%s1727 + $0x20] sm:$0xf] %vm1453, %v1696
        %1737 = vst.msk [vmem:[%s1727 + $0x24] sm:$0xf] %vm1453, %v1698
        %1738 = vst.msk [vmem:[%s1727 + $0x28] sm:$0xf] %vm1453, %v1700
        %1739 = vst.msk [vmem:[%s1727 + $0x2c] sm:$0xf] %vm1453, %v1702
        %1740 = vst.msk [vmem:[%s1727 + $0x30] sm:$0xf] %vm1453, %v1704
        %1741 = vst.msk [vmem:[%s1727 + $0x34] sm:$0xf] %vm1453, %v1706
        %1742 = vst.msk [vmem:[%s1727 + $0x38] sm:$0xf] %vm1453, %v1708
        %1743 = vst.msk [vmem:[%s1727 + $0x3c] sm:$0xf] %vm1453, %v1710
        %1744 = vrot.lane.b32.xlu0 %v1566, 64
        %v1745 = vpop.permute.xlu0 %1744
        %1746 = vrot.lane.b32.xlu0 %v1567, 64
        %v1747 = vpop.permute.xlu0 %1746
        %1748 = vrot.lane.b32.xlu0 %v1568, 64
        %v1749 = vpop.permute.xlu0 %1748
        %1750 = vrot.lane.b32.xlu0 %v1569, 64
        %v1751 = vpop.permute.xlu0 %1750
        %1752 = vrot.lane.b32.xlu0 %v1570, 64
        %v1753 = vpop.permute.xlu0 %1752
        %1754 = vrot.lane.b32.xlu0 %v1571, 64
        %v1755 = vpop.permute.xlu0 %1754
        %1756 = vrot.lane.b32.xlu0 %v1572, 64
        %v1757 = vpop.permute.xlu0 %1756
        %1758 = vrot.lane.b32.xlu0 %v1573, 64
        %v1759 = vpop.permute.xlu0 %1758
        %1760 = vrot.lane.b32.xlu0 %v1574, 64
        %v1761 = vpop.permute.xlu0 %1760
        %1762 = vrot.lane.b32.xlu0 %v1575, 64
        %v1763 = vpop.permute.xlu0 %1762
        %1764 = vrot.lane.b32.xlu0 %v1576, 64
        %v1765 = vpop.permute.xlu0 %1764
        %1766 = vrot.lane.b32.xlu0 %v1577, 64
        %v1767 = vpop.permute.xlu0 %1766
        %1768 = vrot.lane.b32.xlu0 %v1578, 64
        %v1769 = vpop.permute.xlu0 %1768
        %1770 = vrot.lane.b32.xlu0 %v1579, 64
        %v1771 = vpop.permute.xlu0 %1770
        %1772 = vrot.lane.b32.xlu0 %v1580, 64
        %v1773 = vpop.permute.xlu0 %1772
        %1774 = vrot.lane.b32.xlu0 %v1581, 64
        %v1775 = vpop.permute.xlu0 %1774
        %s1792 = scalar_lea.vmem %s301, 64 [#allocation9]
        %1793 = vst.msk [vmem:[%s1792] sm:$0xf] %vm1453, %v1745
        %1794 = vst.msk [vmem:[%s1792 + $0x4] sm:$0xf] %vm1453, %v1747
        %1795 = vst.msk [vmem:[%s1792 + $0x8] sm:$0xf] %vm1453, %v1749
        %1796 = vst.msk [vmem:[%s1792 + $0xc] sm:$0xf] %vm1453, %v1751
        %1797 = vst.msk [vmem:[%s1792 + $0x10] sm:$0xf] %vm1453, %v1753
        %1798 = vst.msk [vmem:[%s1792 + $0x14] sm:$0xf] %vm1453, %v1755
        %1799 = vst.msk [vmem:[%s1792 + $0x18] sm:$0xf] %vm1453, %v1757
        %1800 = vst.msk [vmem:[%s1792 + $0x1c] sm:$0xf] %vm1453, %v1759
        %1801 = vst.msk [vmem:[%s1792 + $0x20] sm:$0xf] %vm1453, %v1761
        %1802 = vst.msk [vmem:[%s1792 + $0x24] sm:$0xf] %vm1453, %v1763
        %1803 = vst.msk [vmem:[%s1792 + $0x28] sm:$0xf] %vm1453, %v1765
        %1804 = vst.msk [vmem:[%s1792 + $0x2c] sm:$0xf] %vm1453, %v1767
        %1805 = vst.msk [vmem:[%s1792 + $0x30] sm:$0xf] %vm1453, %v1769
        %1806 = vst.msk [vmem:[%s1792 + $0x34] sm:$0xf] %vm1453, %v1771
        %1807 = vst.msk [vmem:[%s1792 + $0x38] sm:$0xf] %vm1453, %v1773
        %1808 = vst.msk [vmem:[%s1792 + $0x3c] sm:$0xf] %vm1453, %v1775
        %v1817 = vunpack.c.l.b16 %v1350
        %v1818 = vunpack.c.h.b16 %v1350
        %v1819 = vunpack.c.l.b16 %v1356
        %v1820 = vunpack.c.h.b16 %v1356
        %v1821 = vunpack.c.l.b16 %v1362
        %v1822 = vunpack.c.h.b16 %v1362
        %v1823 = vunpack.c.l.b16 %v1368
        %v1824 = vunpack.c.h.b16 %v1368
        %v1825 = vunpack.c.l.b16 %v1374
        %v1826 = vunpack.c.h.b16 %v1374
        %v1827 = vunpack.c.l.b16 %v1380
        %v1828 = vunpack.c.h.b16 %v1380
        %v1829 = vunpack.c.l.b16 %v1386
        %v1830 = vunpack.c.h.b16 %v1386
        %v1831 = vunpack.c.l.b16 %v1392
        %v1832 = vunpack.c.h.b16 %v1392
        %v1833 = vpack.c.b16 %v1817, %v1817
        %v1834 = vpack.c.b16 %v1818, %v1818
        %v1835 = vpack.c.b16 %v1819, %v1819
        %v1836 = vpack.c.b16 %v1820, %v1820
        %v1837 = vpack.c.b16 %v1821, %v1821
        %v1838 = vpack.c.b16 %v1822, %v1822
        %v1839 = vpack.c.b16 %v1823, %v1823
        %v1840 = vpack.c.b16 %v1824, %v1824
        %v1841 = vpack.c.b16 %v1825, %v1825
        %v1842 = vpack.c.b16 %v1826, %v1826
        %v1843 = vpack.c.b16 %v1827, %v1827
        %v1844 = vpack.c.b16 %v1828, %v1828
        %v1845 = vpack.c.b16 %v1829, %v1829
        %v1846 = vpack.c.b16 %v1830, %v1830
        %v1847 = vpack.c.b16 %v1831, %v1831
        %v1848 = vpack.c.b16 %v1832, %v1832
        %s1865 = scalar_lea.vmem %s289, 128 [#allocation7]
        %1866 = vst.msk [vmem:[%s1865] sm:$0xf] %vm1453, %v1833
        %1867 = vst.msk [vmem:[%s1865 + $0x4] sm:$0xf] %vm1453, %v1834
        %1868 = vst.msk [vmem:[%s1865 + $0x8] sm:$0xf] %vm1453, %v1835
        %1869 = vst.msk [vmem:[%s1865 + $0xc] sm:$0xf] %vm1453, %v1836
        %1870 = vst.msk [vmem:[%s1865 + $0x10] sm:$0xf] %vm1453, %v1837
        %1871 = vst.msk [vmem:[%s1865 + $0x14] sm:$0xf] %vm1453, %v1838
        %1872 = vst.msk [vmem:[%s1865 + $0x18] sm:$0xf] %vm1453, %v1839
        %1873 = vst.msk [vmem:[%s1865 + $0x1c] sm:$0xf] %vm1453, %v1840
        %1874 = vst.msk [vmem:[%s1865 + $0x20] sm:$0xf] %vm1453, %v1841
        %1875 = vst.msk [vmem:[%s1865 + $0x24] sm:$0xf] %vm1453, %v1842
        %1876 = vst.msk [vmem:[%s1865 + $0x28] sm:$0xf] %vm1453, %v1843
        %1877 = vst.msk [vmem:[%s1865 + $0x2c] sm:$0xf] %vm1453, %v1844
        %1878 = vst.msk [vmem:[%s1865 + $0x30] sm:$0xf] %vm1453, %v1845
        %1879 = vst.msk [vmem:[%s1865 + $0x34] sm:$0xf] %vm1453, %v1846
        %1880 = vst.msk [vmem:[%s1865 + $0x38] sm:$0xf] %vm1453, %v1847
        %1881 = vst.msk [vmem:[%s1865 + $0x3c] sm:$0xf] %vm1453, %v1848
        %v1890 = vunpack.c.l.b16 %v1352
        %v1891 = vunpack.c.h.b16 %v1352
        %v1892 = vunpack.c.l.b16 %v1358
        %v1893 = vunpack.c.h.b16 %v1358
        %v1894 = vunpack.c.l.b16 %v1364
        %v1895 = vunpack.c.h.b16 %v1364
        %v1896 = vunpack.c.l.b16 %v1370
        %v1897 = vunpack.c.h.b16 %v1370
        %v1898 = vunpack.c.l.b16 %v1376
        %v1899 = vunpack.c.h.b16 %v1376
        %v1900 = vunpack.c.l.b16 %v1382
        %v1901 = vunpack.c.h.b16 %v1382
        %v1902 = vunpack.c.l.b16 %v1388
        %v1903 = vunpack.c.h.b16 %v1388
        %v1904 = vunpack.c.l.b16 %v1394
        %v1905 = vunpack.c.h.b16 %v1394
        %v1906 = vpack.c.b16 %v1890, %v1890
        %v1907 = vpack.c.b16 %v1891, %v1891
        %v1908 = vpack.c.b16 %v1892, %v1892
        %v1909 = vpack.c.b16 %v1893, %v1893
        %v1910 = vpack.c.b16 %v1894, %v1894
        %v1911 = vpack.c.b16 %v1895, %v1895
        %v1912 = vpack.c.b16 %v1896, %v1896
        %v1913 = vpack.c.b16 %v1897, %v1897
        %v1914 = vpack.c.b16 %v1898, %v1898
        %v1915 = vpack.c.b16 %v1899, %v1899
        %v1916 = vpack.c.b16 %v1900, %v1900
        %v1917 = vpack.c.b16 %v1901, %v1901
        %v1918 = vpack.c.b16 %v1902, %v1902
        %v1919 = vpack.c.b16 %v1903, %v1903
        %v1920 = vpack.c.b16 %v1904, %v1904
        %v1921 = vpack.c.b16 %v1905, %v1905
        %s1938 = scalar_lea.vmem %s295, 128 [#allocation8]
        %1939 = vst.msk [vmem:[%s1938] sm:$0xf] %vm1453, %v1906
        %1940 = vst.msk [vmem:[%s1938 + $0x4] sm:$0xf] %vm1453, %v1907
        %1941 = vst.msk [vmem:[%s1938 + $0x8] sm:$0xf] %vm1453, %v1908
        %1942 = vst.msk [vmem:[%s1938 + $0xc] sm:$0xf] %vm1453, %v1909
        %1943 = vst.msk [vmem:[%s1938 + $0x10] sm:$0xf] %vm1453, %v1910
        %1944 = vst.msk [vmem:[%s1938 + $0x14] sm:$0xf] %vm1453, %v1911
        %1945 = vst.msk [vmem:[%s1938 + $0x18] sm:$0xf] %vm1453, %v1912
        %1946 = vst.msk [vmem:[%s1938 + $0x1c] sm:$0xf] %vm1453, %v1913
        %1947 = vst.msk [vmem:[%s1938 + $0x20] sm:$0xf] %vm1453, %v1914
        %1948 = vst.msk [vmem:[%s1938 + $0x24] sm:$0xf] %vm1453, %v1915
        %1949 = vst.msk [vmem:[%s1938 + $0x28] sm:$0xf] %vm1453, %v1916
        %1950 = vst.msk [vmem:[%s1938 + $0x2c] sm:$0xf] %vm1453, %v1917
        %1951 = vst.msk [vmem:[%s1938 + $0x30] sm:$0xf] %vm1453, %v1918
        %1952 = vst.msk [vmem:[%s1938 + $0x34] sm:$0xf] %vm1453, %v1919
        %1953 = vst.msk [vmem:[%s1938 + $0x38] sm:$0xf] %vm1453, %v1920
        %1954 = vst.msk [vmem:[%s1938 + $0x3c] sm:$0xf] %vm1453, %v1921
        %v1963 = vunpack.c.l.b16 %v1354
        %v1964 = vunpack.c.h.b16 %v1354
        %v1965 = vunpack.c.l.b16 %v1360
        %v1966 = vunpack.c.h.b16 %v1360
        %v1967 = vunpack.c.l.b16 %v1366
        %v1968 = vunpack.c.h.b16 %v1366
        %v1969 = vunpack.c.l.b16 %v1372
        %v1970 = vunpack.c.h.b16 %v1372
        %v1971 = vunpack.c.l.b16 %v1378
        %v1972 = vunpack.c.h.b16 %v1378
        %v1973 = vunpack.c.l.b16 %v1384
        %v1974 = vunpack.c.h.b16 %v1384
        %v1975 = vunpack.c.l.b16 %v1390
        %v1976 = vunpack.c.h.b16 %v1390
        %v1977 = vunpack.c.l.b16 %v1396
        %v1978 = vunpack.c.h.b16 %v1396
        %v1979 = vpack.c.b16 %v1963, %v1963
        %v1980 = vpack.c.b16 %v1964, %v1964
        %v1981 = vpack.c.b16 %v1965, %v1965
        %v1982 = vpack.c.b16 %v1966, %v1966
        %v1983 = vpack.c.b16 %v1967, %v1967
        %v1984 = vpack.c.b16 %v1968, %v1968
        %v1985 = vpack.c.b16 %v1969, %v1969
        %v1986 = vpack.c.b16 %v1970, %v1970
        %v1987 = vpack.c.b16 %v1971, %v1971
        %v1988 = vpack.c.b16 %v1972, %v1972
        %v1989 = vpack.c.b16 %v1973, %v1973
        %v1990 = vpack.c.b16 %v1974, %v1974
        %v1991 = vpack.c.b16 %v1975, %v1975
        %v1992 = vpack.c.b16 %v1976, %v1976
        %v1993 = vpack.c.b16 %v1977, %v1977
        %v1994 = vpack.c.b16 %v1978, %v1978
        %s2011 = scalar_lea.vmem %s301, 128 [#allocation9]
        %2012 = vst.msk [vmem:[%s2011] sm:$0xf] %vm1453, %v1979
        %2013 = vst.msk [vmem:[%s2011 + $0x4] sm:$0xf] %vm1453, %v1980
        %2014 = vst.msk [vmem:[%s2011 + $0x8] sm:$0xf] %vm1453, %v1981
        %2015 = vst.msk [vmem:[%s2011 + $0xc] sm:$0xf] %vm1453, %v1982
        %2016 = vst.msk [vmem:[%s2011 + $0x10] sm:$0xf] %vm1453, %v1983
        %2017 = vst.msk [vmem:[%s2011 + $0x14] sm:$0xf] %vm1453, %v1984
        %2018 = vst.msk [vmem:[%s2011 + $0x18] sm:$0xf] %vm1453, %v1985
        %2019 = vst.msk [vmem:[%s2011 + $0x1c] sm:$0xf] %vm1453, %v1986
        %2020 = vst.msk [vmem:[%s2011 + $0x20] sm:$0xf] %vm1453, %v1987
        %2021 = vst.msk [vmem:[%s2011 + $0x24] sm:$0xf] %vm1453, %v1988
        %2022 = vst.msk [vmem:[%s2011 + $0x28] sm:$0xf] %vm1453, %v1989
        %2023 = vst.msk [vmem:[%s2011 + $0x2c] sm:$0xf] %vm1453, %v1990
        %2024 = vst.msk [vmem:[%s2011 + $0x30] sm:$0xf] %vm1453, %v1991
        %2025 = vst.msk [vmem:[%s2011 + $0x34] sm:$0xf] %vm1453, %v1992
        %2026 = vst.msk [vmem:[%s2011 + $0x38] sm:$0xf] %vm1453, %v1993
        %2027 = vst.msk [vmem:[%s2011 + $0x3c] sm:$0xf] %vm1453, %v1994
        %2028 = vrot.lane.b32.xlu0 %v1833, 64
        %v2029 = vpop.permute.xlu0 %2028
        %2030 = vrot.lane.b32.xlu0 %v1834, 64
        %v2031 = vpop.permute.xlu0 %2030
        %2032 = vrot.lane.b32.xlu0 %v1835, 64
        %v2033 = vpop.permute.xlu0 %2032
        %2034 = vrot.lane.b32.xlu0 %v1836, 64
        %v2035 = vpop.permute.xlu0 %2034
        %2036 = vrot.lane.b32.xlu0 %v1837, 64
        %v2037 = vpop.permute.xlu0 %2036
        %2038 = vrot.lane.b32.xlu0 %v1838, 64
        %v2039 = vpop.permute.xlu0 %2038
        %2040 = vrot.lane.b32.xlu0 %v1839, 64
        %v2041 = vpop.permute.xlu0 %2040
        %2042 = vrot.lane.b32.xlu0 %v1840, 64
        %v2043 = vpop.permute.xlu0 %2042
        %2044 = vrot.lane.b32.xlu0 %v1841, 64
        %v2045 = vpop.permute.xlu0 %2044
        %2046 = vrot.lane.b32.xlu0 %v1842, 64
        %v2047 = vpop.permute.xlu0 %2046
        %2048 = vrot.lane.b32.xlu0 %v1843, 64
        %v2049 = vpop.permute.xlu0 %2048
        %2050 = vrot.lane.b32.xlu0 %v1844, 64
        %v2051 = vpop.permute.xlu0 %2050
        %2052 = vrot.lane.b32.xlu0 %v1845, 64
        %v2053 = vpop.permute.xlu0 %2052
        %2054 = vrot.lane.b32.xlu0 %v1846, 64
        %v2055 = vpop.permute.xlu0 %2054
        %2056 = vrot.lane.b32.xlu0 %v1847, 64
        %v2057 = vpop.permute.xlu0 %2056
        %2058 = vrot.lane.b32.xlu0 %v1848, 64
        %v2059 = vpop.permute.xlu0 %2058
        %s2076 = scalar_lea.vmem %s289, 192 [#allocation7]
        %2077 = vst.msk [vmem:[%s2076] sm:$0xf] %vm1453, %v2029
        %2078 = vst.msk [vmem:[%s2076 + $0x4] sm:$0xf] %vm1453, %v2031
        %2079 = vst.msk [vmem:[%s2076 + $0x8] sm:$0xf] %vm1453, %v2033
        %2080 = vst.msk [vmem:[%s2076 + $0xc] sm:$0xf] %vm1453, %v2035
        %2081 = vst.msk [vmem:[%s2076 + $0x10] sm:$0xf] %vm1453, %v2037
        %2082 = vst.msk [vmem:[%s2076 + $0x14] sm:$0xf] %vm1453, %v2039
        %2083 = vst.msk [vmem:[%s2076 + $0x18] sm:$0xf] %vm1453, %v2041
        %2084 = vst.msk [vmem:[%s2076 + $0x1c] sm:$0xf] %vm1453, %v2043
        %2085 = vst.msk [vmem:[%s2076 + $0x20] sm:$0xf] %vm1453, %v2045
        %2086 = vst.msk [vmem:[%s2076 + $0x24] sm:$0xf] %vm1453, %v2047
        %2087 = vst.msk [vmem:[%s2076 + $0x28] sm:$0xf] %vm1453, %v2049
        %2088 = vst.msk [vmem:[%s2076 + $0x2c] sm:$0xf] %vm1453, %v2051
        %2089 = vst.msk [vmem:[%s2076 + $0x30] sm:$0xf] %vm1453, %v2053
        %2090 = vst.msk [vmem:[%s2076 + $0x34] sm:$0xf] %vm1453, %v2055
        %2091 = vst.msk [vmem:[%s2076 + $0x38] sm:$0xf] %vm1453, %v2057
        %2092 = vst.msk [vmem:[%s2076 + $0x3c] sm:$0xf] %vm1453, %v2059
        %2093 = vrot.lane.b32.xlu0 %v1906, 64
        %v2094 = vpop.permute.xlu0 %2093
        %2095 = vrot.lane.b32.xlu0 %v1907, 64
        %v2096 = vpop.permute.xlu0 %2095
        %2097 = vrot.lane.b32.xlu0 %v1908, 64
        %v2098 = vpop.permute.xlu0 %2097
        %2099 = vrot.lane.b32.xlu0 %v1909, 64
        %v2100 = vpop.permute.xlu0 %2099
        %2101 = vrot.lane.b32.xlu0 %v1910, 64
        %v2102 = vpop.permute.xlu0 %2101
        %2103 = vrot.lane.b32.xlu0 %v1911, 64
        %v2104 = vpop.permute.xlu0 %2103
        %2105 = vrot.lane.b32.xlu0 %v1912, 64
        %v2106 = vpop.permute.xlu0 %2105
        %2107 = vrot.lane.b32.xlu0 %v1913, 64
        %v2108 = vpop.permute.xlu0 %2107
        %2109 = vrot.lane.b32.xlu0 %v1914, 64
        %v2110 = vpop.permute.xlu0 %2109
        %2111 = vrot.lane.b32.xlu0 %v1915, 64
        %v2112 = vpop.permute.xlu0 %2111
        %2113 = vrot.lane.b32.xlu0 %v1916, 64
        %v2114 = vpop.permute.xlu0 %2113
        %2115 = vrot.lane.b32.xlu0 %v1917, 64
        %v2116 = vpop.permute.xlu0 %2115
        %2117 = vrot.lane.b32.xlu0 %v1918, 64
        %v2118 = vpop.permute.xlu0 %2117
        %2119 = vrot.lane.b32.xlu0 %v1919, 64
        %v2120 = vpop.permute.xlu0 %2119
        %2121 = vrot.lane.b32.xlu0 %v1920, 64
        %v2122 = vpop.permute.xlu0 %2121
        %2123 = vrot.lane.b32.xlu0 %v1921, 64
        %v2124 = vpop.permute.xlu0 %2123
        %s2141 = scalar_lea.vmem %s295, 192 [#allocation8]
        %2142 = vst.msk [vmem:[%s2141] sm:$0xf] %vm1453, %v2094
        %2143 = vst.msk [vmem:[%s2141 + $0x4] sm:$0xf] %vm1453, %v2096
        %2144 = vst.msk [vmem:[%s2141 + $0x8] sm:$0xf] %vm1453, %v2098
        %2145 = vst.msk [vmem:[%s2141 + $0xc] sm:$0xf] %vm1453, %v2100
        %2146 = vst.msk [vmem:[%s2141 + $0x10] sm:$0xf] %vm1453, %v2102
        %2147 = vst.msk [vmem:[%s2141 + $0x14] sm:$0xf] %vm1453, %v2104
        %2148 = vst.msk [vmem:[%s2141 + $0x18] sm:$0xf] %vm1453, %v2106
        %2149 = vst.msk [vmem:[%s2141 + $0x1c] sm:$0xf] %vm1453, %v2108
        %2150 = vst.msk [vmem:[%s2141 + $0x20] sm:$0xf] %vm1453, %v2110
        %2151 = vst.msk [vmem:[%s2141 + $0x24] sm:$0xf] %vm1453, %v2112
        %2152 = vst.msk [vmem:[%s2141 + $0x28] sm:$0xf] %vm1453, %v2114
        %2153 = vst.msk [vmem:[%s2141 + $0x2c] sm:$0xf] %vm1453, %v2116
        %2154 = vst.msk [vmem:[%s2141 + $0x30] sm:$0xf] %vm1453, %v2118
        %2155 = vst.msk [vmem:[%s2141 + $0x34] sm:$0xf] %vm1453, %v2120
        %2156 = vst.msk [vmem:[%s2141 + $0x38] sm:$0xf] %vm1453, %v2122
        %2157 = vst.msk [vmem:[%s2141 + $0x3c] sm:$0xf] %vm1453, %v2124
        %2158 = vrot.lane.b32.xlu0 %v1979, 64
        %v2159 = vpop.permute.xlu0 %2158
        %2160 = vrot.lane.b32.xlu0 %v1980, 64
        %v2161 = vpop.permute.xlu0 %2160
        %2162 = vrot.lane.b32.xlu0 %v1981, 64
        %v2163 = vpop.permute.xlu0 %2162
        %2164 = vrot.lane.b32.xlu0 %v1982, 64
        %v2165 = vpop.permute.xlu0 %2164
        %2166 = vrot.lane.b32.xlu0 %v1983, 64
        %v2167 = vpop.permute.xlu0 %2166
        %2168 = vrot.lane.b32.xlu0 %v1984, 64
        %v2169 = vpop.permute.xlu0 %2168
        %2170 = vrot.lane.b32.xlu0 %v1985, 64
        %v2171 = vpop.permute.xlu0 %2170
        %2172 = vrot.lane.b32.xlu0 %v1986, 64
        %v2173 = vpop.permute.xlu0 %2172
        %2174 = vrot.lane.b32.xlu0 %v1987, 64
        %v2175 = vpop.permute.xlu0 %2174
        %2176 = vrot.lane.b32.xlu0 %v1988, 64
        %v2177 = vpop.permute.xlu0 %2176
        %2178 = vrot.lane.b32.xlu0 %v1989, 64
        %v2179 = vpop.permute.xlu0 %2178
        %2180 = vrot.lane.b32.xlu0 %v1990, 64
        %v2181 = vpop.permute.xlu0 %2180
        %2182 = vrot.lane.b32.xlu0 %v1991, 64
        %v2183 = vpop.permute.xlu0 %2182
        %2184 = vrot.lane.b32.xlu0 %v1992, 64
        %v2185 = vpop.permute.xlu0 %2184
        %2186 = vrot.lane.b32.xlu0 %v1993, 64
        %v2187 = vpop.permute.xlu0 %2186
        %2188 = vrot.lane.b32.xlu0 %v1994, 64
        %v2189 = vpop.permute.xlu0 %2188
        %s2206 = scalar_lea.vmem %s301, 192 [#allocation9]
        %2207 = vst.msk [vmem:[%s2206] sm:$0xf] %vm1453, %v2159
        %2208 = vst.msk [vmem:[%s2206 + $0x4] sm:$0xf] %vm1453, %v2161
        %2209 = vst.msk [vmem:[%s2206 + $0x8] sm:$0xf] %vm1453, %v2163
        %2210 = vst.msk [vmem:[%s2206 + $0xc] sm:$0xf] %vm1453, %v2165
        %2211 = vst.msk [vmem:[%s2206 + $0x10] sm:$0xf] %vm1453, %v2167
        %2212 = vst.msk [vmem:[%s2206 + $0x14] sm:$0xf] %vm1453, %v2169
        %2213 = vst.msk [vmem:[%s2206 + $0x18] sm:$0xf] %vm1453, %v2171
        %2214 = vst.msk [vmem:[%s2206 + $0x1c] sm:$0xf] %vm1453, %v2173
        %2215 = vst.msk [vmem:[%s2206 + $0x20] sm:$0xf] %vm1453, %v2175
        %2216 = vst.msk [vmem:[%s2206 + $0x24] sm:$0xf] %vm1453, %v2177
        %2217 = vst.msk [vmem:[%s2206 + $0x28] sm:$0xf] %vm1453, %v2179
        %2218 = vst.msk [vmem:[%s2206 + $0x2c] sm:$0xf] %vm1453, %v2181
        %2219 = vst.msk [vmem:[%s2206 + $0x30] sm:$0xf] %vm1453, %v2183
        %2220 = vst.msk [vmem:[%s2206 + $0x34] sm:$0xf] %vm1453, %v2185
        %2221 = vst.msk [vmem:[%s2206 + $0x38] sm:$0xf] %vm1453, %v2187
        %2222 = vst.msk [vmem:[%s2206 + $0x3c] sm:$0xf] %vm1453, %v2189
        %s2223 = sand.u32 %s113, 1
        %s2224 = sand.u32 %s113, 1
        %s2225 = smul.addr %s2224, 256
        %s2226 = scalar_lea.vmem [#allocation7], %s2225
        %s2227 = sand.u32 %s141, 1
        %s2228 = sand.u32 %s141, 1
        %s2229 = smul.addr %s2228, 256
        %s2230 = scalar_lea.vmem [#allocation8], %s2229
        %s2231 = sand.u32 %s169, 1
        %s2232 = sand.u32 %s169, 1
        %s2233 = smul.addr %s2232, 256
        %s2234 = scalar_lea.vmem [#allocation9], %s2233
        // Predicated region
        $region45: #{tpu_custom_call.1} parent=31 // pred_check
          %p2235 = pneg %p123
        $region46: #{tpu_custom_call.1} parent=31 // pred_check_branch
          %2237 = sbr.rel (%p2235) target = $region48
        $region47: #{tpu_custom_call.1} parent=31 // pred_region
          %s2238 = smul.u32 16, %s26
          %s2239 = smul.addr %s25, 128
          %s2240 = sadd.s32 %s2238, %s2239
          %s2241 = smul.addr %s2240, 4
          %s2242 = scalar_lea.vmem %s3, %s2241
          // Predicated region
          $region49: #{tpu_custom_call.1} parent=47 // pred_check
            _
          $region50: #{tpu_custom_call.1} parent=47 // pred_check_branch
            %2244 = sbr.rel (0) target = $region52
          $region51: #{tpu_custom_call.1} parent=47 // pred_region
            // Predicated region
            $region53: #{tpu_custom_call.1} parent=51 // pred_check
              _
            $region54: #{tpu_custom_call.1} parent=51 // pred_check_branch
              %2246 = sbr.rel target = $region56
            $region55: #{tpu_custom_call.1} parent=51 // pred_region
              // Predicated region
              $region68: #{tpu_custom_call.1} parent=55 // pred_check
                _
              $region69: #{tpu_custom_call.1} parent=55 // pred_check_branch
                %2388 = sbr.rel (0) target = $region71
              $region70: #{tpu_custom_call.1} parent=55 // pred_region
                loop: start=0, step=1, limit=1
                $region72: #{tpu_custom_call.1} parent=70 // loop_pre_header
                  _
                $region73: #{tpu_custom_call.1} parent=70 // loop_header
                  %s2390 = sphi 0, %s2394
                  %p2391 = scmp.ge.s32.totalorder %s2390, 1
                  %s2395 = sphi %s2226, %s2226
                  %s2396 = sphi %s2242, %s2242
                $region74: #{tpu_custom_call.1} parent=70 // loop_header_branch
                  %2393 = sbr.rel (%p2391) target = $region78
                $region75: #{tpu_custom_call.1} parent=70 // loop_body
                  _
                $region76: #{tpu_custom_call.1} parent=70 // loop_footer
                  %s2394 = sadd.s32 1, %s2390
                $region77: #{tpu_custom_call.1} parent=70 // loop_footer_branch
                  %2389 = sbr.rel target = $region73
                $region78: #{tpu_custom_call.1} parent=70 // loop_exit
                  _
                %s2398 = ssub.s32 16, 1
                loop: start=0, step=1, limit=1
                $region79: #{tpu_custom_call.1} parent=70 // loop_pre_header
                  _
                $region80: #{tpu_custom_call.1} parent=70 // loop_header
                  %s2400 = sphi 0, %s2404
                  %p2401 = scmp.ge.s32.totalorder %s2400, 1
                  %s2405 = sphi %s2226, %s2226
                  %s2406 = sphi %s2242, %s2242
                $region81: #{tpu_custom_call.1} parent=70 // loop_header_branch
                  %2403 = sbr.rel (%p2401) target = $region85
                $region82: #{tpu_custom_call.1} parent=70 // loop_body
                  %v2407 = vld [vmem:[%s2405] sm:%s2398]
                  %2408 = vst [vmem:[%s2406] sm:%s2398] %v2407
                  %v2409 = vld [vmem:[%s2405 + $0x4] sm:%s2398]
                  %2410 = vst [vmem:[%s2406 + $0x4] sm:%s2398] %v2409
                  %v2411 = vld [vmem:[%s2405 + $0x8] sm:%s2398]
                  %2412 = vst [vmem:[%s2406 + $0x8] sm:%s2398] %v2411
                  %v2413 = vld [vmem:[%s2405 + $0xc] sm:%s2398]
                  %2414 = vst [vmem:[%s2406 + $0xc] sm:%s2398] %v2413
                  %v2415 = vld [vmem:[%s2405 + $0x10] sm:%s2398]
                  %2416 = vst [vmem:[%s2406 + $0x10] sm:%s2398] %v2415
                  %v2417 = vld [vmem:[%s2405 + $0x14] sm:%s2398]
                  %2418 = vst [vmem:[%s2406 + $0x14] sm:%s2398] %v2417
                  %v2419 = vld [vmem:[%s2405 + $0x18] sm:%s2398]
                  %2420 = vst [vmem:[%s2406 + $0x18] sm:%s2398] %v2419
                  %v2421 = vld [vmem:[%s2405 + $0x1c] sm:%s2398]
                  %2422 = vst [vmem:[%s2406 + $0x1c] sm:%s2398] %v2421
                  %v2423 = vld [vmem:[%s2405 + $0x20] sm:%s2398]
                  %2424 = vst [vmem:[%s2406 + $0x20] sm:%s2398] %v2423
                  %v2425 = vld [vmem:[%s2405 + $0x24] sm:%s2398]
                  %2426 = vst [vmem:[%s2406 + $0x24] sm:%s2398] %v2425
                  %v2427 = vld [vmem:[%s2405 + $0x28] sm:%s2398]
                  %2428 = vst [vmem:[%s2406 + $0x28] sm:%s2398] %v2427
                  %v2429 = vld [vmem:[%s2405 + $0x2c] sm:%s2398]
                  %2430 = vst [vmem:[%s2406 + $0x2c] sm:%s2398] %v2429
                  %v2431 = vld [vmem:[%s2405 + $0x30] sm:%s2398]
                  %2432 = vst [vmem:[%s2406 + $0x30] sm:%s2398] %v2431
                  %v2433 = vld [vmem:[%s2405 + $0x34] sm:%s2398]
                  %2434 = vst [vmem:[%s2406 + $0x34] sm:%s2398] %v2433
                  %v2435 = vld [vmem:[%s2405 + $0x38] sm:%s2398]
                  %2436 = vst [vmem:[%s2406 + $0x38] sm:%s2398] %v2435
                  %v2437 = vld [vmem:[%s2405 + $0x3c] sm:%s2398]
                  %2438 = vst [vmem:[%s2406 + $0x3c] sm:%s2398] %v2437
                  %v2439 = vld [vmem:[%s2405 + $0x40] sm:%s2398]
                  %2440 = vst [vmem:[%s2406 + $0x80] sm:%s2398] %v2439
                  %v2441 = vld [vmem:[%s2405 + $0x44] sm:%s2398]
                  %2442 = vst [vmem:[%s2406 + $0x84] sm:%s2398] %v2441
                  %v2443 = vld [vmem:[%s2405 + $0x48] sm:%s2398]
                  %2444 = vst [vmem:[%s2406 + $0x88] sm:%s2398] %v2443
                  %v2445 = vld [vmem:[%s2405 + $0x4c] sm:%s2398]
                  %2446 = vst [vmem:[%s2406 + $0x8c] sm:%s2398] %v2445
                  %v2447 = vld [vmem:[%s2405 + $0x50] sm:%s2398]
                  %2448 = vst [vmem:[%s2406 + $0x90] sm:%s2398] %v2447
                  %v2449 = vld [vmem:[%s2405 + $0x54] sm:%s2398]
                  %2450 = vst [vmem:[%s2406 + $0x94] sm:%s2398] %v2449
                  %v2451 = vld [vmem:[%s2405 + $0x58] sm:%s2398]
                  %2452 = vst [vmem:[%s2406 + $0x98] sm:%s2398] %v2451
                  %v2453 = vld [vmem:[%s2405 + $0x5c] sm:%s2398]
                  %2454 = vst [vmem:[%s2406 + $0x9c] sm:%s2398] %v2453
                  %v2455 = vld [vmem:[%s2405 + $0x60] sm:%s2398]
                  %2456 = vst [vmem:[%s2406 + $0xa0] sm:%s2398] %v2455
                  %v2457 = vld [vmem:[%s2405 + $0x64] sm:%s2398]
                  %2458 = vst [vmem:[%s2406 + $0xa4] sm:%s2398] %v2457
                  %v2459 = vld [vmem:[%s2405 + $0x68] sm:%s2398]
                  %2460 = vst [vmem:[%s2406 + $0xa8] sm:%s2398] %v2459
                  %v2461 = vld [vmem:[%s2405 + $0x6c] sm:%s2398]
                  %2462 = vst [vmem:[%s2406 + $0xac] sm:%s2398] %v2461
                  %v2463 = vld [vmem:[%s2405 + $0x70] sm:%s2398]
                  %2464 = vst [vmem:[%s2406 + $0xb0] sm:%s2398] %v2463
                  %v2465 = vld [vmem:[%s2405 + $0x74] sm:%s2398]
                  %2466 = vst [vmem:[%s2406 + $0xb4] sm:%s2398] %v2465
                  %v2467 = vld [vmem:[%s2405 + $0x78] sm:%s2398]
                  %2468 = vst [vmem:[%s2406 + $0xb8] sm:%s2398] %v2467
                  %v2469 = vld [vmem:[%s2405 + $0x7c] sm:%s2398]
                  %2470 = vst [vmem:[%s2406 + $0xbc] sm:%s2398] %v2469
                  %v2471 = vld [vmem:[%s2405 + $0x80] sm:%s2398]
                  %2472 = vst [vmem:[%s2406 + $0x100] sm:%s2398] %v2471
                  %v2473 = vld [vmem:[%s2405 + $0x84] sm:%s2398]
                  %2474 = vst [vmem:[%s2406 + $0x104] sm:%s2398] %v2473
                  %v2475 = vld [vmem:[%s2405 + $0x88] sm:%s2398]
                  %2476 = vst [vmem:[%s2406 + $0x108] sm:%s2398] %v2475
                  %v2477 = vld [vmem:[%s2405 + $0x8c] sm:%s2398]
                  %2478 = vst [vmem:[%s2406 + $0x10c] sm:%s2398] %v2477
                  %v2479 = vld [vmem:[%s2405 + $0x90] sm:%s2398]
                  %2480 = vst [vmem:[%s2406 + $0x110] sm:%s2398] %v2479
                  %v2481 = vld [vmem:[%s2405 + $0x94] sm:%s2398]
                  %2482 = vst [vmem:[%s2406 + $0x114] sm:%s2398] %v2481
                  %v2483 = vld [vmem:[%s2405 + $0x98] sm:%s2398]
                  %2484 = vst [vmem:[%s2406 + $0x118] sm:%s2398] %v2483
                  %v2485 = vld [vmem:[%s2405 + $0x9c] sm:%s2398]
                  %2486 = vst [vmem:[%s2406 + $0x11c] sm:%s2398] %v2485
                  %v2487 = vld [vmem:[%s2405 + $0xa0] sm:%s2398]
                  %2488 = vst [vmem:[%s2406 + $0x120] sm:%s2398] %v2487
                  %v2489 = vld [vmem:[%s2405 + $0xa4] sm:%s2398]
                  %2490 = vst [vmem:[%s2406 + $0x124] sm:%s2398] %v2489
                  %v2491 = vld [vmem:[%s2405 + $0xa8] sm:%s2398]
                  %2492 = vst [vmem:[%s2406 + $0x128] sm:%s2398] %v2491
                  %v2493 = vld [vmem:[%s2405 + $0xac] sm:%s2398]
                  %2494 = vst [vmem:[%s2406 + $0x12c] sm:%s2398] %v2493
                  %v2495 = vld [vmem:[%s2405 + $0xb0] sm:%s2398]
                  %2496 = vst [vmem:[%s2406 + $0x130] sm:%s2398] %v2495
                  %v2497 = vld [vmem:[%s2405 + $0xb4] sm:%s2398]
                  %2498 = vst [vmem:[%s2406 + $0x134] sm:%s2398] %v2497
                  %v2499 = vld [vmem:[%s2405 + $0xb8] sm:%s2398]
                  %2500 = vst [vmem:[%s2406 + $0x138] sm:%s2398] %v2499
                  %v2501 = vld [vmem:[%s2405 + $0xbc] sm:%s2398]
                  %2502 = vst [vmem:[%s2406 + $0x13c] sm:%s2398] %v2501
                  %v2503 = vld [vmem:[%s2405 + $0xc0] sm:%s2398]
                  %2504 = vst [vmem:[%s2406 + $0x180] sm:%s2398] %v2503
                  %v2505 = vld [vmem:[%s2405 + $0xc4] sm:%s2398]
                  %2506 = vst [vmem:[%s2406 + $0x184] sm:%s2398] %v2505
                  %v2507 = vld [vmem:[%s2405 + $0xc8] sm:%s2398]
                  %2508 = vst [vmem:[%s2406 + $0x188] sm:%s2398] %v2507
                  %v2509 = vld [vmem:[%s2405 + $0xcc] sm:%s2398]
                  %2510 = vst [vmem:[%s2406 + $0x18c] sm:%s2398] %v2509
                  %v2511 = vld [vmem:[%s2405 + $0xd0] sm:%s2398]
                  %2512 = vst [vmem:[%s2406 + $0x190] sm:%s2398] %v2511
                  %v2513 = vld [vmem:[%s2405 + $0xd4] sm:%s2398]
                  %2514 = vst [vmem:[%s2406 + $0x194] sm:%s2398] %v2513
                  %v2515 = vld [vmem:[%s2405 + $0xd8] sm:%s2398]
                  %2516 = vst [vmem:[%s2406 + $0x198] sm:%s2398] %v2515
                  %v2517 = vld [vmem:[%s2405 + $0xdc] sm:%s2398]
                  %2518 = vst [vmem:[%s2406 + $0x19c] sm:%s2398] %v2517
                  %v2519 = vld [vmem:[%s2405 + $0xe0] sm:%s2398]
                  %2520 = vst [vmem:[%s2406 + $0x1a0] sm:%s2398] %v2519
                  %v2521 = vld [vmem:[%s2405 + $0xe4] sm:%s2398]
                  %2522 = vst [vmem:[%s2406 + $0x1a4] sm:%s2398] %v2521
                  %v2523 = vld [vmem:[%s2405 + $0xe8] sm:%s2398]
                  %2524 = vst [vmem:[%s2406 + $0x1a8] sm:%s2398] %v2523
                  %v2525 = vld [vmem:[%s2405 + $0xec] sm:%s2398]
                  %2526 = vst [vmem:[%s2406 + $0x1ac] sm:%s2398] %v2525
                  %v2527 = vld [vmem:[%s2405 + $0xf0] sm:%s2398]
                  %2528 = vst [vmem:[%s2406 + $0x1b0] sm:%s2398] %v2527
                  %v2529 = vld [vmem:[%s2405 + $0xf4] sm:%s2398]
                  %2530 = vst [vmem:[%s2406 + $0x1b4] sm:%s2398] %v2529
                  %v2531 = vld [vmem:[%s2405 + $0xf8] sm:%s2398]
                  %2532 = vst [vmem:[%s2406 + $0x1b8] sm:%s2398] %v2531
                  %v2533 = vld [vmem:[%s2405 + $0xfc] sm:%s2398]
                  %2534 = vst [vmem:[%s2406 + $0x1bc] sm:%s2398] %v2533
                $region83: #{tpu_custom_call.1} parent=70 // loop_footer
                  %s2404 = sadd.s32 1, %s2400
                $region84: #{tpu_custom_call.1} parent=70 // loop_footer_branch
                  %2399 = sbr.rel target = $region80
                $region85: #{tpu_custom_call.1} parent=70 // loop_exit
                  _
              $region71: #{tpu_custom_call.1} parent=55 // pred_fallthru
                _
            $region56: #{tpu_custom_call.1} parent=51 // pred_fallthru
              _
            // Predicated region
            $region57: #{tpu_custom_call.1} parent=51 // pred_check
              _
            $region58: #{tpu_custom_call.1} parent=51 // pred_check_branch
              %2248 = sbr.rel (0) target = $region60
            $region59: #{tpu_custom_call.1} parent=51 // pred_region
              %s2250 = ssub.s32 16, 1
              loop: start=0, step=1, limit=1
              $region61: #{tpu_custom_call.1} parent=59 // loop_pre_header
                _
              $region62: #{tpu_custom_call.1} parent=59 // loop_header
                %s2252 = sphi 0, %s2256
                %p2253 = scmp.ge.s32.totalorder %s2252, 1
                %s2257 = sphi %s2226, %s2226
                %s2258 = sphi %s2242, %s2242
              $region63: #{tpu_custom_call.1} parent=59 // loop_header_branch
                %2255 = sbr.rel (%p2253) target = $region67
              $region64: #{tpu_custom_call.1} parent=59 // loop_body
                %v2259 = vld [vmem:[%s2257] sm:%s2250]
                %2260 = vst [vmem:[%s2258] sm:%s2250] %v2259
                %v2261 = vld [vmem:[%s2257 + $0x4] sm:%s2250]
                %2262 = vst [vmem:[%s2258 + $0x4] sm:%s2250] %v2261
                %v2263 = vld [vmem:[%s2257 + $0x8] sm:%s2250]
                %2264 = vst [vmem:[%s2258 + $0x8] sm:%s2250] %v2263
                %v2265 = vld [vmem:[%s2257 + $0xc] sm:%s2250]
                %2266 = vst [vmem:[%s2258 + $0xc] sm:%s2250] %v2265
                %v2267 = vld [vmem:[%s2257 + $0x10] sm:%s2250]
                %2268 = vst [vmem:[%s2258 + $0x10] sm:%s2250] %v2267
                %v2269 = vld [vmem:[%s2257 + $0x14] sm:%s2250]
                %2270 = vst [vmem:[%s2258 + $0x14] sm:%s2250] %v2269
                %v2271 = vld [vmem:[%s2257 + $0x18] sm:%s2250]
                %2272 = vst [vmem:[%s2258 + $0x18] sm:%s2250] %v2271
                %v2273 = vld [vmem:[%s2257 + $0x1c] sm:%s2250]
                %2274 = vst [vmem:[%s2258 + $0x1c] sm:%s2250] %v2273
                %v2275 = vld [vmem:[%s2257 + $0x20] sm:%s2250]
                %2276 = vst [vmem:[%s2258 + $0x20] sm:%s2250] %v2275
                %v2277 = vld [vmem:[%s2257 + $0x24] sm:%s2250]
                %2278 = vst [vmem:[%s2258 + $0x24] sm:%s2250] %v2277
                %v2279 = vld [vmem:[%s2257 + $0x28] sm:%s2250]
                %2280 = vst [vmem:[%s2258 + $0x28] sm:%s2250] %v2279
                %v2281 = vld [vmem:[%s2257 + $0x2c] sm:%s2250]
                %2282 = vst [vmem:[%s2258 + $0x2c] sm:%s2250] %v2281
                %v2283 = vld [vmem:[%s2257 + $0x30] sm:%s2250]
                %2284 = vst [vmem:[%s2258 + $0x30] sm:%s2250] %v2283
                %v2285 = vld [vmem:[%s2257 + $0x34] sm:%s2250]
                %2286 = vst [vmem:[%s2258 + $0x34] sm:%s2250] %v2285
                %v2287 = vld [vmem:[%s2257 + $0x38] sm:%s2250]
                %2288 = vst [vmem:[%s2258 + $0x38] sm:%s2250] %v2287
                %v2289 = vld [vmem:[%s2257 + $0x3c] sm:%s2250]
                %2290 = vst [vmem:[%s2258 + $0x3c] sm:%s2250] %v2289
                %v2291 = vld [vmem:[%s2257 + $0x40] sm:%s2250]
                %2292 = vst [vmem:[%s2258 + $0x80] sm:%s2250] %v2291
                %v2293 = vld [vmem:[%s2257 + $0x44] sm:%s2250]
                %2294 = vst [vmem:[%s2258 + $0x84] sm:%s2250] %v2293
                %v2295 = vld [vmem:[%s2257 + $0x48] sm:%s2250]
                %2296 = vst [vmem:[%s2258 + $0x88] sm:%s2250] %v2295
                %v2297 = vld [vmem:[%s2257 + $0x4c] sm:%s2250]
                %2298 = vst [vmem:[%s2258 + $0x8c] sm:%s2250] %v2297
                %v2299 = vld [vmem:[%s2257 + $0x50] sm:%s2250]
                %2300 = vst [vmem:[%s2258 + $0x90] sm:%s2250] %v2299
                %v2301 = vld [vmem:[%s2257 + $0x54] sm:%s2250]
                %2302 = vst [vmem:[%s2258 + $0x94] sm:%s2250] %v2301
                %v2303 = vld [vmem:[%s2257 + $0x58] sm:%s2250]
                %2304 = vst [vmem:[%s2258 + $0x98] sm:%s2250] %v2303
                %v2305 = vld [vmem:[%s2257 + $0x5c] sm:%s2250]
                %2306 = vst [vmem:[%s2258 + $0x9c] sm:%s2250] %v2305
                %v2307 = vld [vmem:[%s2257 + $0x60] sm:%s2250]
                %2308 = vst [vmem:[%s2258 + $0xa0] sm:%s2250] %v2307
                %v2309 = vld [vmem:[%s2257 + $0x64] sm:%s2250]
                %2310 = vst [vmem:[%s2258 + $0xa4] sm:%s2250] %v2309
                %v2311 = vld [vmem:[%s2257 + $0x68] sm:%s2250]
                %2312 = vst [vmem:[%s2258 + $0xa8] sm:%s2250] %v2311
                %v2313 = vld [vmem:[%s2257 + $0x6c] sm:%s2250]
                %2314 = vst [vmem:[%s2258 + $0xac] sm:%s2250] %v2313
                %v2315 = vld [vmem:[%s2257 + $0x70] sm:%s2250]
                %2316 = vst [vmem:[%s2258 + $0xb0] sm:%s2250] %v2315
                %v2317 = vld [vmem:[%s2257 + $0x74] sm:%s2250]
                %2318 = vst [vmem:[%s2258 + $0xb4] sm:%s2250] %v2317
                %v2319 = vld [vmem:[%s2257 + $0x78] sm:%s2250]
                %2320 = vst [vmem:[%s2258 + $0xb8] sm:%s2250] %v2319
                %v2321 = vld [vmem:[%s2257 + $0x7c] sm:%s2250]
                %2322 = vst [vmem:[%s2258 + $0xbc] sm:%s2250] %v2321
                %v2323 = vld [vmem:[%s2257 + $0x80] sm:%s2250]
                %2324 = vst [vmem:[%s2258 + $0x100] sm:%s2250] %v2323
                %v2325 = vld [vmem:[%s2257 + $0x84] sm:%s2250]
                %2326 = vst [vmem:[%s2258 + $0x104] sm:%s2250] %v2325
                %v2327 = vld [vmem:[%s2257 + $0x88] sm:%s2250]
                %2328 = vst [vmem:[%s2258 + $0x108] sm:%s2250] %v2327
                %v2329 = vld [vmem:[%s2257 + $0x8c] sm:%s2250]
                %2330 = vst [vmem:[%s2258 + $0x10c] sm:%s2250] %v2329
                %v2331 = vld [vmem:[%s2257 + $0x90] sm:%s2250]
                %2332 = vst [vmem:[%s2258 + $0x110] sm:%s2250] %v2331
                %v2333 = vld [vmem:[%s2257 + $0x94] sm:%s2250]
                %2334 = vst [vmem:[%s2258 + $0x114] sm:%s2250] %v2333
                %v2335 = vld [vmem:[%s2257 + $0x98] sm:%s2250]
                %2336 = vst [vmem:[%s2258 + $0x118] sm:%s2250] %v2335
                %v2337 = vld [vmem:[%s2257 + $0x9c] sm:%s2250]
                %2338 = vst [vmem:[%s2258 + $0x11c] sm:%s2250] %v2337
                %v2339 = vld [vmem:[%s2257 + $0xa0] sm:%s2250]
                %2340 = vst [vmem:[%s2258 + $0x120] sm:%s2250] %v2339
                %v2341 = vld [vmem:[%s2257 + $0xa4] sm:%s2250]
                %2342 = vst [vmem:[%s2258 + $0x124] sm:%s2250] %v2341
                %v2343 = vld [vmem:[%s2257 + $0xa8] sm:%s2250]
                %2344 = vst [vmem:[%s2258 + $0x128] sm:%s2250] %v2343
                %v2345 = vld [vmem:[%s2257 + $0xac] sm:%s2250]
                %2346 = vst [vmem:[%s2258 + $0x12c] sm:%s2250] %v2345
                %v2347 = vld [vmem:[%s2257 + $0xb0] sm:%s2250]
                %2348 = vst [vmem:[%s2258 + $0x130] sm:%s2250] %v2347
                %v2349 = vld [vmem:[%s2257 + $0xb4] sm:%s2250]
                %2350 = vst [vmem:[%s2258 + $0x134] sm:%s2250] %v2349
                %v2351 = vld [vmem:[%s2257 + $0xb8] sm:%s2250]
                %2352 = vst [vmem:[%s2258 + $0x138] sm:%s2250] %v2351
                %v2353 = vld [vmem:[%s2257 + $0xbc] sm:%s2250]
                %2354 = vst [vmem:[%s2258 + $0x13c] sm:%s2250] %v2353
                %v2355 = vld [vmem:[%s2257 + $0xc0] sm:%s2250]
                %2356 = vst [vmem:[%s2258 + $0x180] sm:%s2250] %v2355
                %v2357 = vld [vmem:[%s2257 + $0xc4] sm:%s2250]
                %2358 = vst [vmem:[%s2258 + $0x184] sm:%s2250] %v2357
                %v2359 = vld [vmem:[%s2257 + $0xc8] sm:%s2250]
                %2360 = vst [vmem:[%s2258 + $0x188] sm:%s2250] %v2359
                %v2361 = vld [vmem:[%s2257 + $0xcc] sm:%s2250]
                %2362 = vst [vmem:[%s2258 + $0x18c] sm:%s2250] %v2361
                %v2363 = vld [vmem:[%s2257 + $0xd0] sm:%s2250]
                %2364 = vst [vmem:[%s2258 + $0x190] sm:%s2250] %v2363
                %v2365 = vld [vmem:[%s2257 + $0xd4] sm:%s2250]
                %2366 = vst [vmem:[%s2258 + $0x194] sm:%s2250] %v2365
                %v2367 = vld [vmem:[%s2257 + $0xd8] sm:%s2250]
                %2368 = vst [vmem:[%s2258 + $0x198] sm:%s2250] %v2367
                %v2369 = vld [vmem:[%s2257 + $0xdc] sm:%s2250]
                %2370 = vst [vmem:[%s2258 + $0x19c] sm:%s2250] %v2369
                %v2371 = vld [vmem:[%s2257 + $0xe0] sm:%s2250]
                %2372 = vst [vmem:[%s2258 + $0x1a0] sm:%s2250] %v2371
                %v2373 = vld [vmem:[%s2257 + $0xe4] sm:%s2250]
                %2374 = vst [vmem:[%s2258 + $0x1a4] sm:%s2250] %v2373
                %v2375 = vld [vmem:[%s2257 + $0xe8] sm:%s2250]
                %2376 = vst [vmem:[%s2258 + $0x1a8] sm:%s2250] %v2375
                %v2377 = vld [vmem:[%s2257 + $0xec] sm:%s2250]
                %2378 = vst [vmem:[%s2258 + $0x1ac] sm:%s2250] %v2377
                %v2379 = vld [vmem:[%s2257 + $0xf0] sm:%s2250]
                %2380 = vst [vmem:[%s2258 + $0x1b0] sm:%s2250] %v2379
                %v2381 = vld [vmem:[%s2257 + $0xf4] sm:%s2250]
                %2382 = vst [vmem:[%s2258 + $0x1b4] sm:%s2250] %v2381
                %v2383 = vld [vmem:[%s2257 + $0xf8] sm:%s2250]
                %2384 = vst [vmem:[%s2258 + $0x1b8] sm:%s2250] %v2383
                %v2385 = vld [vmem:[%s2257 + $0xfc] sm:%s2250]
                %2386 = vst [vmem:[%s2258 + $0x1bc] sm:%s2250] %v2385
              $region65: #{tpu_custom_call.1} parent=59 // loop_footer
                %s2256 = sadd.s32 1, %s2252
              $region66: #{tpu_custom_call.1} parent=59 // loop_footer_branch
                %2251 = sbr.rel target = $region62
              $region67: #{tpu_custom_call.1} parent=59 // loop_exit
                _
            $region60: #{tpu_custom_call.1} parent=51 // pred_fallthru
              _
          $region52: #{tpu_custom_call.1} parent=47 // pred_fallthru
            _
          %2535 = vnop
        $region48: #{tpu_custom_call.1} parent=31 // pred_fallthru
          _
        // Predicated region
        $region86: #{tpu_custom_call.1} parent=31 // pred_check
          %p2536 = pneg %p151
        $region87: #{tpu_custom_call.1} parent=31 // pred_check_branch
          %2538 = sbr.rel (%p2536) target = $region89
        $region88: #{tpu_custom_call.1} parent=31 // pred_region
          %s2539 = smul.u32 16, %s26
          %s2540 = smul.addr %s25, 128
          %s2541 = sadd.s32 %s2539, %s2540
          %s2542 = smul.addr %s2541, 4
          %s2543 = scalar_lea.vmem %s4, %s2542
          // Predicated region
          $region90: #{tpu_custom_call.1} parent=88 // pred_check
            _
          $region91: #{tpu_custom_call.1} parent=88 // pred_check_branch
            %2545 = sbr.rel (0) target = $region93
          $region92: #{tpu_custom_call.1} parent=88 // pred_region
            // Predicated region
            $region94: #{tpu_custom_call.1} parent=92 // pred_check
              _
            $region95: #{tpu_custom_call.1} parent=92 // pred_check_branch
              %2547 = sbr.rel target = $region97
            $region96: #{tpu_custom_call.1} parent=92 // pred_region
              // Predicated region
              $region109: #{tpu_custom_call.1} parent=96 // pred_check
                _
              $region110: #{tpu_custom_call.1} parent=96 // pred_check_branch
                %2689 = sbr.rel (0) target = $region112
              $region111: #{tpu_custom_call.1} parent=96 // pred_region
                loop: start=0, step=1, limit=1
                $region113: #{tpu_custom_call.1} parent=111 // loop_pre_header
                  _
                $region114: #{tpu_custom_call.1} parent=111 // loop_header
                  %s2691 = sphi 0, %s2695
                  %p2692 = scmp.ge.s32.totalorder %s2691, 1
                  %s2696 = sphi %s2230, %s2230
                  %s2697 = sphi %s2543, %s2543
                $region115: #{tpu_custom_call.1} parent=111 // loop_header_branch
                  %2694 = sbr.rel (%p2692) target = $region119
                $region116: #{tpu_custom_call.1} parent=111 // loop_body
                  _
                $region117: #{tpu_custom_call.1} parent=111 // loop_footer
                  %s2695 = sadd.s32 1, %s2691
                $region118: #{tpu_custom_call.1} parent=111 // loop_footer_branch
                  %2690 = sbr.rel target = $region114
                $region119: #{tpu_custom_call.1} parent=111 // loop_exit
                  _
                %s2699 = ssub.s32 16, 1
                loop: start=0, step=1, limit=1
                $region120: #{tpu_custom_call.1} parent=111 // loop_pre_header
                  _
                $region121: #{tpu_custom_call.1} parent=111 // loop_header
                  %s2701 = sphi 0, %s2705
                  %p2702 = scmp.ge.s32.totalorder %s2701, 1
                  %s2706 = sphi %s2230, %s2230
                  %s2707 = sphi %s2543, %s2543
                $region122: #{tpu_custom_call.1} parent=111 // loop_header_branch
                  %2704 = sbr.rel (%p2702) target = $region126
                $region123: #{tpu_custom_call.1} parent=111 // loop_body
                  %v2708 = vld [vmem:[%s2706] sm:%s2699]
                  %2709 = vst [vmem:[%s2707] sm:%s2699] %v2708
                  %v2710 = vld [vmem:[%s2706 + $0x4] sm:%s2699]
                  %2711 = vst [vmem:[%s2707 + $0x4] sm:%s2699] %v2710
                  %v2712 = vld [vmem:[%s2706 + $0x8] sm:%s2699]
                  %2713 = vst [vmem:[%s2707 + $0x8] sm:%s2699] %v2712
                  %v2714 = vld [vmem:[%s2706 + $0xc] sm:%s2699]
                  %2715 = vst [vmem:[%s2707 + $0xc] sm:%s2699] %v2714
                  %v2716 = vld [vmem:[%s2706 + $0x10] sm:%s2699]
                  %2717 = vst [vmem:[%s2707 + $0x10] sm:%s2699] %v2716
                  %v2718 = vld [vmem:[%s2706 + $0x14] sm:%s2699]
                  %2719 = vst [vmem:[%s2707 + $0x14] sm:%s2699] %v2718
                  %v2720 = vld [vmem:[%s2706 + $0x18] sm:%s2699]
                  %2721 = vst [vmem:[%s2707 + $0x18] sm:%s2699] %v2720
                  %v2722 = vld [vmem:[%s2706 + $0x1c] sm:%s2699]
                  %2723 = vst [vmem:[%s2707 + $0x1c] sm:%s2699] %v2722
                  %v2724 = vld [vmem:[%s2706 + $0x20] sm:%s2699]
                  %2725 = vst [vmem:[%s2707 + $0x20] sm:%s2699] %v2724
                  %v2726 = vld [vmem:[%s2706 + $0x24] sm:%s2699]
                  %2727 = vst [vmem:[%s2707 + $0x24] sm:%s2699] %v2726
                  %v2728 = vld [vmem:[%s2706 + $0x28] sm:%s2699]
                  %2729 = vst [vmem:[%s2707 + $0x28] sm:%s2699] %v2728
                  %v2730 = vld [vmem:[%s2706 + $0x2c] sm:%s2699]
                  %2731 = vst [vmem:[%s2707 + $0x2c] sm:%s2699] %v2730
                  %v2732 = vld [vmem:[%s2706 + $0x30] sm:%s2699]
                  %2733 = vst [vmem:[%s2707 + $0x30] sm:%s2699] %v2732
                  %v2734 = vld [vmem:[%s2706 + $0x34] sm:%s2699]
                  %2735 = vst [vmem:[%s2707 + $0x34] sm:%s2699] %v2734
                  %v2736 = vld [vmem:[%s2706 + $0x38] sm:%s2699]
                  %2737 = vst [vmem:[%s2707 + $0x38] sm:%s2699] %v2736
                  %v2738 = vld [vmem:[%s2706 + $0x3c] sm:%s2699]
                  %2739 = vst [vmem:[%s2707 + $0x3c] sm:%s2699] %v2738
                  %v2740 = vld [vmem:[%s2706 + $0x40] sm:%s2699]
                  %2741 = vst [vmem:[%s2707 + $0x80] sm:%s2699] %v2740
                  %v2742 = vld [vmem:[%s2706 + $0x44] sm:%s2699]
                  %2743 = vst [vmem:[%s2707 + $0x84] sm:%s2699] %v2742
                  %v2744 = vld [vmem:[%s2706 + $0x48] sm:%s2699]
                  %2745 = vst [vmem:[%s2707 + $0x88] sm:%s2699] %v2744
                  %v2746 = vld [vmem:[%s2706 + $0x4c] sm:%s2699]
                  %2747 = vst [vmem:[%s2707 + $0x8c] sm:%s2699] %v2746
                  %v2748 = vld [vmem:[%s2706 + $0x50] sm:%s2699]
                  %2749 = vst [vmem:[%s2707 + $0x90] sm:%s2699] %v2748
                  %v2750 = vld [vmem:[%s2706 + $0x54] sm:%s2699]
                  %2751 = vst [vmem:[%s2707 + $0x94] sm:%s2699] %v2750
                  %v2752 = vld [vmem:[%s2706 + $0x58] sm:%s2699]
                  %2753 = vst [vmem:[%s2707 + $0x98] sm:%s2699] %v2752
                  %v2754 = vld [vmem:[%s2706 + $0x5c] sm:%s2699]
                  %2755 = vst [vmem:[%s2707 + $0x9c] sm:%s2699] %v2754
                  %v2756 = vld [vmem:[%s2706 + $0x60] sm:%s2699]
                  %2757 = vst [vmem:[%s2707 + $0xa0] sm:%s2699] %v2756
                  %v2758 = vld [vmem:[%s2706 + $0x64] sm:%s2699]
                  %2759 = vst [vmem:[%s2707 + $0xa4] sm:%s2699] %v2758
                  %v2760 = vld [vmem:[%s2706 + $0x68] sm:%s2699]
                  %2761 = vst [vmem:[%s2707 + $0xa8] sm:%s2699] %v2760
                  %v2762 = vld [vmem:[%s2706 + $0x6c] sm:%s2699]
                  %2763 = vst [vmem:[%s2707 + $0xac] sm:%s2699] %v2762
                  %v2764 = vld [vmem:[%s2706 + $0x70] sm:%s2699]
                  %2765 = vst [vmem:[%s2707 + $0xb0] sm:%s2699] %v2764
                  %v2766 = vld [vmem:[%s2706 + $0x74] sm:%s2699]
                  %2767 = vst [vmem:[%s2707 + $0xb4] sm:%s2699] %v2766
                  %v2768 = vld [vmem:[%s2706 + $0x78] sm:%s2699]
                  %2769 = vst [vmem:[%s2707 + $0xb8] sm:%s2699] %v2768
                  %v2770 = vld [vmem:[%s2706 + $0x7c] sm:%s2699]
                  %2771 = vst [vmem:[%s2707 + $0xbc] sm:%s2699] %v2770
                  %v2772 = vld [vmem:[%s2706 + $0x80] sm:%s2699]
                  %2773 = vst [vmem:[%s2707 + $0x100] sm:%s2699] %v2772
                  %v2774 = vld [vmem:[%s2706 + $0x84] sm:%s2699]
                  %2775 = vst [vmem:[%s2707 + $0x104] sm:%s2699] %v2774
                  %v2776 = vld [vmem:[%s2706 + $0x88] sm:%s2699]
                  %2777 = vst [vmem:[%s2707 + $0x108] sm:%s2699] %v2776
                  %v2778 = vld [vmem:[%s2706 + $0x8c] sm:%s2699]
                  %2779 = vst [vmem:[%s2707 + $0x10c] sm:%s2699] %v2778
                  %v2780 = vld [vmem:[%s2706 + $0x90] sm:%s2699]
                  %2781 = vst [vmem:[%s2707 + $0x110] sm:%s2699] %v2780
                  %v2782 = vld [vmem:[%s2706 + $0x94] sm:%s2699]
                  %2783 = vst [vmem:[%s2707 + $0x114] sm:%s2699] %v2782
                  %v2784 = vld [vmem:[%s2706 + $0x98] sm:%s2699]
                  %2785 = vst [vmem:[%s2707 + $0x118] sm:%s2699] %v2784
                  %v2786 = vld [vmem:[%s2706 + $0x9c] sm:%s2699]
                  %2787 = vst [vmem:[%s2707 + $0x11c] sm:%s2699] %v2786
                  %v2788 = vld [vmem:[%s2706 + $0xa0] sm:%s2699]
                  %2789 = vst [vmem:[%s2707 + $0x120] sm:%s2699] %v2788
                  %v2790 = vld [vmem:[%s2706 + $0xa4] sm:%s2699]
                  %2791 = vst [vmem:[%s2707 + $0x124] sm:%s2699] %v2790
                  %v2792 = vld [vmem:[%s2706 + $0xa8] sm:%s2699]
                  %2793 = vst [vmem:[%s2707 + $0x128] sm:%s2699] %v2792
                  %v2794 = vld [vmem:[%s2706 + $0xac] sm:%s2699]
                  %2795 = vst [vmem:[%s2707 + $0x12c] sm:%s2699] %v2794
                  %v2796 = vld [vmem:[%s2706 + $0xb0] sm:%s2699]
                  %2797 = vst [vmem:[%s2707 + $0x130] sm:%s2699] %v2796
                  %v2798 = vld [vmem:[%s2706 + $0xb4] sm:%s2699]
                  %2799 = vst [vmem:[%s2707 + $0x134] sm:%s2699] %v2798
                  %v2800 = vld [vmem:[%s2706 + $0xb8] sm:%s2699]
                  %2801 = vst [vmem:[%s2707 + $0x138] sm:%s2699] %v2800
                  %v2802 = vld [vmem:[%s2706 + $0xbc] sm:%s2699]
                  %2803 = vst [vmem:[%s2707 + $0x13c] sm:%s2699] %v2802
                  %v2804 = vld [vmem:[%s2706 + $0xc0] sm:%s2699]
                  %2805 = vst [vmem:[%s2707 + $0x180] sm:%s2699] %v2804
                  %v2806 = vld [vmem:[%s2706 + $0xc4] sm:%s2699]
                  %2807 = vst [vmem:[%s2707 + $0x184] sm:%s2699] %v2806
                  %v2808 = vld [vmem:[%s2706 + $0xc8] sm:%s2699]
                  %2809 = vst [vmem:[%s2707 + $0x188] sm:%s2699] %v2808
                  %v2810 = vld [vmem:[%s2706 + $0xcc] sm:%s2699]
                  %2811 = vst [vmem:[%s2707 + $0x18c] sm:%s2699] %v2810
                  %v2812 = vld [vmem:[%s2706 + $0xd0] sm:%s2699]
                  %2813 = vst [vmem:[%s2707 + $0x190] sm:%s2699] %v2812
                  %v2814 = vld [vmem:[%s2706 + $0xd4] sm:%s2699]
                  %2815 = vst [vmem:[%s2707 + $0x194] sm:%s2699] %v2814
                  %v2816 = vld [vmem:[%s2706 + $0xd8] sm:%s2699]
                  %2817 = vst [vmem:[%s2707 + $0x198] sm:%s2699] %v2816
                  %v2818 = vld [vmem:[%s2706 + $0xdc] sm:%s2699]
                  %2819 = vst [vmem:[%s2707 + $0x19c] sm:%s2699] %v2818
                  %v2820 = vld [vmem:[%s2706 + $0xe0] sm:%s2699]
                  %2821 = vst [vmem:[%s2707 + $0x1a0] sm:%s2699] %v2820
                  %v2822 = vld [vmem:[%s2706 + $0xe4] sm:%s2699]
                  %2823 = vst [vmem:[%s2707 + $0x1a4] sm:%s2699] %v2822
                  %v2824 = vld [vmem:[%s2706 + $0xe8] sm:%s2699]
                  %2825 = vst [vmem:[%s2707 + $0x1a8] sm:%s2699] %v2824
                  %v2826 = vld [vmem:[%s2706 + $0xec] sm:%s2699]
                  %2827 = vst [vmem:[%s2707 + $0x1ac] sm:%s2699] %v2826
                  %v2828 = vld [vmem:[%s2706 + $0xf0] sm:%s2699]
                  %2829 = vst [vmem:[%s2707 + $0x1b0] sm:%s2699] %v2828
                  %v2830 = vld [vmem:[%s2706 + $0xf4] sm:%s2699]
                  %2831 = vst [vmem:[%s2707 + $0x1b4] sm:%s2699] %v2830
                  %v2832 = vld [vmem:[%s2706 + $0xf8] sm:%s2699]
                  %2833 = vst [vmem:[%s2707 + $0x1b8] sm:%s2699] %v2832
                  %v2834 = vld [vmem:[%s2706 + $0xfc] sm:%s2699]
                  %2835 = vst [vmem:[%s2707 + $0x1bc] sm:%s2699] %v2834
                $region124: #{tpu_custom_call.1} parent=111 // loop_footer
                  %s2705 = sadd.s32 1, %s2701
                $region125: #{tpu_custom_call.1} parent=111 // loop_footer_branch
                  %2700 = sbr.rel target = $region121
                $region126: #{tpu_custom_call.1} parent=111 // loop_exit
                  _
              $region112: #{tpu_custom_call.1} parent=96 // pred_fallthru
                _
            $region97: #{tpu_custom_call.1} parent=92 // pred_fallthru
              _
            // Predicated region
            $region98: #{tpu_custom_call.1} parent=92 // pred_check
              _
            $region99: #{tpu_custom_call.1} parent=92 // pred_check_branch
              %2549 = sbr.rel (0) target = $region101
            $region100: #{tpu_custom_call.1} parent=92 // pred_region
              %s2551 = ssub.s32 16, 1
              loop: start=0, step=1, limit=1
              $region102: #{tpu_custom_call.1} parent=100 // loop_pre_header
                _
              $region103: #{tpu_custom_call.1} parent=100 // loop_header
                %s2553 = sphi 0, %s2557
                %p2554 = scmp.ge.s32.totalorder %s2553, 1
                %s2558 = sphi %s2230, %s2230
                %s2559 = sphi %s2543, %s2543
              $region104: #{tpu_custom_call.1} parent=100 // loop_header_branch
                %2556 = sbr.rel (%p2554) target = $region108
              $region105: #{tpu_custom_call.1} parent=100 // loop_body
                %v2560 = vld [vmem:[%s2558] sm:%s2551]
                %2561 = vst [vmem:[%s2559] sm:%s2551] %v2560
                %v2562 = vld [vmem:[%s2558 + $0x4] sm:%s2551]
                %2563 = vst [vmem:[%s2559 + $0x4] sm:%s2551] %v2562
                %v2564 = vld [vmem:[%s2558 + $0x8] sm:%s2551]
                %2565 = vst [vmem:[%s2559 + $0x8] sm:%s2551] %v2564
                %v2566 = vld [vmem:[%s2558 + $0xc] sm:%s2551]
                %2567 = vst [vmem:[%s2559 + $0xc] sm:%s2551] %v2566
                %v2568 = vld [vmem:[%s2558 + $0x10] sm:%s2551]
                %2569 = vst [vmem:[%s2559 + $0x10] sm:%s2551] %v2568
                %v2570 = vld [vmem:[%s2558 + $0x14] sm:%s2551]
                %2571 = vst [vmem:[%s2559 + $0x14] sm:%s2551] %v2570
                %v2572 = vld [vmem:[%s2558 + $0x18] sm:%s2551]
                %2573 = vst [vmem:[%s2559 + $0x18] sm:%s2551] %v2572
                %v2574 = vld [vmem:[%s2558 + $0x1c] sm:%s2551]
                %2575 = vst [vmem:[%s2559 + $0x1c] sm:%s2551] %v2574
                %v2576 = vld [vmem:[%s2558 + $0x20] sm:%s2551]
                %2577 = vst [vmem:[%s2559 + $0x20] sm:%s2551] %v2576
                %v2578 = vld [vmem:[%s2558 + $0x24] sm:%s2551]
                %2579 = vst [vmem:[%s2559 + $0x24] sm:%s2551] %v2578
                %v2580 = vld [vmem:[%s2558 + $0x28] sm:%s2551]
                %2581 = vst [vmem:[%s2559 + $0x28] sm:%s2551] %v2580
                %v2582 = vld [vmem:[%s2558 + $0x2c] sm:%s2551]
                %2583 = vst [vmem:[%s2559 + $0x2c] sm:%s2551] %v2582
                %v2584 = vld [vmem:[%s2558 + $0x30] sm:%s2551]
                %2585 = vst [vmem:[%s2559 + $0x30] sm:%s2551] %v2584
                %v2586 = vld [vmem:[%s2558 + $0x34] sm:%s2551]
                %2587 = vst [vmem:[%s2559 + $0x34] sm:%s2551] %v2586
                %v2588 = vld [vmem:[%s2558 + $0x38] sm:%s2551]
                %2589 = vst [vmem:[%s2559 + $0x38] sm:%s2551] %v2588
                %v2590 = vld [vmem:[%s2558 + $0x3c] sm:%s2551]
                %2591 = vst [vmem:[%s2559 + $0x3c] sm:%s2551] %v2590
                %v2592 = vld [vmem:[%s2558 + $0x40] sm:%s2551]
                %2593 = vst [vmem:[%s2559 + $0x80] sm:%s2551] %v2592
                %v2594 = vld [vmem:[%s2558 + $0x44] sm:%s2551]
                %2595 = vst [vmem:[%s2559 + $0x84] sm:%s2551] %v2594
                %v2596 = vld [vmem:[%s2558 + $0x48] sm:%s2551]
                %2597 = vst [vmem:[%s2559 + $0x88] sm:%s2551] %v2596
                %v2598 = vld [vmem:[%s2558 + $0x4c] sm:%s2551]
                %2599 = vst [vmem:[%s2559 + $0x8c] sm:%s2551] %v2598
                %v2600 = vld [vmem:[%s2558 + $0x50] sm:%s2551]
                %2601 = vst [vmem:[%s2559 + $0x90] sm:%s2551] %v2600
                %v2602 = vld [vmem:[%s2558 + $0x54] sm:%s2551]
                %2603 = vst [vmem:[%s2559 + $0x94] sm:%s2551] %v2602
                %v2604 = vld [vmem:[%s2558 + $0x58] sm:%s2551]
                %2605 = vst [vmem:[%s2559 + $0x98] sm:%s2551] %v2604
                %v2606 = vld [vmem:[%s2558 + $0x5c] sm:%s2551]
                %2607 = vst [vmem:[%s2559 + $0x9c] sm:%s2551] %v2606
                %v2608 = vld [vmem:[%s2558 + $0x60] sm:%s2551]
                %2609 = vst [vmem:[%s2559 + $0xa0] sm:%s2551] %v2608
                %v2610 = vld [vmem:[%s2558 + $0x64] sm:%s2551]
                %2611 = vst [vmem:[%s2559 + $0xa4] sm:%s2551] %v2610
                %v2612 = vld [vmem:[%s2558 + $0x68] sm:%s2551]
                %2613 = vst [vmem:[%s2559 + $0xa8] sm:%s2551] %v2612
                %v2614 = vld [vmem:[%s2558 + $0x6c] sm:%s2551]
                %2615 = vst [vmem:[%s2559 + $0xac] sm:%s2551] %v2614
                %v2616 = vld [vmem:[%s2558 + $0x70] sm:%s2551]
                %2617 = vst [vmem:[%s2559 + $0xb0] sm:%s2551] %v2616
                %v2618 = vld [vmem:[%s2558 + $0x74] sm:%s2551]
                %2619 = vst [vmem:[%s2559 + $0xb4] sm:%s2551] %v2618
                %v2620 = vld [vmem:[%s2558 + $0x78] sm:%s2551]
                %2621 = vst [vmem:[%s2559 + $0xb8] sm:%s2551] %v2620
                %v2622 = vld [vmem:[%s2558 + $0x7c] sm:%s2551]
                %2623 = vst [vmem:[%s2559 + $0xbc] sm:%s2551] %v2622
                %v2624 = vld [vmem:[%s2558 + $0x80] sm:%s2551]
                %2625 = vst [vmem:[%s2559 + $0x100] sm:%s2551] %v2624
                %v2626 = vld [vmem:[%s2558 + $0x84] sm:%s2551]
                %2627 = vst [vmem:[%s2559 + $0x104] sm:%s2551] %v2626
                %v2628 = vld [vmem:[%s2558 + $0x88] sm:%s2551]
                %2629 = vst [vmem:[%s2559 + $0x108] sm:%s2551] %v2628
                %v2630 = vld [vmem:[%s2558 + $0x8c] sm:%s2551]
                %2631 = vst [vmem:[%s2559 + $0x10c] sm:%s2551] %v2630
                %v2632 = vld [vmem:[%s2558 + $0x90] sm:%s2551]
                %2633 = vst [vmem:[%s2559 + $0x110] sm:%s2551] %v2632
                %v2634 = vld [vmem:[%s2558 + $0x94] sm:%s2551]
                %2635 = vst [vmem:[%s2559 + $0x114] sm:%s2551] %v2634
                %v2636 = vld [vmem:[%s2558 + $0x98] sm:%s2551]
                %2637 = vst [vmem:[%s2559 + $0x118] sm:%s2551] %v2636
                %v2638 = vld [vmem:[%s2558 + $0x9c] sm:%s2551]
                %2639 = vst [vmem:[%s2559 + $0x11c] sm:%s2551] %v2638
                %v2640 = vld [vmem:[%s2558 + $0xa0] sm:%s2551]
                %2641 = vst [vmem:[%s2559 + $0x120] sm:%s2551] %v2640
                %v2642 = vld [vmem:[%s2558 + $0xa4] sm:%s2551]
                %2643 = vst [vmem:[%s2559 + $0x124] sm:%s2551] %v2642
                %v2644 = vld [vmem:[%s2558 + $0xa8] sm:%s2551]
                %2645 = vst [vmem:[%s2559 + $0x128] sm:%s2551] %v2644
                %v2646 = vld [vmem:[%s2558 + $0xac] sm:%s2551]
                %2647 = vst [vmem:[%s2559 + $0x12c] sm:%s2551] %v2646
                %v2648 = vld [vmem:[%s2558 + $0xb0] sm:%s2551]
                %2649 = vst [vmem:[%s2559 + $0x130] sm:%s2551] %v2648
                %v2650 = vld [vmem:[%s2558 + $0xb4] sm:%s2551]
                %2651 = vst [vmem:[%s2559 + $0x134] sm:%s2551] %v2650
                %v2652 = vld [vmem:[%s2558 + $0xb8] sm:%s2551]
                %2653 = vst [vmem:[%s2559 + $0x138] sm:%s2551] %v2652
                %v2654 = vld [vmem:[%s2558 + $0xbc] sm:%s2551]
                %2655 = vst [vmem:[%s2559 + $0x13c] sm:%s2551] %v2654
                %v2656 = vld [vmem:[%s2558 + $0xc0] sm:%s2551]
                %2657 = vst [vmem:[%s2559 + $0x180] sm:%s2551] %v2656
                %v2658 = vld [vmem:[%s2558 + $0xc4] sm:%s2551]
                %2659 = vst [vmem:[%s2559 + $0x184] sm:%s2551] %v2658
                %v2660 = vld [vmem:[%s2558 + $0xc8] sm:%s2551]
                %2661 = vst [vmem:[%s2559 + $0x188] sm:%s2551] %v2660
                %v2662 = vld [vmem:[%s2558 + $0xcc] sm:%s2551]
                %2663 = vst [vmem:[%s2559 + $0x18c] sm:%s2551] %v2662
                %v2664 = vld [vmem:[%s2558 + $0xd0] sm:%s2551]
                %2665 = vst [vmem:[%s2559 + $0x190] sm:%s2551] %v2664
                %v2666 = vld [vmem:[%s2558 + $0xd4] sm:%s2551]
                %2667 = vst [vmem:[%s2559 + $0x194] sm:%s2551] %v2666
                %v2668 = vld [vmem:[%s2558 + $0xd8] sm:%s2551]
                %2669 = vst [vmem:[%s2559 + $0x198] sm:%s2551] %v2668
                %v2670 = vld [vmem:[%s2558 + $0xdc] sm:%s2551]
                %2671 = vst [vmem:[%s2559 + $0x19c] sm:%s2551] %v2670
                %v2672 = vld [vmem:[%s2558 + $0xe0] sm:%s2551]
                %2673 = vst [vmem:[%s2559 + $0x1a0] sm:%s2551] %v2672
                %v2674 = vld [vmem:[%s2558 + $0xe4] sm:%s2551]
                %2675 = vst [vmem:[%s2559 + $0x1a4] sm:%s2551] %v2674
                %v2676 = vld [vmem:[%s2558 + $0xe8] sm:%s2551]
                %2677 = vst [vmem:[%s2559 + $0x1a8] sm:%s2551] %v2676
                %v2678 = vld [vmem:[%s2558 + $0xec] sm:%s2551]
                %2679 = vst [vmem:[%s2559 + $0x1ac] sm:%s2551] %v2678
                %v2680 = vld [vmem:[%s2558 + $0xf0] sm:%s2551]
                %2681 = vst [vmem:[%s2559 + $0x1b0] sm:%s2551] %v2680
                %v2682 = vld [vmem:[%s2558 + $0xf4] sm:%s2551]
                %2683 = vst [vmem:[%s2559 + $0x1b4] sm:%s2551] %v2682
                %v2684 = vld [vmem:[%s2558 + $0xf8] sm:%s2551]
                %2685 = vst [vmem:[%s2559 + $0x1b8] sm:%s2551] %v2684
                %v2686 = vld [vmem:[%s2558 + $0xfc] sm:%s2551]
                %2687 = vst [vmem:[%s2559 + $0x1bc] sm:%s2551] %v2686
              $region106: #{tpu_custom_call.1} parent=100 // loop_footer
                %s2557 = sadd.s32 1, %s2553
              $region107: #{tpu_custom_call.1} parent=100 // loop_footer_branch
                %2552 = sbr.rel target = $region103
              $region108: #{tpu_custom_call.1} parent=100 // loop_exit
                _
            $region101: #{tpu_custom_call.1} parent=92 // pred_fallthru
              _
          $region93: #{tpu_custom_call.1} parent=88 // pred_fallthru
            _
          %2836 = vnop
        $region89: #{tpu_custom_call.1} parent=31 // pred_fallthru
          _
        // Predicated region
        $region127: #{tpu_custom_call.1} parent=31 // pred_check
          %p2837 = pneg %p179
        $region128: #{tpu_custom_call.1} parent=31 // pred_check_branch
          %2839 = sbr.rel (%p2837) target = $region130
        $region129: #{tpu_custom_call.1} parent=31 // pred_region
          %s2840 = smul.u32 16, %s26
          %s2841 = smul.addr %s25, 128
          %s2842 = sadd.s32 %s2840, %s2841
          %s2843 = smul.addr %s2842, 4
          %s2844 = scalar_lea.vmem %s5, %s2843
          // Predicated region
          $region131: #{tpu_custom_call.1} parent=129 // pred_check
            _
          $region132: #{tpu_custom_call.1} parent=129 // pred_check_branch
            %2846 = sbr.rel (0) target = $region134
          $region133: #{tpu_custom_call.1} parent=129 // pred_region
            // Predicated region
            $region135: #{tpu_custom_call.1} parent=133 // pred_check
              _
            $region136: #{tpu_custom_call.1} parent=133 // pred_check_branch
              %2848 = sbr.rel target = $region138
            $region137: #{tpu_custom_call.1} parent=133 // pred_region
              // Predicated region
              $region150: #{tpu_custom_call.1} parent=137 // pred_check
                _
              $region151: #{tpu_custom_call.1} parent=137 // pred_check_branch
                %2990 = sbr.rel (0) target = $region153
              $region152: #{tpu_custom_call.1} parent=137 // pred_region
                loop: start=0, step=1, limit=1
                $region154: #{tpu_custom_call.1} parent=152 // loop_pre_header
                  _
                $region155: #{tpu_custom_call.1} parent=152 // loop_header
                  %s2992 = sphi 0, %s2996
                  %p2993 = scmp.ge.s32.totalorder %s2992, 1
                  %s2997 = sphi %s2234, %s2234
                  %s2998 = sphi %s2844, %s2844
                $region156: #{tpu_custom_call.1} parent=152 // loop_header_branch
                  %2995 = sbr.rel (%p2993) target = $region160
                $region157: #{tpu_custom_call.1} parent=152 // loop_body
                  _
                $region158: #{tpu_custom_call.1} parent=152 // loop_footer
                  %s2996 = sadd.s32 1, %s2992
                $region159: #{tpu_custom_call.1} parent=152 // loop_footer_branch
                  %2991 = sbr.rel target = $region155
                $region160: #{tpu_custom_call.1} parent=152 // loop_exit
                  _
                %s3000 = ssub.s32 16, 1
                loop: start=0, step=1, limit=1
                $region161: #{tpu_custom_call.1} parent=152 // loop_pre_header
                  _
                $region162: #{tpu_custom_call.1} parent=152 // loop_header
                  %s3002 = sphi 0, %s3006
                  %p3003 = scmp.ge.s32.totalorder %s3002, 1
                  %s3007 = sphi %s2234, %s2234
                  %s3008 = sphi %s2844, %s2844
                $region163: #{tpu_custom_call.1} parent=152 // loop_header_branch
                  %3005 = sbr.rel (%p3003) target = $region167
                $region164: #{tpu_custom_call.1} parent=152 // loop_body
                  %v3009 = vld [vmem:[%s3007] sm:%s3000]
                  %3010 = vst [vmem:[%s3008] sm:%s3000] %v3009
                  %v3011 = vld [vmem:[%s3007 + $0x4] sm:%s3000]
                  %3012 = vst [vmem:[%s3008 + $0x4] sm:%s3000] %v3011
                  %v3013 = vld [vmem:[%s3007 + $0x8] sm:%s3000]
                  %3014 = vst [vmem:[%s3008 + $0x8] sm:%s3000] %v3013
                  %v3015 = vld [vmem:[%s3007 + $0xc] sm:%s3000]
                  %3016 = vst [vmem:[%s3008 + $0xc] sm:%s3000] %v3015
                  %v3017 = vld [vmem:[%s3007 + $0x10] sm:%s3000]
                  %3018 = vst [vmem:[%s3008 + $0x10] sm:%s3000] %v3017
                  %v3019 = vld [vmem:[%s3007 + $0x14] sm:%s3000]
                  %3020 = vst [vmem:[%s3008 + $0x14] sm:%s3000] %v3019
                  %v3021 = vld [vmem:[%s3007 + $0x18] sm:%s3000]
                  %3022 = vst [vmem:[%s3008 + $0x18] sm:%s3000] %v3021
                  %v3023 = vld [vmem:[%s3007 + $0x1c] sm:%s3000]
                  %3024 = vst [vmem:[%s3008 + $0x1c] sm:%s3000] %v3023
                  %v3025 = vld [vmem:[%s3007 + $0x20] sm:%s3000]
                  %3026 = vst [vmem:[%s3008 + $0x20] sm:%s3000] %v3025
                  %v3027 = vld [vmem:[%s3007 + $0x24] sm:%s3000]
                  %3028 = vst [vmem:[%s3008 + $0x24] sm:%s3000] %v3027
                  %v3029 = vld [vmem:[%s3007 + $0x28] sm:%s3000]
                  %3030 = vst [vmem:[%s3008 + $0x28] sm:%s3000] %v3029
                  %v3031 = vld [vmem:[%s3007 + $0x2c] sm:%s3000]
                  %3032 = vst [vmem:[%s3008 + $0x2c] sm:%s3000] %v3031
                  %v3033 = vld [vmem:[%s3007 + $0x30] sm:%s3000]
                  %3034 = vst [vmem:[%s3008 + $0x30] sm:%s3000] %v3033
                  %v3035 = vld [vmem:[%s3007 + $0x34] sm:%s3000]
                  %3036 = vst [vmem:[%s3008 + $0x34] sm:%s3000] %v3035
                  %v3037 = vld [vmem:[%s3007 + $0x38] sm:%s3000]
                  %3038 = vst [vmem:[%s3008 + $0x38] sm:%s3000] %v3037
                  %v3039 = vld [vmem:[%s3007 + $0x3c] sm:%s3000]
                  %3040 = vst [vmem:[%s3008 + $0x3c] sm:%s3000] %v3039
                  %v3041 = vld [vmem:[%s3007 + $0x40] sm:%s3000]
                  %3042 = vst [vmem:[%s3008 + $0x80] sm:%s3000] %v3041
                  %v3043 = vld [vmem:[%s3007 + $0x44] sm:%s3000]
                  %3044 = vst [vmem:[%s3008 + $0x84] sm:%s3000] %v3043
                  %v3045 = vld [vmem:[%s3007 + $0x48] sm:%s3000]
                  %3046 = vst [vmem:[%s3008 + $0x88] sm:%s3000] %v3045
                  %v3047 = vld [vmem:[%s3007 + $0x4c] sm:%s3000]
                  %3048 = vst [vmem:[%s3008 + $0x8c] sm:%s3000] %v3047
                  %v3049 = vld [vmem:[%s3007 + $0x50] sm:%s3000]
                  %3050 = vst [vmem:[%s3008 + $0x90] sm:%s3000] %v3049
                  %v3051 = vld [vmem:[%s3007 + $0x54] sm:%s3000]
                  %3052 = vst [vmem:[%s3008 + $0x94] sm:%s3000] %v3051
                  %v3053 = vld [vmem:[%s3007 + $0x58] sm:%s3000]
                  %3054 = vst [vmem:[%s3008 + $0x98] sm:%s3000] %v3053
                  %v3055 = vld [vmem:[%s3007 + $0x5c] sm:%s3000]
                  %3056 = vst [vmem:[%s3008 + $0x9c] sm:%s3000] %v3055
                  %v3057 = vld [vmem:[%s3007 + $0x60] sm:%s3000]
                  %3058 = vst [vmem:[%s3008 + $0xa0] sm:%s3000] %v3057
                  %v3059 = vld [vmem:[%s3007 + $0x64] sm:%s3000]
                  %3060 = vst [vmem:[%s3008 + $0xa4] sm:%s3000] %v3059
                  %v3061 = vld [vmem:[%s3007 + $0x68] sm:%s3000]
                  %3062 = vst [vmem:[%s3008 + $0xa8] sm:%s3000] %v3061
                  %v3063 = vld [vmem:[%s3007 + $0x6c] sm:%s3000]
                  %3064 = vst [vmem:[%s3008 + $0xac] sm:%s3000] %v3063
                  %v3065 = vld [vmem:[%s3007 + $0x70] sm:%s3000]
                  %3066 = vst [vmem:[%s3008 + $0xb0] sm:%s3000] %v3065
                  %v3067 = vld [vmem:[%s3007 + $0x74] sm:%s3000]
                  %3068 = vst [vmem:[%s3008 + $0xb4] sm:%s3000] %v3067
                  %v3069 = vld [vmem:[%s3007 + $0x78] sm:%s3000]
                  %3070 = vst [vmem:[%s3008 + $0xb8] sm:%s3000] %v3069
                  %v3071 = vld [vmem:[%s3007 + $0x7c] sm:%s3000]
                  %3072 = vst [vmem:[%s3008 + $0xbc] sm:%s3000] %v3071
                  %v3073 = vld [vmem:[%s3007 + $0x80] sm:%s3000]
                  %3074 = vst [vmem:[%s3008 + $0x100] sm:%s3000] %v3073
                  %v3075 = vld [vmem:[%s3007 + $0x84] sm:%s3000]
                  %3076 = vst [vmem:[%s3008 + $0x104] sm:%s3000] %v3075
                  %v3077 = vld [vmem:[%s3007 + $0x88] sm:%s3000]
                  %3078 = vst [vmem:[%s3008 + $0x108] sm:%s3000] %v3077
                  %v3079 = vld [vmem:[%s3007 + $0x8c] sm:%s3000]
                  %3080 = vst [vmem:[%s3008 + $0x10c] sm:%s3000] %v3079
                  %v3081 = vld [vmem:[%s3007 + $0x90] sm:%s3000]
                  %3082 = vst [vmem:[%s3008 + $0x110] sm:%s3000] %v3081
                  %v3083 = vld [vmem:[%s3007 + $0x94] sm:%s3000]
                  %3084 = vst [vmem:[%s3008 + $0x114] sm:%s3000] %v3083
                  %v3085 = vld [vmem:[%s3007 + $0x98] sm:%s3000]
                  %3086 = vst [vmem:[%s3008 + $0x118] sm:%s3000] %v3085
                  %v3087 = vld [vmem:[%s3007 + $0x9c] sm:%s3000]
                  %3088 = vst [vmem:[%s3008 + $0x11c] sm:%s3000] %v3087
                  %v3089 = vld [vmem:[%s3007 + $0xa0] sm:%s3000]
                  %3090 = vst [vmem:[%s3008 + $0x120] sm:%s3000] %v3089
                  %v3091 = vld [vmem:[%s3007 + $0xa4] sm:%s3000]
                  %3092 = vst [vmem:[%s3008 + $0x124] sm:%s3000] %v3091
                  %v3093 = vld [vmem:[%s3007 + $0xa8] sm:%s3000]
                  %3094 = vst [vmem:[%s3008 + $0x128] sm:%s3000] %v3093
                  %v3095 = vld [vmem:[%s3007 + $0xac] sm:%s3000]
                  %3096 = vst [vmem:[%s3008 + $0x12c] sm:%s3000] %v3095
                  %v3097 = vld [vmem:[%s3007 + $0xb0] sm:%s3000]
                  %3098 = vst [vmem:[%s3008 + $0x130] sm:%s3000] %v3097
                  %v3099 = vld [vmem:[%s3007 + $0xb4] sm:%s3000]
                  %3100 = vst [vmem:[%s3008 + $0x134] sm:%s3000] %v3099
                  %v3101 = vld [vmem:[%s3007 + $0xb8] sm:%s3000]
                  %3102 = vst [vmem:[%s3008 + $0x138] sm:%s3000] %v3101
                  %v3103 = vld [vmem:[%s3007 + $0xbc] sm:%s3000]
                  %3104 = vst [vmem:[%s3008 + $0x13c] sm:%s3000] %v3103
                  %v3105 = vld [vmem:[%s3007 + $0xc0] sm:%s3000]
                  %3106 = vst [vmem:[%s3008 + $0x180] sm:%s3000] %v3105
                  %v3107 = vld [vmem:[%s3007 + $0xc4] sm:%s3000]
                  %3108 = vst [vmem:[%s3008 + $0x184] sm:%s3000] %v3107
                  %v3109 = vld [vmem:[%s3007 + $0xc8] sm:%s3000]
                  %3110 = vst [vmem:[%s3008 + $0x188] sm:%s3000] %v3109
                  %v3111 = vld [vmem:[%s3007 + $0xcc] sm:%s3000]
                  %3112 = vst [vmem:[%s3008 + $0x18c] sm:%s3000] %v3111
                  %v3113 = vld [vmem:[%s3007 + $0xd0] sm:%s3000]
                  %3114 = vst [vmem:[%s3008 + $0x190] sm:%s3000] %v3113
                  %v3115 = vld [vmem:[%s3007 + $0xd4] sm:%s3000]
                  %3116 = vst [vmem:[%s3008 + $0x194] sm:%s3000] %v3115
                  %v3117 = vld [vmem:[%s3007 + $0xd8] sm:%s3000]
                  %3118 = vst [vmem:[%s3008 + $0x198] sm:%s3000] %v3117
                  %v3119 = vld [vmem:[%s3007 + $0xdc] sm:%s3000]
                  %3120 = vst [vmem:[%s3008 + $0x19c] sm:%s3000] %v3119
                  %v3121 = vld [vmem:[%s3007 + $0xe0] sm:%s3000]
                  %3122 = vst [vmem:[%s3008 + $0x1a0] sm:%s3000] %v3121
                  %v3123 = vld [vmem:[%s3007 + $0xe4] sm:%s3000]
                  %3124 = vst [vmem:[%s3008 + $0x1a4] sm:%s3000] %v3123
                  %v3125 = vld [vmem:[%s3007 + $0xe8] sm:%s3000]
                  %3126 = vst [vmem:[%s3008 + $0x1a8] sm:%s3000] %v3125
                  %v3127 = vld [vmem:[%s3007 + $0xec] sm:%s3000]
                  %3128 = vst [vmem:[%s3008 + $0x1ac] sm:%s3000] %v3127
                  %v3129 = vld [vmem:[%s3007 + $0xf0] sm:%s3000]
                  %3130 = vst [vmem:[%s3008 + $0x1b0] sm:%s3000] %v3129
                  %v3131 = vld [vmem:[%s3007 + $0xf4] sm:%s3000]
                  %3132 = vst [vmem:[%s3008 + $0x1b4] sm:%s3000] %v3131
                  %v3133 = vld [vmem:[%s3007 + $0xf8] sm:%s3000]
                  %3134 = vst [vmem:[%s3008 + $0x1b8] sm:%s3000] %v3133
                  %v3135 = vld [vmem:[%s3007 + $0xfc] sm:%s3000]
                  %3136 = vst [vmem:[%s3008 + $0x1bc] sm:%s3000] %v3135
                $region165: #{tpu_custom_call.1} parent=152 // loop_footer
                  %s3006 = sadd.s32 1, %s3002
                $region166: #{tpu_custom_call.1} parent=152 // loop_footer_branch
                  %3001 = sbr.rel target = $region162
                $region167: #{tpu_custom_call.1} parent=152 // loop_exit
                  _
              $region153: #{tpu_custom_call.1} parent=137 // pred_fallthru
                _
            $region138: #{tpu_custom_call.1} parent=133 // pred_fallthru
              _
            // Predicated region
            $region139: #{tpu_custom_call.1} parent=133 // pred_check
              _
            $region140: #{tpu_custom_call.1} parent=133 // pred_check_branch
              %2850 = sbr.rel (0) target = $region142
            $region141: #{tpu_custom_call.1} parent=133 // pred_region
              %s2852 = ssub.s32 16, 1
              loop: start=0, step=1, limit=1
              $region143: #{tpu_custom_call.1} parent=141 // loop_pre_header
                _
              $region144: #{tpu_custom_call.1} parent=141 // loop_header
                %s2854 = sphi 0, %s2858
                %p2855 = scmp.ge.s32.totalorder %s2854, 1
                %s2859 = sphi %s2234, %s2234
                %s2860 = sphi %s2844, %s2844
              $region145: #{tpu_custom_call.1} parent=141 // loop_header_branch
                %2857 = sbr.rel (%p2855) target = $region149
              $region146: #{tpu_custom_call.1} parent=141 // loop_body
                %v2861 = vld [vmem:[%s2859] sm:%s2852]
                %2862 = vst [vmem:[%s2860] sm:%s2852] %v2861
                %v2863 = vld [vmem:[%s2859 + $0x4] sm:%s2852]
                %2864 = vst [vmem:[%s2860 + $0x4] sm:%s2852] %v2863
                %v2865 = vld [vmem:[%s2859 + $0x8] sm:%s2852]
                %2866 = vst [vmem:[%s2860 + $0x8] sm:%s2852] %v2865
                %v2867 = vld [vmem:[%s2859 + $0xc] sm:%s2852]
                %2868 = vst [vmem:[%s2860 + $0xc] sm:%s2852] %v2867
                %v2869 = vld [vmem:[%s2859 + $0x10] sm:%s2852]
                %2870 = vst [vmem:[%s2860 + $0x10] sm:%s2852] %v2869
                %v2871 = vld [vmem:[%s2859 + $0x14] sm:%s2852]
                %2872 = vst [vmem:[%s2860 + $0x14] sm:%s2852] %v2871
                %v2873 = vld [vmem:[%s2859 + $0x18] sm:%s2852]
                %2874 = vst [vmem:[%s2860 + $0x18] sm:%s2852] %v2873
                %v2875 = vld [vmem:[%s2859 + $0x1c] sm:%s2852]
                %2876 = vst [vmem:[%s2860 + $0x1c] sm:%s2852] %v2875
                %v2877 = vld [vmem:[%s2859 + $0x20] sm:%s2852]
                %2878 = vst [vmem:[%s2860 + $0x20] sm:%s2852] %v2877
                %v2879 = vld [vmem:[%s2859 + $0x24] sm:%s2852]
                %2880 = vst [vmem:[%s2860 + $0x24] sm:%s2852] %v2879
                %v2881 = vld [vmem:[%s2859 + $0x28] sm:%s2852]
                %2882 = vst [vmem:[%s2860 + $0x28] sm:%s2852] %v2881
                %v2883 = vld [vmem:[%s2859 + $0x2c] sm:%s2852]
                %2884 = vst [vmem:[%s2860 + $0x2c] sm:%s2852] %v2883
                %v2885 = vld [vmem:[%s2859 + $0x30] sm:%s2852]
                %2886 = vst [vmem:[%s2860 + $0x30] sm:%s2852] %v2885
                %v2887 = vld [vmem:[%s2859 + $0x34] sm:%s2852]
                %2888 = vst [vmem:[%s2860 + $0x34] sm:%s2852] %v2887
                %v2889 = vld [vmem:[%s2859 + $0x38] sm:%s2852]
                %2890 = vst [vmem:[%s2860 + $0x38] sm:%s2852] %v2889
                %v2891 = vld [vmem:[%s2859 + $0x3c] sm:%s2852]
                %2892 = vst [vmem:[%s2860 + $0x3c] sm:%s2852] %v2891
                %v2893 = vld [vmem:[%s2859 + $0x40] sm:%s2852]
                %2894 = vst [vmem:[%s2860 + $0x80] sm:%s2852] %v2893
                %v2895 = vld [vmem:[%s2859 + $0x44] sm:%s2852]
                %2896 = vst [vmem:[%s2860 + $0x84] sm:%s2852] %v2895
                %v2897 = vld [vmem:[%s2859 + $0x48] sm:%s2852]
                %2898 = vst [vmem:[%s2860 + $0x88] sm:%s2852] %v2897
                %v2899 = vld [vmem:[%s2859 + $0x4c] sm:%s2852]
                %2900 = vst [vmem:[%s2860 + $0x8c] sm:%s2852] %v2899
                %v2901 = vld [vmem:[%s2859 + $0x50] sm:%s2852]
                %2902 = vst [vmem:[%s2860 + $0x90] sm:%s2852] %v2901
                %v2903 = vld [vmem:[%s2859 + $0x54] sm:%s2852]
                %2904 = vst [vmem:[%s2860 + $0x94] sm:%s2852] %v2903
                %v2905 = vld [vmem:[%s2859 + $0x58] sm:%s2852]
                %2906 = vst [vmem:[%s2860 + $0x98] sm:%s2852] %v2905
                %v2907 = vld [vmem:[%s2859 + $0x5c] sm:%s2852]
                %2908 = vst [vmem:[%s2860 + $0x9c] sm:%s2852] %v2907
                %v2909 = vld [vmem:[%s2859 + $0x60] sm:%s2852]
                %2910 = vst [vmem:[%s2860 + $0xa0] sm:%s2852] %v2909
                %v2911 = vld [vmem:[%s2859 + $0x64] sm:%s2852]
                %2912 = vst [vmem:[%s2860 + $0xa4] sm:%s2852] %v2911
                %v2913 = vld [vmem:[%s2859 + $0x68] sm:%s2852]
                %2914 = vst [vmem:[%s2860 + $0xa8] sm:%s2852] %v2913
                %v2915 = vld [vmem:[%s2859 + $0x6c] sm:%s2852]
                %2916 = vst [vmem:[%s2860 + $0xac] sm:%s2852] %v2915
                %v2917 = vld [vmem:[%s2859 + $0x70] sm:%s2852]
                %2918 = vst [vmem:[%s2860 + $0xb0] sm:%s2852] %v2917
                %v2919 = vld [vmem:[%s2859 + $0x74] sm:%s2852]
                %2920 = vst [vmem:[%s2860 + $0xb4] sm:%s2852] %v2919
                %v2921 = vld [vmem:[%s2859 + $0x78] sm:%s2852]
                %2922 = vst [vmem:[%s2860 + $0xb8] sm:%s2852] %v2921
                %v2923 = vld [vmem:[%s2859 + $0x7c] sm:%s2852]
                %2924 = vst [vmem:[%s2860 + $0xbc] sm:%s2852] %v2923
                %v2925 = vld [vmem:[%s2859 + $0x80] sm:%s2852]
                %2926 = vst [vmem:[%s2860 + $0x100] sm:%s2852] %v2925
                %v2927 = vld [vmem:[%s2859 + $0x84] sm:%s2852]
                %2928 = vst [vmem:[%s2860 + $0x104] sm:%s2852] %v2927
                %v2929 = vld [vmem:[%s2859 + $0x88] sm:%s2852]
                %2930 = vst [vmem:[%s2860 + $0x108] sm:%s2852] %v2929
                %v2931 = vld [vmem:[%s2859 + $0x8c] sm:%s2852]
                %2932 = vst [vmem:[%s2860 + $0x10c] sm:%s2852] %v2931
                %v2933 = vld [vmem:[%s2859 + $0x90] sm:%s2852]
                %2934 = vst [vmem:[%s2860 + $0x110] sm:%s2852] %v2933
                %v2935 = vld [vmem:[%s2859 + $0x94] sm:%s2852]
                %2936 = vst [vmem:[%s2860 + $0x114] sm:%s2852] %v2935
                %v2937 = vld [vmem:[%s2859 + $0x98] sm:%s2852]
                %2938 = vst [vmem:[%s2860 + $0x118] sm:%s2852] %v2937
                %v2939 = vld [vmem:[%s2859 + $0x9c] sm:%s2852]
                %2940 = vst [vmem:[%s2860 + $0x11c] sm:%s2852] %v2939
                %v2941 = vld [vmem:[%s2859 + $0xa0] sm:%s2852]
                %2942 = vst [vmem:[%s2860 + $0x120] sm:%s2852] %v2941
                %v2943 = vld [vmem:[%s2859 + $0xa4] sm:%s2852]
                %2944 = vst [vmem:[%s2860 + $0x124] sm:%s2852] %v2943
                %v2945 = vld [vmem:[%s2859 + $0xa8] sm:%s2852]
                %2946 = vst [vmem:[%s2860 + $0x128] sm:%s2852] %v2945
                %v2947 = vld [vmem:[%s2859 + $0xac] sm:%s2852]
                %2948 = vst [vmem:[%s2860 + $0x12c] sm:%s2852] %v2947
                %v2949 = vld [vmem:[%s2859 + $0xb0] sm:%s2852]
                %2950 = vst [vmem:[%s2860 + $0x130] sm:%s2852] %v2949
                %v2951 = vld [vmem:[%s2859 + $0xb4] sm:%s2852]
                %2952 = vst [vmem:[%s2860 + $0x134] sm:%s2852] %v2951
                %v2953 = vld [vmem:[%s2859 + $0xb8] sm:%s2852]
                %2954 = vst [vmem:[%s2860 + $0x138] sm:%s2852] %v2953
                %v2955 = vld [vmem:[%s2859 + $0xbc] sm:%s2852]
                %2956 = vst [vmem:[%s2860 + $0x13c] sm:%s2852] %v2955
                %v2957 = vld [vmem:[%s2859 + $0xc0] sm:%s2852]
                %2958 = vst [vmem:[%s2860 + $0x180] sm:%s2852] %v2957
                %v2959 = vld [vmem:[%s2859 + $0xc4] sm:%s2852]
                %2960 = vst [vmem:[%s2860 + $0x184] sm:%s2852] %v2959
                %v2961 = vld [vmem:[%s2859 + $0xc8] sm:%s2852]
                %2962 = vst [vmem:[%s2860 + $0x188] sm:%s2852] %v2961
                %v2963 = vld [vmem:[%s2859 + $0xcc] sm:%s2852]
                %2964 = vst [vmem:[%s2860 + $0x18c] sm:%s2852] %v2963
                %v2965 = vld [vmem:[%s2859 + $0xd0] sm:%s2852]
                %2966 = vst [vmem:[%s2860 + $0x190] sm:%s2852] %v2965
                %v2967 = vld [vmem:[%s2859 + $0xd4] sm:%s2852]
                %2968 = vst [vmem:[%s2860 + $0x194] sm:%s2852] %v2967
                %v2969 = vld [vmem:[%s2859 + $0xd8] sm:%s2852]
                %2970 = vst [vmem:[%s2860 + $0x198] sm:%s2852] %v2969
                %v2971 = vld [vmem:[%s2859 + $0xdc] sm:%s2852]
                %2972 = vst [vmem:[%s2860 + $0x19c] sm:%s2852] %v2971
                %v2973 = vld [vmem:[%s2859 + $0xe0] sm:%s2852]
                %2974 = vst [vmem:[%s2860 + $0x1a0] sm:%s2852] %v2973
                %v2975 = vld [vmem:[%s2859 + $0xe4] sm:%s2852]
                %2976 = vst [vmem:[%s2860 + $0x1a4] sm:%s2852] %v2975
                %v2977 = vld [vmem:[%s2859 + $0xe8] sm:%s2852]
                %2978 = vst [vmem:[%s2860 + $0x1a8] sm:%s2852] %v2977
                %v2979 = vld [vmem:[%s2859 + $0xec] sm:%s2852]
                %2980 = vst [vmem:[%s2860 + $0x1ac] sm:%s2852] %v2979
                %v2981 = vld [vmem:[%s2859 + $0xf0] sm:%s2852]
                %2982 = vst [vmem:[%s2860 + $0x1b0] sm:%s2852] %v2981
                %v2983 = vld [vmem:[%s2859 + $0xf4] sm:%s2852]
                %2984 = vst [vmem:[%s2860 + $0x1b4] sm:%s2852] %v2983
                %v2985 = vld [vmem:[%s2859 + $0xf8] sm:%s2852]
                %2986 = vst [vmem:[%s2860 + $0x1b8] sm:%s2852] %v2985
                %v2987 = vld [vmem:[%s2859 + $0xfc] sm:%s2852]
                %2988 = vst [vmem:[%s2860 + $0x1bc] sm:%s2852] %v2987
              $region147: #{tpu_custom_call.1} parent=141 // loop_footer
                %s2858 = sadd.s32 1, %s2854
              $region148: #{tpu_custom_call.1} parent=141 // loop_footer_branch
                %2853 = sbr.rel target = $region144
              $region149: #{tpu_custom_call.1} parent=141 // loop_exit
                _
            $region142: #{tpu_custom_call.1} parent=133 // pred_fallthru
              _
          $region134: #{tpu_custom_call.1} parent=129 // pred_fallthru
            _
          %3137 = vnop
        $region130: #{tpu_custom_call.1} parent=31 // pred_fallthru
          _
      $region32: #{tpu_custom_call.1} parent=5 // pred_fallthru
        _
      %p3138 = scmp.le.s32.totalorder 2, %s16
      // Predicated region
      $region168: #{tpu_custom_call.1} parent=5 // pred_check
        %p3139 = pneg %p3138
      $region169: #{tpu_custom_call.1} parent=5 // pred_check_branch
        %3141 = sbr.rel (%p3139) target = $region171
      $region170: #{tpu_custom_call.1} parent=5 // pred_region
        %s3142 = ssub.s32 %s16, 2
        // Predicated region
        $region172: #{tpu_custom_call.1} parent=170 // pred_check
          %p3143 = pneg %p129
        $region173: #{tpu_custom_call.1} parent=170 // pred_check_branch
          %3145 = sbr.rel (%p3143) target = $region175
        $region174: #{tpu_custom_call.1} parent=170 // pred_region
          %s3146 = sand.u32 %s114, 1
          %s3147 = sand.u32 %s114, 1
          %s3148 = smul.addr %s3147, 256
          %s3149 = scalar_lea.vmem [#allocation7], %s3148
        $region175: #{tpu_custom_call.1} parent=170 // pred_fallthru
          _
        // Predicated region
        $region176: #{tpu_custom_call.1} parent=170 // pred_check
          %p3150 = pneg %p157
        $region177: #{tpu_custom_call.1} parent=170 // pred_check_branch
          %3152 = sbr.rel (%p3150) target = $region179
        $region178: #{tpu_custom_call.1} parent=170 // pred_region
          %s3153 = sand.u32 %s142, 1
          %s3154 = sand.u32 %s142, 1
          %s3155 = smul.addr %s3154, 256
          %s3156 = scalar_lea.vmem [#allocation8], %s3155
        $region179: #{tpu_custom_call.1} parent=170 // pred_fallthru
          _
        // Predicated region
        $region180: #{tpu_custom_call.1} parent=170 // pred_check
          %p3157 = pneg %p185
        $region181: #{tpu_custom_call.1} parent=170 // pred_check_branch
          %3159 = sbr.rel (%p3157) target = $region183
        $region182: #{tpu_custom_call.1} parent=170 // pred_region
          %s3160 = sand.u32 %s170, 1
          %s3161 = sand.u32 %s170, 1
          %s3162 = smul.addr %s3161, 256
          %s3163 = scalar_lea.vmem [#allocation9], %s3162
        $region183: #{tpu_custom_call.1} parent=170 // pred_fallthru
          _
      $region171: #{tpu_custom_call.1} parent=5 // pred_fallthru
        _
    $region6: #{tpu_custom_call.1} parent=1 // loop_footer
      %s20 = sadd.s32 1, %s16
    $region7: #{tpu_custom_call.1} parent=1 // loop_footer_branch
      %15 = sbr.rel target = $region3
    $region8: #{tpu_custom_call.1} parent=1 // loop_exit
      _
    %3164 = vsyncpa [#allocation3], 1
    %s3165 = scalar_lea.sflag [#allocation3], 1
    %3166 = vsyncpa %s3165, 1
    %3167 = vsyncpa [#allocation5], 1

</llo_original>
